<compile_context>
chip_gen: v5e
topology: v5e:2x2
jax: 0.10.0
libtpu: 0.0.40
codegen_flags: <defaults>
</compile_context>

<pallas_src>
import jax
import jax.numpy as jnp
from jax import lax
from jax.experimental import pallas as pl
from jax.experimental.pallas import tpu as pltpu

EPS = 1e-5      # nn.BatchNorm2d default eps
LANE = 128      # TPU lane width


def _vmem_limit_bytes():
    """Per-generation scoped-VMEM ceiling: ~3/4 of physical, capped at 100MiB."""
    try:
        cap = int(pltpu.get_tpu_info().vmem_capacity_bytes)
    except Exception:
        cap = 64 * 2 ** 20          # conservative fallback -> 48 MiB limit
    return int(min(100 * 2 ** 20, cap * 3 // 4))


# ---------------------------------------------------------------------------
# Pallas kernels
# ---------------------------------------------------------------------------
def _conv_a_shortcut_kernel(xee_ref, xeo_ref, xoe_ref, xoo_ref,
                            wa_ref, w1_ref, b1_ref,
                            za_ref, sc_ref, s_ref, ss_ref, acc_ref):
    """Per image: 3x3 stride-2 conv_a (9 tap dots from parity views, f32 VMEM
    accumulator), fused 1x1 stride-2 shortcut from the middle tap, and per-image
    BN_a partial statistics."""
    _, ho, wo, cp = za_ref.shape
    cin = xee_ref.shape[-1]
    # The four parity views of the spatially padded input, loaded once.
    xv = ((xee_ref[0], xeo_ref[0]), (xoe_ref[0], xoo_ref[0]))

    t = 0
    for kh in range(3):
        for kw in range(3):
            src = xv[kh % 2][kw % 2]
            r0, c0 = kh // 2, kw // 2
            tap = src[r0:r0 + ho, c0:c0 + wo, :].reshape(ho * wo, cin)  # bf16
            d = jnp.dot(tap, wa_ref[t], preferred_element_type=jnp.float32)
            if t == 0:
                acc_ref[...] = d
            else:
                acc_ref[...] += d
            if kh == 1 and kw == 1:
                # middle tap == x[::2, ::2]  ->  shortcut rides on resident data
                sc = jnp.dot(tap, w1_ref[...],
                             preferred_element_type=jnp.float32) + b1_ref[...]
                sc_ref[...] = sc.reshape(1, ho, wo, cp).astype(sc_ref.dtype)
            t += 1

    z = acc_ref[...]                                        # (ho*wo, cp) f32
    za_ref[...] = z.reshape(1, ho, wo, cp).astype(za_ref.dtype)
    s_ref[...] = jnp.sum(z, axis=0, keepdims=True).reshape(1, 1, cp)
    ss_ref[...] = jnp.sum(z * z, axis=0, keepdims=True).reshape(1, 1, cp)


def _bn_relu_conv_b_kernel(za_ref, sa_ref, ta_ref, wb_ref,
                           zb_ref, s_ref, ss_ref, yp_ref, acc_ref):
    """Per image: y = relu(z_a*scale_a + shift_a) written into the interior of a
    zero-bordered bf16 scratch (conv_b's zero padding), then the 3x3 stride-1
    conv as 3 K-fused dots (K = 3*Cp) into an f32 VMEM accumulator.  Also emits
    per-image BN_b partial statistics."""
    _, ho, wo, cp = za_ref.shape

    z = za_ref[0].astype(jnp.float32)                       # (ho, wo, cp)
    y = jnp.maximum(z * sa_ref[...].reshape(1, 1, cp)
                    + ta_ref[...].reshape(1, 1, cp), 0.0)   # folded BN -> 1 FMA
    # Zero border + interior write each step (megacore-safe, no HBM pad).
    yp_ref[...] = jnp.zeros(yp_ref.shape, yp_ref.dtype)
    yp_ref[1:ho + 1, 1:wo + 1, :] = y.astype(yp_ref.dtype)

    for kh in range(3):                                     # 3 dots, K = 3*cp
        slab = jnp.concatenate([yp_ref[kh:kh + ho, kw:kw + wo, :]
                                for kw in range(3)], axis=-1)   # lane-aligned
        slab = slab.reshape(ho * wo, 3 * cp)
        d = jnp.dot(slab, wb_ref[kh], preferred_element_type=jnp.float32)
        if kh == 0:
            acc_ref[...] = d
        else:
            acc_ref[...] += d

    zb = acc_ref[...]                                       # (ho*wo, cp) f32
    zb_ref[...] = zb.reshape(1, ho, wo, cp).astype(zb_ref.dtype)
    s_ref[...] = jnp.sum(zb, axis=0, keepdims=True).reshape(1, 1, cp)
    ss_ref[...] = jnp.sum(zb * zb, axis=0, keepdims=True).reshape(1, 1, cp)


def _bn_relu_add_kernel(zb_ref, sc_ref, sb_ref, tb_ref, o_ref):
    """out = shortcut + relu(z_b * scale_b + shift_b), lane-dense tiles."""
    y = jnp.maximum(zb_ref[...].astype(jnp.float32) * sb_ref[...] + tb_ref[...],
                    0.0)
    o_ref[...] = (sc_ref[...].astype(jnp.float32) + y).astype(o_ref.dtype)


# ---------------------------------------------------------------------------
# Plain-JAX glue
# ---------------------------------------------------------------------------
def _bn_scale_shift(sum_p, sumsq_p, count, gamma, beta):
    """Fold training-mode BN (biased batch variance) into one FMA per channel."""
    s = jnp.sum(sum_p, axis=0)                              # (1, cp)
    ss = jnp.sum(sumsq_p, axis=0)
    mean = s / count
    var = jnp.maximum(ss / count - mean * mean, 0.0)
    scale = gamma * lax.rsqrt(var + EPS)
    shift = beta - mean * scale
    return scale.astype(jnp.float32), shift.astype(jnp.float32)


def bottleneck_block_forward(x_nchw, p):
    b, cin, h, w = x_nchw.shape
    cout = p["w1"].shape[-1]
    cp = ((cout + LANE - 1) // LANE) * LANE                 # lane-dense channels
    ho = (h - 1) // 2 + 1
    wo = (w - 1) // 2 + 1
    m = b * ho * wo

    def pad_c(a):                                           # pad last dim to cp
        return jnp.pad(a, [(0, 0)] * (a.ndim - 1) + [(0, cp - cout)])

    # --- parameters in kernel-friendly layouts --------------------------------
    wa = pad_c(p["wa"].reshape(9, cin, cout)).astype(jnp.bfloat16)   # (9, cin, cp)
    wb = jnp.pad(p["wb"], ((0, 0), (0, 0), (0, cp - cout), (0, cp - cout)))
    wb = wb.reshape(3, 3 * cp, cp).astype(jnp.bfloat16)              # (3, 3cp, cp)
    w1 = pad_c(p["w1"].reshape(cin, cout)).astype(jnp.bfloat16)      # (cin, cp)
    b1 = pad_c(p["b1"]).astype(jnp.float32)                          # (1, cp)
    ga, beta_a = pad_c(p["ga"]), pad_c(p["beta_a"])                  # (1, cp) f32
    gb, beta_b = pad_c(p["gb"]), pad_c(p["beta_b"])
    # Conv biases ba/bb feed straight into BatchNorm and cancel in the mean
    # subtraction -> intentionally not passed to the kernels.

    # --- NCHW -> NHWC bf16, spatial pad 1, even/odd parity split (no im2col) --
    x = jnp.transpose(x_nchw, (0, 2, 3, 1)).astype(jnp.bfloat16)
    xp = jnp.pad(x, ((0, 0), (1, 1), (1, 1), (0, 0)))
    xee = xp[:, 0::2, 0::2, :]
    xeo = xp[:, 0::2, 1::2, :]
    xoe = xp[:, 1::2, 0::2, :]
    xoo = xp[:, 1::2, 1::2, :]

    par = pltpu.CompilerParams(dimension_semantics=("parallel",),
                               vmem_limit_bytes=_vmem_limit_bytes())

    def parity_spec(a):
        return pl.BlockSpec((1,) + tuple(a.shape[1:]), lambda n: (n, 0, 0, 0))

    # --- pass 1: conv_a (9 tap dots) + fused shortcut + BN_a partial stats ----
    za, sc, sa_p, ssa_p = pl.pallas_call(
        _conv_a_shortcut_kernel,
        grid=(b,),
        out_shape=(jax.ShapeDtypeStruct((b, ho, wo, cp), jnp.bfloat16),
                   jax.ShapeDtypeStruct((b, ho, wo, cp), jnp.bfloat16),
                   jax.ShapeDtypeStruct((b, 1, cp), jnp.float32),
                   jax.ShapeDtypeStruct((b, 1, cp), jnp.float32)),
        in_specs=[parity_spec(xee), parity_spec(xeo),
                  parity_spec(xoe), parity_spec(xoo),
                  pl.BlockSpec((9, cin, cp), lambda n: (0, 0, 0)),
                  pl.BlockSpec((cin, cp), lambda n: (0, 0)),
                  pl.BlockSpec((1, cp), lambda n: (0, 0))],
        out_specs=(pl.BlockSpec((1, ho, wo, cp), lambda n: (n, 0, 0, 0)),
                   pl.BlockSpec((1, ho, wo, cp), lambda n: (n, 0, 0, 0)),
                   pl.BlockSpec((1, 1, cp), lambda n: (n, 0, 0)),
                   pl.BlockSpec((1, 1, cp), lambda n: (n, 0, 0))),
        scratch_shapes=[pltpu.VMEM((ho * wo, cp), jnp.float32)],
        compiler_params=par,
    )(xee, xeo, xoe, xoo, wa, w1, b1)

    scale_a, shift_a = _bn_scale_shift(sa_p, ssa_p, m, ga, beta_a)

    # --- pass 2: BN_a + ReLU fused with conv_b (K-fused taps) + BN_b stats ----
    zb, sb_p, ssb_p = pl.pallas_call(
        _bn_relu_conv_b_kernel,
        grid=(b,),
        out_shape=(jax.ShapeDtypeStruct((b, ho, wo, cp), jnp.bfloat16),
                   jax.ShapeDtypeStruct((b, 1, cp), jnp.float32),
                   jax.ShapeDtypeStruct((b, 1, cp), jnp.float32)),
        in_specs=[pl.BlockSpec((1, ho, wo, cp), lambda n: (n, 0, 0, 0)),
                  pl.BlockSpec((1, cp), lambda n: (0, 0)),
                  pl.BlockSpec((1, cp), lambda n: (0, 0)),
                  pl.BlockSpec((3, 3 * cp, cp), lambda n: (0, 0, 0))],
        out_specs=(pl.BlockSpec((1, ho, wo, cp), lambda n: (n, 0, 0, 0)),
                   pl.BlockSpec((1, 1, cp), lambda n: (n, 0, 0)),
                   pl.BlockSpec((1, 1, cp), lambda n: (n, 0, 0))),
        scratch_shapes=[pltpu.VMEM((ho + 2, wo + 2, cp), jnp.bfloat16),
                        pltpu.VMEM((ho * wo, cp), jnp.float32)],
        compiler_params=par,
    )(za, scale_a, shift_a, wb)

    scale_b, shift_b = _bn_scale_shift(sb_p, ssb_p, m, gb, beta_b)

    # --- pass 3: BN_b + ReLU + residual add (elementwise, cdiv row tiles) -----
    zb2d = zb.reshape(m, cp)                                # free reshapes
    sc2d = sc.reshape(m, cp)
    tm = min(512, ((m + 7) // 8) * 8)
    out2d = pl.pallas_call(
        _bn_relu_add_kernel,
        grid=(pl.cdiv(m, tm),),
        out_shape=jax.ShapeDtypeStruct((m, cp), jnp.float32),
        in_specs=[pl.BlockSpec((tm, cp), lambda i: (i, 0)),
                  pl.BlockSpec((tm, cp), lambda i: (i, 0)),
                  pl.BlockSpec((1, cp), lambda i: (0, 0)),
                  pl.BlockSpec((1, cp), lambda i: (0, 0))],
        out_specs=pl.BlockSpec((tm, cp), lambda i: (i, 0)),
        compiler_params=par,
    )(zb2d, sc2d, scale_b, shift_b)

    out = out2d[:, :cout].reshape(b, ho, wo, cout)
    return jnp.transpose(out, (0, 3, 1, 2))                 # back to NCHW


# ---------------------------------------------------------------------------
# Deterministic parameter init (synthetic; shapes match the nn.Module)
# ---------------------------------------------------------------------------
def init_params(key, cin, cout):
    ks = jax.random.split(key, 10)

    def u(k, shape, scale):
        return jax.random.uniform(k, shape, jnp.float32, -1.0, 1.0) * scale

    return dict(
        # conv_1: 1x1 stride 2 (HWIO)
        w1=u(ks[0], (1, 1, cin, cout), 1.0 / (cin ** 0.5)),
        b1=u(ks[1], (1, cout), 0.1),
        # layers[0]: 3x3 stride 2 pad 1 (HWIO)
        wa=u(ks[2], (3, 3, cin, cout), 1.0 / ((9 * cin) ** 0.5)),
        ba=u(ks[3], (1, cout), 0.1),
        # layers[1]: BatchNorm2d(cout)
        ga=1.0 + u(ks[4], (1, cout), 0.1),
        beta_a=u(ks[5], (1, cout), 0.1),
        # layers[3]: 3x3 stride 1 pad 1 (HWIO)
        wb=u(ks[6], (3, 3, cout, cout), 1.0 / ((9 * cout) ** 0.5)),
        bb=u(ks[7], (1, cout), 0.1),
        # layers[4]: BatchNorm2d(cout)
        gb=1.0 + u(ks[8], (1, cout), 0.1),
        beta_b=u(ks[9], (1, cout), 0.1),
    )


# ---------------------------------------------------------------------------
# Pure-JAX f32 reference (numerical sanity check)
# ---------------------------------------------------------------------------
def reference_forward(x_nchw, p):
    dn = ("NHWC", "HWIO", "NHWC")
    x = jnp.transpose(x_nchw, (0, 2, 3, 1)).astype(jnp.float32)

    def bn_relu(z, g, bt):
        mu = jnp.mean(z, axis=(0, 1, 2), keepdims=True)
        v = jnp.mean((z - mu) ** 2, axis=(0, 1, 2), keepdims=True)
        return jnp.maximum((z - mu) * lax.rsqrt(v + EPS)
                           * g.reshape(1, 1, 1, -1) + bt.reshape(1, 1, 1, -1),
                           0.0)

    x2 = lax.conv_general_dilated(x, p["w1"], (2, 2), "VALID",
                                  dimension_numbers=dn) + p["b1"].reshape(1, 1, 1, -1)
    za = lax.conv_general_dilated(x, p["wa"], (2, 2), ((1, 1), (1, 1)),
                                  dimension_numbers=dn) + p["ba"].reshape(1, 1, 1, -1)
    ya = bn_relu(za, p["ga"], p["beta_a"])
    zb = lax.conv_general_dilated(ya, p["wb"], (1, 1), ((1, 1), (1, 1)),
                                  dimension_numbers=dn) + p["bb"].reshape(1, 1, 1, -1)
    yb = bn_relu(zb, p["gb"], p["beta_b"])
    return jnp.transpose(x2 + yb, (0, 3, 1, 2))


if __name__ == "__main__":
    key = jax.random.PRNGKey(0)
    kx, kp = jax.random.split(key)

    B, Cin, H, W = 2, 4, 16, 16
    Cout = 8
    x = jax.random.normal(kx, (B, Cin, H, W), jnp.float32)
    params = init_params(kp, Cin, Cout)

    out = jax.jit(bottleneck_block_forward)(x, params)
    out = jax.block_until_ready(out)

    assert out.shape == (B, Cout, H // 2, W // 2), out.shape
    ref = reference_forward(x, params)
    err = float(jnp.max(jnp.abs(out - ref)))
    # bf16 matmul inputs / bf16 intermediates (f32 MXU accumulation, f32 BN
    # statistics) give a few 1e-2 of worst-case deviation vs the all-f32
    # reference; a structural bug (wrong tap / wrong stats) would be O(1).
    if err > 1e-1:
        raise AssertionError(f"mismatch vs reference: max abs err {err}")

    print("KERNEL_OK")
</pallas_src>

<mosaic_0001>
module attributes {stable_mosaic.version = 11 : i64} {
  func.func @_bn_relu_conv_b_kernel(%arg0: i32, %arg1: memref<1x8x8x128xbf16, #tpu.memory_space<vmem>>, %arg2: memref<1x128xf32, #tpu.memory_space<vmem>>, %arg3: memref<1x128xf32, #tpu.memory_space<vmem>>, %arg4: memref<3x384x128xbf16, #tpu.memory_space<vmem>>, %arg5: memref<1x8x8x128xbf16, #tpu.memory_space<vmem>>, %arg6: memref<1x1x128xf32, #tpu.memory_space<vmem>>, %arg7: memref<1x1x128xf32, #tpu.memory_space<vmem>>, %arg8: memref<10x10x128xbf16, #tpu.memory_space<vmem>>, %arg9: memref<64x128xf32, #tpu.memory_space<vmem>>) attributes {dimension_semantics = [#tpu.dimension_semantics<parallel>], iteration_bounds = array<i64: 2>, scalar_prefetch = 0 : i64, scratch_operands = 2 : i64, tpu.core_type = #tpu.core_type<tc>, window_params = [{transform_indices = @transform_0, window_bounds = array<i64: 1, 8, 8, 128>}, {pipeline_mode = #tpu.pipeline_mode<synchronous>, transform_indices = @transform_1, window_bounds = array<i64: 1, 128>}, {pipeline_mode = #tpu.pipeline_mode<synchronous>, transform_indices = @transform_2, window_bounds = array<i64: 1, 128>}, {pipeline_mode = #tpu.pipeline_mode<synchronous>, transform_indices = @transform_3, window_bounds = array<i64: 3, 384, 128>}, {transform_indices = @transform_4, window_bounds = array<i64: 1, 8, 8, 128>}, {transform_indices = @transform_5, window_bounds = array<i64: 1, 1, 128>}, {transform_indices = @transform_6, window_bounds = array<i64: 1, 1, 128>}]} {
    %c0 = arith.constant 0 : index
    %c0_0 = arith.constant 0 : index
    %c0_1 = arith.constant 0 : index
    %c0_2 = arith.constant 0 : index
    %0 = vector.load %arg1[%c0, %c0_0, %c0_1, %c0_2] : memref<1x8x8x128xbf16, #tpu.memory_space<vmem>>, vector<1x8x8x128xbf16>
    %1 = vector.shape_cast %0 : vector<1x8x8x128xbf16> to vector<8x8x128xbf16>
    %2 = arith.extf %1 : vector<8x8x128xbf16> to vector<8x8x128xf32>
    %c0_3 = arith.constant 0 : index
    %c0_4 = arith.constant 0 : index
    %3 = vector.load %arg2[%c0_3, %c0_4] : memref<1x128xf32, #tpu.memory_space<vmem>>, vector<1x128xf32>
    %4 = vector.shape_cast %3 : vector<1x128xf32> to vector<1x1x128xf32>
    %5 = vector.broadcast %4 : vector<1x1x128xf32> to vector<8x8x128xf32>
    %6 = arith.mulf %2, %5 : vector<8x8x128xf32>
    %c0_5 = arith.constant 0 : index
    %c0_6 = arith.constant 0 : index
    %7 = vector.load %arg3[%c0_5, %c0_6] : memref<1x128xf32, #tpu.memory_space<vmem>>, vector<1x128xf32>
    %8 = vector.shape_cast %7 : vector<1x128xf32> to vector<1x1x128xf32>
    %9 = vector.broadcast %8 : vector<1x1x128xf32> to vector<8x8x128xf32>
    %10 = arith.addf %6, %9 : vector<8x8x128xf32>
    %cst = arith.constant 0.000000e+00 : f32
    %11 = vector.broadcast %cst : f32 to vector<8x8x128xf32>
    %12 = arith.maximumf %10, %11 : vector<8x8x128xf32>
    %cst_7 = arith.constant 0.000000e+00 : bf16
    %13 = vector.broadcast %cst_7 : bf16 to vector<10x10x128xbf16>
    %c0_8 = arith.constant 0 : index
    %c0_9 = arith.constant 0 : index
    %c0_10 = arith.constant 0 : index
    %14 = vector.load %arg8[%c0_8, %c0_9, %c0_10] : memref<10x10x128xbf16, #tpu.memory_space<vmem>>, vector<10x10x128xbf16>
    tpu.vector_store %arg8[%c0_8, %c0_9, %c0_10], %13 {strides = array<i32>} : memref<10x10x128xbf16, #tpu.memory_space<vmem>>, vector<10x10x128xbf16>,
    %15 = arith.truncf %12 : vector<8x8x128xf32> to vector<8x8x128xbf16>
    %c1 = arith.constant 1 : index
    %c1_11 = arith.constant 1 : index
    %c0_12 = arith.constant 0 : index
    %16 = vector.load %arg8[%c1, %c1_11, %c0_12] : memref<10x10x128xbf16, #tpu.memory_space<vmem>>, vector<8x8x128xbf16>
    tpu.vector_store %arg8[%c1, %c1_11, %c0_12], %15 {strides = array<i32>} : memref<10x10x128xbf16, #tpu.memory_space<vmem>>, vector<8x8x128xbf16>,
    %c0_13 = arith.constant 0 : index
    %c0_14 = arith.constant 0 : index
    %c0_15 = arith.constant 0 : index
    %17 = vector.load %arg8[%c0_13, %c0_14, %c0_15] : memref<10x10x128xbf16, #tpu.memory_space<vmem>>, vector<8x8x128xbf16>
    %c0_16 = arith.constant 0 : index
    %c1_17 = arith.constant 1 : index
    %c0_18 = arith.constant 0 : index
    %18 = vector.load %arg8[%c0_16, %c1_17, %c0_18] : memref<10x10x128xbf16, #tpu.memory_space<vmem>>, vector<8x8x128xbf16>
    %c0_19 = arith.constant 0 : index
    %c2 = arith.constant 2 : index
    %c0_20 = arith.constant 0 : index
    %19 = vector.load %arg8[%c0_19, %c2, %c0_20] : memref<10x10x128xbf16, #tpu.memory_space<vmem>>, vector<8x8x128xbf16>
    %20 = tpu.concatenate %17, %18, %19 in 2 : vector<8x8x128xbf16>, vector<8x8x128xbf16>, vector<8x8x128xbf16> -> vector<8x8x384xbf16>
    %21 = vector.shape_cast %20 : vector<8x8x384xbf16> to vector<64x384xbf16>
    %c0_21 = arith.constant 0 : index
    %c0_22 = arith.constant 0 : index
    %c0_23 = arith.constant 0 : index
    %22 = vector.load %arg4[%c0_21, %c0_22, %c0_23] : memref<3x384x128xbf16, #tpu.memory_space<vmem>>, vector<1x384x128xbf16>
    %23 = vector.shape_cast %22 : vector<1x384x128xbf16> to vector<384x128xbf16>
    %cst_24 = arith.constant dense<0.000000e+00> : vector<64x128xf32>
    %24 = tpu.matmul %21, %23, %cst_24 {dimension_numbers = #tpu.dot_dimension_numbers<[1], [0], [0], [1], [0, 0, 1, 1], [], []>} : vector<64x384xbf16>, vector<384x128xbf16>, vector<64x128xf32> -> vector<64x128xf32>
    %c0_25 = arith.constant 0 : index
    %c0_26 = arith.constant 0 : index
    %25 = vector.load %arg9[%c0_25, %c0_26] : memref<64x128xf32, #tpu.memory_space<vmem>>, vector<64x128xf32>
    tpu.vector_store %arg9[%c0_25, %c0_26], %24 {strides = array<i32>} : memref<64x128xf32, #tpu.memory_space<vmem>>, vector<64x128xf32>,
    %c1_27 = arith.constant 1 : index
    %c0_28 = arith.constant 0 : index
    %c0_29 = arith.constant 0 : index
    %26 = vector.load %arg8[%c1_27, %c0_28, %c0_29] : memref<10x10x128xbf16, #tpu.memory_space<vmem>>, vector<8x8x128xbf16>
    %c1_30 = arith.constant 1 : index
    %c1_31 = arith.constant 1 : index
    %c0_32 = arith.constant 0 : index
    %27 = vector.load %arg8[%c1_30, %c1_31, %c0_32] : memref<10x10x128xbf16, #tpu.memory_space<vmem>>, vector<8x8x128xbf16>
    %c1_33 = arith.constant 1 : index
    %c2_34 = arith.constant 2 : index
    %c0_35 = arith.constant 0 : index
    %28 = vector.load %arg8[%c1_33, %c2_34, %c0_35] : memref<10x10x128xbf16, #tpu.memory_space<vmem>>, vector<8x8x128xbf16>
    %29 = tpu.concatenate %26, %27, %28 in 2 : vector<8x8x128xbf16>, vector<8x8x128xbf16>, vector<8x8x128xbf16> -> vector<8x8x384xbf16>
    %30 = vector.shape_cast %29 : vector<8x8x384xbf16> to vector<64x384xbf16>
    %c1_36 = arith.constant 1 : index
    %c0_37 = arith.constant 0 : index
    %c0_38 = arith.constant 0 : index
    %31 = vector.load %arg4[%c1_36, %c0_37, %c0_38] : memref<3x384x128xbf16, #tpu.memory_space<vmem>>, vector<1x384x128xbf16>
    %32 = vector.shape_cast %31 : vector<1x384x128xbf16> to vector<384x128xbf16>
    %cst_39 = arith.constant dense<0.000000e+00> : vector<64x128xf32>
    %33 = tpu.matmul %30, %32, %cst_39 {dimension_numbers = #tpu.dot_dimension_numbers<[1], [0], [0], [1], [0, 0, 1, 1], [], []>} : vector<64x384xbf16>, vector<384x128xbf16>, vector<64x128xf32> -> vector<64x128xf32>
    %c0_40 = arith.constant 0 : index
    %c0_41 = arith.constant 0 : index
    %34 = vector.load %arg9[%c0_40, %c0_41] : memref<64x128xf32, #tpu.memory_space<vmem>>, vector<64x128xf32>
    %35 = arith.addf %34, %33 : vector<64x128xf32>
    %c0_42 = arith.constant 0 : index
    %c0_43 = arith.constant 0 : index
    %36 = vector.load %arg9[%c0_42, %c0_43] : memref<64x128xf32, #tpu.memory_space<vmem>>, vector<64x128xf32>
    tpu.vector_store %arg9[%c0_42, %c0_43], %35 {strides = array<i32>} : memref<64x128xf32, #tpu.memory_space<vmem>>, vector<64x128xf32>,
    %c2_44 = arith.constant 2 : index
    %c0_45 = arith.constant 0 : index
    %c0_46 = arith.constant 0 : index
    %37 = vector.load %arg8[%c2_44, %c0_45, %c0_46] : memref<10x10x128xbf16, #tpu.memory_space<vmem>>, vector<8x8x128xbf16>
    %c2_47 = arith.constant 2 : index
    %c1_48 = arith.constant 1 : index
    %c0_49 = arith.constant 0 : index
    %38 = vector.load %arg8[%c2_47, %c1_48, %c0_49] : memref<10x10x128xbf16, #tpu.memory_space<vmem>>, vector<8x8x128xbf16>
    %c2_50 = arith.constant 2 : index
    %c2_51 = arith.constant 2 : index
    %c0_52 = arith.constant 0 : index
    %39 = vector.load %arg8[%c2_50, %c2_51, %c0_52] : memref<10x10x128xbf16, #tpu.memory_space<vmem>>, vector<8x8x128xbf16>
    %40 = tpu.concatenate %37, %38, %39 in 2 : vector<8x8x128xbf16>, vector<8x8x128xbf16>, vector<8x8x128xbf16> -> vector<8x8x384xbf16>
    %41 = vector.shape_cast %40 : vector<8x8x384xbf16> to vector<64x384xbf16>
    %c2_53 = arith.constant 2 : index
    %c0_54 = arith.constant 0 : index
    %c0_55 = arith.constant 0 : index
    %42 = vector.load %arg4[%c2_53, %c0_54, %c0_55] : memref<3x384x128xbf16, #tpu.memory_space<vmem>>, vector<1x384x128xbf16>
    %43 = vector.shape_cast %42 : vector<1x384x128xbf16> to vector<384x128xbf16>
    %cst_56 = arith.constant dense<0.000000e+00> : vector<64x128xf32>
    %44 = tpu.matmul %41, %43, %cst_56 {dimension_numbers = #tpu.dot_dimension_numbers<[1], [0], [0], [1], [0, 0, 1, 1], [], []>} : vector<64x384xbf16>, vector<384x128xbf16>, vector<64x128xf32> -> vector<64x128xf32>
    %c0_57 = arith.constant 0 : index
    %c0_58 = arith.constant 0 : index
    %45 = vector.load %arg9[%c0_57, %c0_58] : memref<64x128xf32, #tpu.memory_space<vmem>>, vector<64x128xf32>
    %46 = arith.addf %45, %44 : vector<64x128xf32>
    %c0_59 = arith.constant 0 : index
    %c0_60 = arith.constant 0 : index
    %47 = vector.load %arg9[%c0_59, %c0_60] : memref<64x128xf32, #tpu.memory_space<vmem>>, vector<64x128xf32>
    tpu.vector_store %arg9[%c0_59, %c0_60], %46 {strides = array<i32>} : memref<64x128xf32, #tpu.memory_space<vmem>>, vector<64x128xf32>,
    %c0_61 = arith.constant 0 : index
    %c0_62 = arith.constant 0 : index
    %48 = vector.load %arg9[%c0_61, %c0_62] : memref<64x128xf32, #tpu.memory_space<vmem>>, vector<64x128xf32>
    %49 = vector.shape_cast %48 : vector<64x128xf32> to vector<1x8x8x128xf32>
    %50 = arith.truncf %49 : vector<1x8x8x128xf32> to vector<1x8x8x128xbf16>
    %c0_63 = arith.constant 0 : index
    %c0_64 = arith.constant 0 : index
    %c0_65 = arith.constant 0 : index
    %c0_66 = arith.constant 0 : index
    %51 = vector.load %arg5[%c0_63, %c0_64, %c0_65, %c0_66] : memref<1x8x8x128xbf16, #tpu.memory_space<vmem>>, vector<1x8x8x128xbf16>
    tpu.vector_store %arg5[%c0_63, %c0_64, %c0_65, %c0_66], %50 {strides = array<i32>} : memref<1x8x8x128xbf16, #tpu.memory_space<vmem>>, vector<1x8x8x128xbf16>,
    %cst_67 = arith.constant dense<0.000000e+00> : vector<128xf32>
    %52 = vector.multi_reduction <add>, %48, %cst_67 [0] : vector<64x128xf32> to vector<128xf32>
    %53 = vector.shape_cast %52 : vector<128xf32> to vector<1x128xf32>
    %54 = vector.shape_cast %53 : vector<1x128xf32> to vector<1x1x128xf32>
    %c0_68 = arith.constant 0 : index
    %c0_69 = arith.constant 0 : index
    %c0_70 = arith.constant 0 : index
    %55 = vector.load %arg6[%c0_68, %c0_69, %c0_70] : memref<1x1x128xf32, #tpu.memory_space<vmem>>, vector<1x1x128xf32>
    tpu.vector_store %arg6[%c0_68, %c0_69, %c0_70], %54 {strides = array<i32>} : memref<1x1x128xf32, #tpu.memory_space<vmem>>, vector<1x1x128xf32>,
    %56 = arith.mulf %48, %48 : vector<64x128xf32>
    %cst_71 = arith.constant dense<0.000000e+00> : vector<128xf32>
    %57 = vector.multi_reduction <add>, %56, %cst_71 [0] : vector<64x128xf32> to vector<128xf32>
    %58 = vector.shape_cast %57 : vector<128xf32> to vector<1x128xf32>
    %59 = vector.shape_cast %58 : vector<1x128xf32> to vector<1x1x128xf32>
    %c0_72 = arith.constant 0 : index
    %c0_73 = arith.constant 0 : index
    %c0_74 = arith.constant 0 : index
    %60 = vector.load %arg7[%c0_72, %c0_73, %c0_74] : memref<1x1x128xf32, #tpu.memory_space<vmem>>, vector<1x1x128xf32>
    tpu.vector_store %arg7[%c0_72, %c0_73, %c0_74], %59 {strides = array<i32>} : memref<1x1x128xf32, #tpu.memory_space<vmem>>, vector<1x1x128xf32>,
    return
  }
  func.func @transform_0(%arg0: i32) -> (i32, i32, i32, i32) {
    %c0_i32 = arith.constant 0 : i32
    %c0_i32_0 = arith.constant 0 : i32
    %c0_i32_1 = arith.constant 0 : i32
    %c0_i32_2 = arith.constant 0 : i32
    return %arg0, %c0_i32, %c0_i32_0, %c0_i32_1 : i32, i32, i32, i32
  }
  func.func @transform_1(%arg0: i32) -> (i32, i32) {
    %c0_i32 = arith.constant 0 : i32
    %c0_i32_0 = arith.constant 0 : i32
    %c0_i32_1 = arith.constant 0 : i32
    return %c0_i32, %c0_i32_0 : i32, i32
  }
  func.func @transform_2(%arg0: i32) -> (i32, i32) {
    %c0_i32 = arith.constant 0 : i32
    %c0_i32_0 = arith.constant 0 : i32
    %c0_i32_1 = arith.constant 0 : i32
    return %c0_i32, %c0_i32_0 : i32, i32
  }
  func.func @transform_3(%arg0: i32) -> (i32, i32, i32) {
    %c0_i32 = arith.constant 0 : i32
    %c0_i32_0 = arith.constant 0 : i32
    %c0_i32_1 = arith.constant 0 : i32
    %c0_i32_2 = arith.constant 0 : i32
    return %c0_i32, %c0_i32_0, %c0_i32_1 : i32, i32, i32
  }
  func.func @transform_4(%arg0: i32) -> (i32, i32, i32, i32) {
    %c0_i32 = arith.constant 0 : i32
    %c0_i32_0 = arith.constant 0 : i32
    %c0_i32_1 = arith.constant 0 : i32
    %c0_i32_2 = arith.constant 0 : i32
    return %arg0, %c0_i32, %c0_i32_0, %c0_i32_1 : i32, i32, i32, i32
  }
  func.func @transform_5(%arg0: i32) -> (i32, i32, i32) {
    %c0_i32 = arith.constant 0 : i32
    %c0_i32_0 = arith.constant 0 : i32
    %c0_i32_1 = arith.constant 0 : i32
    return %arg0, %c0_i32, %c0_i32_0 : i32, i32, i32
  }
  func.func @transform_6(%arg0: i32) -> (i32, i32, i32) {
    %c0_i32 = arith.constant 0 : i32
    %c0_i32_0 = arith.constant 0 : i32
    %c0_i32_1 = arith.constant 0 : i32
    return %arg0, %c0_i32, %c0_i32_0 : i32, i32, i32
  }
}

module attributes {stable_mosaic.version = 11 : i64} {
  func.func @_conv_a_shortcut_kernel(%arg0: i32, %arg1: memref<1x9x9x4xbf16, #tpu.memory_space<vmem>>, %arg2: memref<1x9x9x4xbf16, #tpu.memory_space<vmem>>, %arg3: memref<1x9x9x4xbf16, #tpu.memory_space<vmem>>, %arg4: memref<1x9x9x4xbf16, #tpu.memory_space<vmem>>, %arg5: memref<9x4x128xbf16, #tpu.memory_space<vmem>>, %arg6: memref<4x128xbf16, #tpu.memory_space<vmem>>, %arg7: memref<1x128xf32, #tpu.memory_space<vmem>>, %arg8: memref<1x8x8x128xbf16, #tpu.memory_space<vmem>>, %arg9: memref<1x8x8x128xbf16, #tpu.memory_space<vmem>>, %arg10: memref<1x1x128xf32, #tpu.memory_space<vmem>>, %arg11: memref<1x1x128xf32, #tpu.memory_space<vmem>>, %arg12: memref<64x128xf32, #tpu.memory_space<vmem>>) attributes {dimension_semantics = [#tpu.dimension_semantics<parallel>], iteration_bounds = array<i64: 2>, scalar_prefetch = 0 : i64, scratch_operands = 1 : i64, tpu.core_type = #tpu.core_type<tc>, window_params = [{transform_indices = @transform_0, window_bounds = array<i64: 1, 9, 9, 4>}, {transform_indices = @transform_1, window_bounds = array<i64: 1, 9, 9, 4>}, {transform_indices = @transform_2, window_bounds = array<i64: 1, 9, 9, 4>}, {transform_indices = @transform_3, window_bounds = array<i64: 1, 9, 9, 4>}, {pipeline_mode = #tpu.pipeline_mode<synchronous>, transform_indices = @transform_4, window_bounds = array<i64: 9, 4, 128>}, {pipeline_mode = #tpu.pipeline_mode<synchronous>, transform_indices = @transform_5, window_bounds = array<i64: 4, 128>}, {pipeline_mode = #tpu.pipeline_mode<synchronous>, transform_indices = @transform_6, window_bounds = array<i64: 1, 128>}, {transform_indices = @transform_7, window_bounds = array<i64: 1, 8, 8, 128>}, {transform_indices = @transform_8, window_bounds = array<i64: 1, 8, 8, 128>}, {transform_indices = @transform_9, window_bounds = array<i64: 1, 1, 128>}, {transform_indices = @transform_10, window_bounds = array<i64: 1, 1, 128>}]} {
    %c0 = arith.constant 0 : index
    %c0_0 = arith.constant 0 : index
    %c0_1 = arith.constant 0 : index
    %c0_2 = arith.constant 0 : index
    %0 = vector.load %arg1[%c0, %c0_0, %c0_1, %c0_2] : memref<1x9x9x4xbf16, #tpu.memory_space<vmem>>, vector<1x9x9x4xbf16>
    %1 = vector.shape_cast %0 : vector<1x9x9x4xbf16> to vector<9x9x4xbf16>
    %c0_3 = arith.constant 0 : index
    %c0_4 = arith.constant 0 : index
    %c0_5 = arith.constant 0 : index
    %c0_6 = arith.constant 0 : index
    %2 = vector.load %arg2[%c0_3, %c0_4, %c0_5, %c0_6] : memref<1x9x9x4xbf16, #tpu.memory_space<vmem>>, vector<1x9x9x4xbf16>
    %3 = vector.shape_cast %2 : vector<1x9x9x4xbf16> to vector<9x9x4xbf16>
    %c0_7 = arith.constant 0 : index
    %c0_8 = arith.constant 0 : index
    %c0_9 = arith.constant 0 : index
    %c0_10 = arith.constant 0 : index
    %4 = vector.load %arg3[%c0_7, %c0_8, %c0_9, %c0_10] : memref<1x9x9x4xbf16, #tpu.memory_space<vmem>>, vector<1x9x9x4xbf16>
    %5 = vector.shape_cast %4 : vector<1x9x9x4xbf16> to vector<9x9x4xbf16>
    %c0_11 = arith.constant 0 : index
    %c0_12 = arith.constant 0 : index
    %c0_13 = arith.constant 0 : index
    %c0_14 = arith.constant 0 : index
    %6 = vector.load %arg4[%c0_11, %c0_12, %c0_13, %c0_14] : memref<1x9x9x4xbf16, #tpu.memory_space<vmem>>, vector<1x9x9x4xbf16>
    %7 = vector.shape_cast %6 : vector<1x9x9x4xbf16> to vector<9x9x4xbf16>
    %8 = vector.extract_strided_slice %1 {offsets = [0, 0, 0], sizes = [8, 8, 4], strides = [1, 1, 1]} : vector<9x9x4xbf16> to vector<8x8x4xbf16>
    %9 = vector.shape_cast %8 : vector<8x8x4xbf16> to vector<64x4xbf16>
    %c0_15 = arith.constant 0 : index
    %c0_16 = arith.constant 0 : index
    %c0_17 = arith.constant 0 : index
    %10 = vector.load %arg5[%c0_15, %c0_16, %c0_17] : memref<9x4x128xbf16, #tpu.memory_space<vmem>>, vector<1x4x128xbf16>
    %11 = vector.shape_cast %10 : vector<1x4x128xbf16> to vector<4x128xbf16>
    %cst = arith.constant dense<0.000000e+00> : vector<64x128xf32>
    %12 = tpu.matmul %9, %11, %cst {dimension_numbers = #tpu.dot_dimension_numbers<[1], [0], [0], [1], [0, 0, 1, 1], [], []>} : vector<64x4xbf16>, vector<4x128xbf16>, vector<64x128xf32> -> vector<64x128xf32>
    %c0_18 = arith.constant 0 : index
    %c0_19 = arith.constant 0 : index
    %13 = vector.load %arg12[%c0_18, %c0_19] : memref<64x128xf32, #tpu.memory_space<vmem>>, vector<64x128xf32>
    tpu.vector_store %arg12[%c0_18, %c0_19], %12 {strides = array<i32>} : memref<64x128xf32, #tpu.memory_space<vmem>>, vector<64x128xf32>,
    %14 = vector.extract_strided_slice %3 {offsets = [0, 0, 0], sizes = [8, 8, 4], strides = [1, 1, 1]} : vector<9x9x4xbf16> to vector<8x8x4xbf16>
    %15 = vector.shape_cast %14 : vector<8x8x4xbf16> to vector<64x4xbf16>
    %c1 = arith.constant 1 : index
    %c0_20 = arith.constant 0 : index
    %c0_21 = arith.constant 0 : index
    %16 = vector.load %arg5[%c1, %c0_20, %c0_21] : memref<9x4x128xbf16, #tpu.memory_space<vmem>>, vector<1x4x128xbf16>
    %17 = vector.shape_cast %16 : vector<1x4x128xbf16> to vector<4x128xbf16>
    %cst_22 = arith.constant dense<0.000000e+00> : vector<64x128xf32>
    %18 = tpu.matmul %15, %17, %cst_22 {dimension_numbers = #tpu.dot_dimension_numbers<[1], [0], [0], [1], [0, 0, 1, 1], [], []>} : vector<64x4xbf16>, vector<4x128xbf16>, vector<64x128xf32> -> vector<64x128xf32>
    %c0_23 = arith.constant 0 : index
    %c0_24 = arith.constant 0 : index
    %19 = vector.load %arg12[%c0_23, %c0_24] : memref<64x128xf32, #tpu.memory_space<vmem>>, vector<64x128xf32>
    %20 = arith.addf %19, %18 : vector<64x128xf32>
    %c0_25 = arith.constant 0 : index
    %c0_26 = arith.constant 0 : index
    %21 = vector.load %arg12[%c0_25, %c0_26] : memref<64x128xf32, #tpu.memory_space<vmem>>, vector<64x128xf32>
    tpu.vector_store %arg12[%c0_25, %c0_26], %20 {strides = array<i32>} : memref<64x128xf32, #tpu.memory_space<vmem>>, vector<64x128xf32>,
    %22 = vector.extract_strided_slice %1 {offsets = [0, 1, 0], sizes = [8, 8, 4], strides = [1, 1, 1]} : vector<9x9x4xbf16> to vector<8x8x4xbf16>
    %23 = vector.shape_cast %22 : vector<8x8x4xbf16> to vector<64x4xbf16>
    %c2 = arith.constant 2 : index
    %c0_27 = arith.constant 0 : index
    %c0_28 = arith.constant 0 : index
    %24 = vector.load %arg5[%c2, %c0_27, %c0_28] : memref<9x4x128xbf16, #tpu.memory_space<vmem>>, vector<1x4x128xbf16>
    %25 = vector.shape_cast %24 : vector<1x4x128xbf16> to vector<4x128xbf16>
    %cst_29 = arith.constant dense<0.000000e+00> : vector<64x128xf32>
    %26 = tpu.matmul %23, %25, %cst_29 {dimension_numbers = #tpu.dot_dimension_numbers<[1], [0], [0], [1], [0, 0, 1, 1], [], []>} : vector<64x4xbf16>, vector<4x128xbf16>, vector<64x128xf32> -> vector<64x128xf32>
    %c0_30 = arith.constant 0 : index
    %c0_31 = arith.constant 0 : index
    %27 = vector.load %arg12[%c0_30, %c0_31] : memref<64x128xf32, #tpu.memory_space<vmem>>, vector<64x128xf32>
    %28 = arith.addf %27, %26 : vector<64x128xf32>
    %c0_32 = arith.constant 0 : index
    %c0_33 = arith.constant 0 : index
    %29 = vector.load %arg12[%c0_32, %c0_33] : memref<64x128xf32, #tpu.memory_space<vmem>>, vector<64x128xf32>
    tpu.vector_store %arg12[%c0_32, %c0_33], %28 {strides = array<i32>} : memref<64x128xf32, #tpu.memory_space<vmem>>, vector<64x128xf32>,
    %30 = vector.extract_strided_slice %5 {offsets = [0, 0, 0], sizes = [8, 8, 4], strides = [1, 1, 1]} : vector<9x9x4xbf16> to vector<8x8x4xbf16>
    %31 = vector.shape_cast %30 : vector<8x8x4xbf16> to vector<64x4xbf16>
    %c3 = arith.constant 3 : index
    %c0_34 = arith.constant 0 : index
    %c0_35 = arith.constant 0 : index
    %32 = vector.load %arg5[%c3, %c0_34, %c0_35] : memref<9x4x128xbf16, #tpu.memory_space<vmem>>, vector<1x4x128xbf16>
    %33 = vector.shape_cast %32 : vector<1x4x128xbf16> to vector<4x128xbf16>
    %cst_36 = arith.constant dense<0.000000e+00> : vector<64x128xf32>
    %34 = tpu.matmul %31, %33, %cst_36 {dimension_numbers = #tpu.dot_dimension_numbers<[1], [0], [0], [1], [0, 0, 1, 1], [], []>} : vector<64x4xbf16>, vector<4x128xbf16>, vector<64x128xf32> -> vector<64x128xf32>
    %c0_37 = arith.constant 0 : index
    %c0_38 = arith.constant 0 : index
    %35 = vector.load %arg12[%c0_37, %c0_38] : memref<64x128xf32, #tpu.memory_space<vmem>>, vector<64x128xf32>
    %36 = arith.addf %35, %34 : vector<64x128xf32>
    %c0_39 = arith.constant 0 : index
    %c0_40 = arith.constant 0 : index
    %37 = vector.load %arg12[%c0_39, %c0_40] : memref<64x128xf32, #tpu.memory_space<vmem>>, vector<64x128xf32>
    tpu.vector_store %arg12[%c0_39, %c0_40], %36 {strides = array<i32>} : memref<64x128xf32, #tpu.memory_space<vmem>>, vector<64x128xf32>,
    %38 = vector.extract_strided_slice %7 {offsets = [0, 0, 0], sizes = [8, 8, 4], strides = [1, 1, 1]} : vector<9x9x4xbf16> to vector<8x8x4xbf16>
    %39 = vector.shape_cast %38 : vector<8x8x4xbf16> to vector<64x4xbf16>
    %c4 = arith.constant 4 : index
    %c0_41 = arith.constant 0 : index
    %c0_42 = arith.constant 0 : index
    %40 = vector.load %arg5[%c4, %c0_41, %c0_42] : memref<9x4x128xbf16, #tpu.memory_space<vmem>>, vector<1x4x128xbf16>
    %41 = vector.shape_cast %40 : vector<1x4x128xbf16> to vector<4x128xbf16>
    %cst_43 = arith.constant dense<0.000000e+00> : vector<64x128xf32>
    %42 = tpu.matmul %39, %41, %cst_43 {dimension_numbers = #tpu.dot_dimension_numbers<[1], [0], [0], [1], [0, 0, 1, 1], [], []>} : vector<64x4xbf16>, vector<4x128xbf16>, vector<64x128xf32> -> vector<64x128xf32>
    %c0_44 = arith.constant 0 : index
    %c0_45 = arith.constant 0 : index
    %43 = vector.load %arg12[%c0_44, %c0_45] : memref<64x128xf32, #tpu.memory_space<vmem>>, vector<64x128xf32>
    %44 = arith.addf %43, %42 : vector<64x128xf32>
    %c0_46 = arith.constant 0 : index
    %c0_47 = arith.constant 0 : index
    %45 = vector.load %arg12[%c0_46, %c0_47] : memref<64x128xf32, #tpu.memory_space<vmem>>, vector<64x128xf32>
    tpu.vector_store %arg12[%c0_46, %c0_47], %44 {strides = array<i32>} : memref<64x128xf32, #tpu.memory_space<vmem>>, vector<64x128xf32>,
    %c0_48 = arith.constant 0 : index
    %c0_49 = arith.constant 0 : index
    %46 = vector.load %arg6[%c0_48, %c0_49] : memref<4x128xbf16, #tpu.memory_space<vmem>>, vector<4x128xbf16>
    %cst_50 = arith.constant dense<0.000000e+00> : vector<64x128xf32>
    %47 = tpu.matmul %39, %46, %cst_50 {dimension_numbers = #tpu.dot_dimension_numbers<[1], [0], [0], [1], [0, 0, 1, 1], [], []>} : vector<64x4xbf16>, vector<4x128xbf16>, vector<64x128xf32> -> vector<64x128xf32>
    %c0_51 = arith.constant 0 : index
    %c0_52 = arith.constant 0 : index
    %48 = vector.load %arg7[%c0_51, %c0_52] : memref<1x128xf32, #tpu.memory_space<vmem>>, vector<1x128xf32>
    %49 = vector.broadcast %48 : vector<1x128xf32> to vector<64x128xf32>
    %50 = arith.addf %47, %49 : vector<64x128xf32>
    %51 = vector.shape_cast %50 : vector<64x128xf32> to vector<1x8x8x128xf32>
    %52 = arith.truncf %51 : vector<1x8x8x128xf32> to vector<1x8x8x128xbf16>
    %c0_53 = arith.constant 0 : index
    %c0_54 = arith.constant 0 : index
    %c0_55 = arith.constant 0 : index
    %c0_56 = arith.constant 0 : index
    %53 = vector.load %arg9[%c0_53, %c0_54, %c0_55, %c0_56] : memref<1x8x8x128xbf16, #tpu.memory_space<vmem>>, vector<1x8x8x128xbf16>
    tpu.vector_store %arg9[%c0_53, %c0_54, %c0_55, %c0_56], %52 {strides = array<i32>} : memref<1x8x8x128xbf16, #tpu.memory_space<vmem>>, vector<1x8x8x128xbf16>,
    %54 = vector.extract_strided_slice %5 {offsets = [0, 1, 0], sizes = [8, 8, 4], strides = [1, 1, 1]} : vector<9x9x4xbf16> to vector<8x8x4xbf16>
    %55 = vector.shape_cast %54 : vector<8x8x4xbf16> to vector<64x4xbf16>
    %c5 = arith.constant 5 : index
    %c0_57 = arith.constant 0 : index
    %c0_58 = arith.constant 0 : index
    %56 = vector.load %arg5[%c5, %c0_57, %c0_58] : memref<9x4x128xbf16, #tpu.memory_space<vmem>>, vector<1x4x128xbf16>
    %57 = vector.shape_cast %56 : vector<1x4x128xbf16> to vector<4x128xbf16>
    %cst_59 = arith.constant dense<0.000000e+00> : vector<64x128xf32>
    %58 = tpu.matmul %55, %57, %cst_59 {dimension_numbers = #tpu.dot_dimension_numbers<[1], [0], [0], [1], [0, 0, 1, 1], [], []>} : vector<64x4xbf16>, vector<4x128xbf16>, vector<64x128xf32> -> vector<64x128xf32>
    %c0_60 = arith.constant 0 : index
    %c0_61 = arith.constant 0 : index
    %59 = vector.load %arg12[%c0_60, %c0_61] : memref<64x128xf32, #tpu.memory_space<vmem>>, vector<64x128xf32>
    %60 = arith.addf %59, %58 : vector<64x128xf32>
    %c0_62 = arith.constant 0 : index
    %c0_63 = arith.constant 0 : index
    %61 = vector.load %arg12[%c0_62, %c0_63] : memref<64x128xf32, #tpu.memory_space<vmem>>, vector<64x128xf32>
    tpu.vector_store %arg12[%c0_62, %c0_63], %60 {strides = array<i32>} : memref<64x128xf32, #tpu.memory_space<vmem>>, vector<64x128xf32>,
    %62 = vector.extract_strided_slice %1 {offsets = [1, 0, 0], sizes = [8, 8, 4], strides = [1, 1, 1]} : vector<9x9x4xbf16> to vector<8x8x4xbf16>
    %63 = vector.shape_cast %62 : vector<8x8x4xbf16> to vector<64x4xbf16>
    %c6 = arith.constant 6 : index
    %c0_64 = arith.constant 0 : index
    %c0_65 = arith.constant 0 : index
    %64 = vector.load %arg5[%c6, %c0_64, %c0_65] : memref<9x4x128xbf16, #tpu.memory_space<vmem>>, vector<1x4x128xbf16>
    %65 = vector.shape_cast %64 : vector<1x4x128xbf16> to vector<4x128xbf16>
    %cst_66 = arith.constant dense<0.000000e+00> : vector<64x128xf32>
    %66 = tpu.matmul %63, %65, %cst_66 {dimension_numbers = #tpu.dot_dimension_numbers<[1], [0], [0], [1], [0, 0, 1, 1], [], []>} : vector<64x4xbf16>, vector<4x128xbf16>, vector<64x128xf32> -> vector<64x128xf32>
    %c0_67 = arith.constant 0 : index
    %c0_68 = arith.constant 0 : index
    %67 = vector.load %arg12[%c0_67, %c0_68] : memref<64x128xf32, #tpu.memory_space<vmem>>, vector<64x128xf32>
    %68 = arith.addf %67, %66 : vector<64x128xf32>
    %c0_69 = arith.constant 0 : index
    %c0_70 = arith.constant 0 : index
    %69 = vector.load %arg12[%c0_69, %c0_70] : memref<64x128xf32, #tpu.memory_space<vmem>>, vector<64x128xf32>
    tpu.vector_store %arg12[%c0_69, %c0_70], %68 {strides = array<i32>} : memref<64x128xf32, #tpu.memory_space<vmem>>, vector<64x128xf32>,
    %70 = vector.extract_strided_slice %3 {offsets = [1, 0, 0], sizes = [8, 8, 4], strides = [1, 1, 1]} : vector<9x9x4xbf16> to vector<8x8x4xbf16>
    %71 = vector.shape_cast %70 : vector<8x8x4xbf16> to vector<64x4xbf16>
    %c7 = arith.constant 7 : index
    %c0_71 = arith.constant 0 : index
    %c0_72 = arith.constant 0 : index
    %72 = vector.load %arg5[%c7, %c0_71, %c0_72] : memref<9x4x128xbf16, #tpu.memory_space<vmem>>, vector<1x4x128xbf16>
    %73 = vector.shape_cast %72 : vector<1x4x128xbf16> to vector<4x128xbf16>
    %cst_73 = arith.constant dense<0.000000e+00> : vector<64x128xf32>
    %74 = tpu.matmul %71, %73, %cst_73 {dimension_numbers = #tpu.dot_dimension_numbers<[1], [0], [0], [1], [0, 0, 1, 1], [], []>} : vector<64x4xbf16>, vector<4x128xbf16>, vector<64x128xf32> -> vector<64x128xf32>
    %c0_74 = arith.constant 0 : index
    %c0_75 = arith.constant 0 : index
    %75 = vector.load %arg12[%c0_74, %c0_75] : memref<64x128xf32, #tpu.memory_space<vmem>>, vector<64x128xf32>
    %76 = arith.addf %75, %74 : vector<64x128xf32>
    %c0_76 = arith.constant 0 : index
    %c0_77 = arith.constant 0 : index
    %77 = vector.load %arg12[%c0_76, %c0_77] : memref<64x128xf32, #tpu.memory_space<vmem>>, vector<64x128xf32>
    tpu.vector_store %arg12[%c0_76, %c0_77], %76 {strides = array<i32>} : memref<64x128xf32, #tpu.memory_space<vmem>>, vector<64x128xf32>,
    %78 = vector.extract_strided_slice %1 {offsets = [1, 1, 0], sizes = [8, 8, 4], strides = [1, 1, 1]} : vector<9x9x4xbf16> to vector<8x8x4xbf16>
    %79 = vector.shape_cast %78 : vector<8x8x4xbf16> to vector<64x4xbf16>
    %c8 = arith.constant 8 : index
    %c0_78 = arith.constant 0 : index
    %c0_79 = arith.constant 0 : index
    %80 = vector.load %arg5[%c8, %c0_78, %c0_79] : memref<9x4x128xbf16, #tpu.memory_space<vmem>>, vector<1x4x128xbf16>
    %81 = vector.shape_cast %80 : vector<1x4x128xbf16> to vector<4x128xbf16>
    %cst_80 = arith.constant dense<0.000000e+00> : vector<64x128xf32>
    %82 = tpu.matmul %79, %81, %cst_80 {dimension_numbers = #tpu.dot_dimension_numbers<[1], [0], [0], [1], [0, 0, 1, 1], [], []>} : vector<64x4xbf16>, vector<4x128xbf16>, vector<64x128xf32> -> vector<64x128xf32>
    %c0_81 = arith.constant 0 : index
    %c0_82 = arith.constant 0 : index
    %83 = vector.load %arg12[%c0_81, %c0_82] : memref<64x128xf32, #tpu.memory_space<vmem>>, vector<64x128xf32>
    %84 = arith.addf %83, %82 : vector<64x128xf32>
    %c0_83 = arith.constant 0 : index
    %c0_84 = arith.constant 0 : index
    %85 = vector.load %arg12[%c0_83, %c0_84] : memref<64x128xf32, #tpu.memory_space<vmem>>, vector<64x128xf32>
    tpu.vector_store %arg12[%c0_83, %c0_84], %84 {strides = array<i32>} : memref<64x128xf32, #tpu.memory_space<vmem>>, vector<64x128xf32>,
    %c0_85 = arith.constant 0 : index
    %c0_86 = arith.constant 0 : index
    %86 = vector.load %arg12[%c0_85, %c0_86] : memref<64x128xf32, #tpu.memory_space<vmem>>, vector<64x128xf32>
    %87 = vector.shape_cast %86 : vector<64x128xf32> to vector<1x8x8x128xf32>
    %88 = arith.truncf %87 : vector<1x8x8x128xf32> to vector<1x8x8x128xbf16>
    %c0_87 = arith.constant 0 : index
    %c0_88 = arith.constant 0 : index
    %c0_89 = arith.constant 0 : index
    %c0_90 = arith.constant 0 : index
    %89 = vector.load %arg8[%c0_87, %c0_88, %c0_89, %c0_90] : memref<1x8x8x128xbf16, #tpu.memory_space<vmem>>, vector<1x8x8x128xbf16>
    tpu.vector_store %arg8[%c0_87, %c0_88, %c0_89, %c0_90], %88 {strides = array<i32>} : memref<1x8x8x128xbf16, #tpu.memory_space<vmem>>, vector<1x8x8x128xbf16>,
    %cst_91 = arith.constant dense<0.000000e+00> : vector<128xf32>
    %90 = vector.multi_reduction <add>, %86, %cst_91 [0] : vector<64x128xf32> to vector<128xf32>
    %91 = vector.shape_cast %90 : vector<128xf32> to vector<1x128xf32>
    %92 = vector.shape_cast %91 : vector<1x128xf32> to vector<1x1x128xf32>
    %c0_92 = arith.constant 0 : index
    %c0_93 = arith.constant 0 : index
    %c0_94 = arith.constant 0 : index
    %93 = vector.load %arg10[%c0_92, %c0_93, %c0_94] : memref<1x1x128xf32, #tpu.memory_space<vmem>>, vector<1x1x128xf32>
    tpu.vector_store %arg10[%c0_92, %c0_93, %c0_94], %92 {strides = array<i32>} : memref<1x1x128xf32, #tpu.memory_space<vmem>>, vector<1x1x128xf32>,
    %94 = arith.mulf %86, %86 : vector<64x128xf32>
    %cst_95 = arith.constant dense<0.000000e+00> : vector<128xf32>
    %95 = vector.multi_reduction <add>, %94, %cst_95 [0] : vector<64x128xf32> to vector<128xf32>
    %96 = vector.shape_cast %95 : vector<128xf32> to vector<1x128xf32>
    %97 = vector.shape_cast %96 : vector<1x128xf32> to vector<1x1x128xf32>
    %c0_96 = arith.constant 0 : index
    %c0_97 = arith.constant 0 : index
    %c0_98 = arith.constant 0 : index
    %98 = vector.load %arg11[%c0_96, %c0_97, %c0_98] : memref<1x1x128xf32, #tpu.memory_space<vmem>>, vector<1x1x128xf32>
    tpu.vector_store %arg11[%c0_96, %c0_97, %c0_98], %97 {strides = array<i32>} : memref<1x1x128xf32, #tpu.memory_space<vmem>>, vector<1x1x128xf32>,
    return
  }
  func.func @transform_0(%arg0: i32) -> (i32, i32, i32, i32) {
    %c0_i32 = arith.constant 0 : i32
    %c0_i32_0 = arith.constant 0 : i32
    %c0_i32_1 = arith.constant 0 : i32
    %c0_i32_2 = arith.constant 0 : i32
    return %arg0, %c0_i32, %c0_i32_0, %c0_i32_1 : i32, i32, i32, i32
  }
  func.func @transform_1(%arg0: i32) -> (i32, i32, i32, i32) {
    %c0_i32 = arith.constant 0 : i32
    %c0_i32_0 = arith.constant 0 : i32
    %c0_i32_1 = arith.constant 0 : i32
    %c0_i32_2 = arith.constant 0 : i32
    return %arg0, %c0_i32, %c0_i32_0, %c0_i32_1 : i32, i32, i32, i32
  }
  func.func @transform_2(%arg0: i32) -> (i32, i32, i32, i32) {
    %c0_i32 = arith.constant 0 : i32
    %c0_i32_0 = arith.constant 0 : i32
    %c0_i32_1 = arith.constant 0 : i32
    %c0_i32_2 = arith.constant 0 : i32
    return %arg0, %c0_i32, %c0_i32_0, %c0_i32_1 : i32, i32, i32, i32
  }
  func.func @transform_3(%arg0: i32) -> (i32, i32, i32, i32) {
    %c0_i32 = arith.constant 0 : i32
    %c0_i32_0 = arith.constant 0 : i32
    %c0_i32_1 = arith.constant 0 : i32
    %c0_i32_2 = arith.constant 0 : i32
    return %arg0, %c0_i32, %c0_i32_0, %c0_i32_1 : i32, i32, i32, i32
  }
  func.func @transform_4(%arg0: i32) -> (i32, i32, i32) {
    %c0_i32 = arith.constant 0 : i32
    %c0_i32_0 = arith.constant 0 : i32
    %c0_i32_1 = arith.constant 0 : i32
    %c0_i32_2 = arith.constant 0 : i32
    return %c0_i32, %c0_i32_0, %c0_i32_1 : i32, i32, i32
  }
  func.func @transform_5(%arg0: i32) -> (i32, i32) {
    %c0_i32 = arith.constant 0 : i32
    %c0_i32_0 = arith.constant 0 : i32
    %c0_i32_1 = arith.constant 0 : i32
    return %c0_i32, %c0_i32_0 : i32, i32
  }
  func.func @transform_6(%arg0: i32) -> (i32, i32) {
    %c0_i32 = arith.constant 0 : i32
    %c0_i32_0 = arith.constant 0 : i32
    %c0_i32_1 = arith.constant 0 : i32
    return %c0_i32, %c0_i32_0 : i32, i32
  }
  func.func @transform_7(%arg0: i32) -> (i32, i32, i32, i32) {
    %c0_i32 = arith.constant 0 : i32
    %c0_i32_0 = arith.constant 0 : i32
    %c0_i32_1 = arith.constant 0 : i32
    %c0_i32_2 = arith.constant 0 : i32
    return %arg0, %c0_i32, %c0_i32_0, %c0_i32_1 : i32, i32, i32, i32
  }
  func.func @transform_8(%arg0: i32) -> (i32, i32, i32, i32) {
    %c0_i32 = arith.constant 0 : i32
    %c0_i32_0 = arith.constant 0 : i32
    %c0_i32_1 = arith.constant 0 : i32
    %c0_i32_2 = arith.constant 0 : i32
    return %arg0, %c0_i32, %c0_i32_0, %c0_i32_1 : i32, i32, i32, i32
  }
  func.func @transform_9(%arg0: i32) -> (i32, i32, i32) {
    %c0_i32 = arith.constant 0 : i32
    %c0_i32_0 = arith.constant 0 : i32
    %c0_i32_1 = arith.constant 0 : i32
    return %arg0, %c0_i32, %c0_i32_0 : i32, i32, i32
  }
  func.func @transform_10(%arg0: i32) -> (i32, i32, i32) {
    %c0_i32 = arith.constant 0 : i32
    %c0_i32_0 = arith.constant 0 : i32
    %c0_i32_1 = arith.constant 0 : i32
    return %arg0, %c0_i32, %c0_i32_0 : i32, i32, i32
  }
}

module attributes {stable_mosaic.version = 11 : i64} {
  func.func @_bn_relu_add_kernel(%arg0: i32, %arg1: memref<128x128xbf16, #tpu.memory_space<vmem>>, %arg2: memref<128x128xbf16, #tpu.memory_space<vmem>>, %arg3: memref<1x128xf32, #tpu.memory_space<vmem>>, %arg4: memref<1x128xf32, #tpu.memory_space<vmem>>, %arg5: memref<128x128xf32, #tpu.memory_space<vmem>>) attributes {dimension_semantics = [#tpu.dimension_semantics<parallel>], iteration_bounds = array<i64: 1>, scalar_prefetch = 0 : i64, scratch_operands = 0 : i64, tpu.core_type = #tpu.core_type<tc>, window_params = [{transform_indices = @transform_0, window_bounds = array<i64: 128, 128>}, {transform_indices = @transform_1, window_bounds = array<i64: 128, 128>}, {pipeline_mode = #tpu.pipeline_mode<synchronous>, transform_indices = @transform_2, window_bounds = array<i64: 1, 128>}, {pipeline_mode = #tpu.pipeline_mode<synchronous>, transform_indices = @transform_3, window_bounds = array<i64: 1, 128>}, {transform_indices = @transform_4, window_bounds = array<i64: 128, 128>}]} {
    %c0 = arith.constant 0 : index
    %c0_0 = arith.constant 0 : index
    %0 = vector.load %arg1[%c0, %c0_0] : memref<128x128xbf16, #tpu.memory_space<vmem>>, vector<128x128xbf16>
    %1 = arith.extf %0 : vector<128x128xbf16> to vector<128x128xf32>
    %c0_1 = arith.constant 0 : index
    %c0_2 = arith.constant 0 : index
    %2 = vector.load %arg3[%c0_1, %c0_2] : memref<1x128xf32, #tpu.memory_space<vmem>>, vector<1x128xf32>
    %3 = vector.broadcast %2 : vector<1x128xf32> to vector<128x128xf32>
    %4 = arith.mulf %1, %3 : vector<128x128xf32>
    %c0_3 = arith.constant 0 : index
    %c0_4 = arith.constant 0 : index
    %5 = vector.load %arg4[%c0_3, %c0_4] : memref<1x128xf32, #tpu.memory_space<vmem>>, vector<1x128xf32>
    %6 = vector.broadcast %5 : vector<1x128xf32> to vector<128x128xf32>
    %7 = arith.addf %4, %6 : vector<128x128xf32>
    %cst = arith.constant 0.000000e+00 : f32
    %8 = vector.broadcast %cst : f32 to vector<128x128xf32>
    %9 = arith.maximumf %7, %8 : vector<128x128xf32>
    %c0_5 = arith.constant 0 : index
    %c0_6 = arith.constant 0 : index
    %10 = vector.load %arg2[%c0_5, %c0_6] : memref<128x128xbf16, #tpu.memory_space<vmem>>, vector<128x128xbf16>
    %11 = arith.extf %10 : vector<128x128xbf16> to vector<128x128xf32>
    %12 = arith.addf %11, %9 : vector<128x128xf32>
    %c0_7 = arith.constant 0 : index
    %c0_8 = arith.constant 0 : index
    %13 = vector.load %arg5[%c0_7, %c0_8] : memref<128x128xf32, #tpu.memory_space<vmem>>, vector<128x128xf32>
    tpu.vector_store %arg5[%c0_7, %c0_8], %12 {strides = array<i32>} : memref<128x128xf32, #tpu.memory_space<vmem>>, vector<128x128xf32>,
    return
  }
  func.func @transform_0(%arg0: i32) -> (i32, i32) {
    %c0_i32 = arith.constant 0 : i32
    %c0_i32_0 = arith.constant 0 : i32
    return %arg0, %c0_i32 : i32, i32
  }
  func.func @transform_1(%arg0: i32) -> (i32, i32) {
    %c0_i32 = arith.constant 0 : i32
    %c0_i32_0 = arith.constant 0 : i32
    return %arg0, %c0_i32 : i32, i32
  }
  func.func @transform_2(%arg0: i32) -> (i32, i32) {
    %c0_i32 = arith.constant 0 : i32
    %c0_i32_0 = arith.constant 0 : i32
    %c0_i32_1 = arith.constant 0 : i32
    return %c0_i32, %c0_i32_0 : i32, i32
  }
  func.func @transform_3(%arg0: i32) -> (i32, i32) {
    %c0_i32 = arith.constant 0 : i32
    %c0_i32_0 = arith.constant 0 : i32
    %c0_i32_1 = arith.constant 0 : i32
    return %c0_i32, %c0_i32_0 : i32, i32
  }
  func.func @transform_4(%arg0: i32) -> (i32, i32) {
    %c0_i32 = arith.constant 0 : i32
    %c0_i32_0 = arith.constant 0 : i32
    return %arg0, %c0_i32 : i32, i32
  }
}

</mosaic_0001>

<llo_original>
// kernel: bottleneck_block_forward.5
$region0: #{bottleneck_block_forward.5}
  #allocation0 [shape = 'u32[]', space=smem, size = 0x4, offset = 0x4, fixed_abs, tag = 'smem constant byte address 0x4 - core index']
  #allocation1 [shape = 'u32[72,128]{1,0:T(1,128)}', space=vmem, size = 0x9000, scoped, tag = 'internal scratch']
  %s0 = inlined_call_operand.vmem [shape: bf16[128,128], index: 0, kind: input, shape index: {}]
  %s1 = inlined_call_operand.vmem [shape: bf16[128,128], index: 1, kind: input, shape index: {}]
  %s2 = inlined_call_operand.vmem [shape: f32[1,128], index: 2, kind: input, shape index: {}]
  %s3 = inlined_call_operand.vmem [shape: f32[1,128], index: 3, kind: input, shape index: {}]
  %s4 = inlined_call_operand.vmem [shape: f32[128,128], index: 4, kind: output, shape index: {}]
  %s5 = sld [smem:[#allocation0]]
  $region26: #{bottleneck_block_forward.5} parent=0
    _
  %s7 = ssub.s32 1, %s5
  %s8 = scalar_select 0, %s7, %s5
  // Predicated region
  $region2: #{bottleneck_block_forward.5} parent=0 // pred_check
    _
  $region3: #{bottleneck_block_forward.5} parent=0 // pred_check_branch
    %10 = sbr.rel (0) target = $region5
  $region4: #{bottleneck_block_forward.5} parent=0 // pred_region
    _
  $region5: #{bottleneck_block_forward.5} parent=0 // pred_fallthru
    _
  // Predicated region
  $region6: #{bottleneck_block_forward.5} parent=0 // pred_check
    _
  $region7: #{bottleneck_block_forward.5} parent=0 // pred_check_branch
    %12 = sbr.rel (0) target = $region9
  $region8: #{bottleneck_block_forward.5} parent=0 // pred_region
    _
  $region9: #{bottleneck_block_forward.5} parent=0 // pred_fallthru
    _
  // Predicated region
  $region10: #{bottleneck_block_forward.5} parent=0 // pred_check
    _
  $region11: #{bottleneck_block_forward.5} parent=0 // pred_check_branch
    %14 = sbr.rel (0) target = $region13
  $region12: #{bottleneck_block_forward.5} parent=0 // pred_region
    _
  $region13: #{bottleneck_block_forward.5} parent=0 // pred_fallthru
    _
  // Predicated region
  $region14: #{bottleneck_block_forward.5} parent=0 // pred_check
    _
  $region15: #{bottleneck_block_forward.5} parent=0 // pred_check_branch
    %16 = sbr.rel (0) target = $region17
  $region16: #{bottleneck_block_forward.5} parent=0 // pred_region
    _
  $region17: #{bottleneck_block_forward.5} parent=0 // pred_fallthru
    _
  %v17 = vld [vmem:[%s0] sm:$0xf]
  %v18 = vld [vmem:[%s0 + $0x4] sm:$0xf]
  %v19 = vld [vmem:[%s0 + $0x8] sm:$0xf]
  %v20 = vld [vmem:[%s0 + $0xc] sm:$0xf]
  %v21 = vld [vmem:[%s0 + $0x10] sm:$0xf]
  %v22 = vld [vmem:[%s0 + $0x14] sm:$0xf]
  %v23 = vld [vmem:[%s0 + $0x18] sm:$0xf]
  %v24 = vld [vmem:[%s0 + $0x1c] sm:$0xf]
  %v25 = vld [vmem:[%s0 + $0x20] sm:$0xf]
  %v26 = vld [vmem:[%s0 + $0x24] sm:$0xf]
  %v27 = vld [vmem:[%s0 + $0x28] sm:$0xf]
  %v28 = vld [vmem:[%s0 + $0x2c] sm:$0xf]
  %v29 = vld [vmem:[%s0 + $0x30] sm:$0xf]
  %v30 = vld [vmem:[%s0 + $0x34] sm:$0xf]
  %v31 = vld [vmem:[%s0 + $0x38] sm:$0xf]
  %v32 = vld [vmem:[%s0 + $0x3c] sm:$0xf]
  %v33 = vunpack.c.l.bf16 %v17
  %v34 = vunpack.c.l.bf16 %v18
  %v35 = vunpack.c.l.bf16 %v19
  %v36 = vunpack.c.l.bf16 %v20
  %v37 = vunpack.c.l.bf16 %v21
  %v38 = vunpack.c.l.bf16 %v22
  %v39 = vunpack.c.l.bf16 %v23
  %v40 = vunpack.c.l.bf16 %v24
  %v41 = vunpack.c.l.bf16 %v25
  %v42 = vunpack.c.l.bf16 %v26
  %v43 = vunpack.c.l.bf16 %v27
  %v44 = vunpack.c.l.bf16 %v28
  %v45 = vunpack.c.l.bf16 %v29
  %v46 = vunpack.c.l.bf16 %v30
  %v47 = vunpack.c.l.bf16 %v31
  %v48 = vunpack.c.l.bf16 %v32
  %v49 = vld [vmem:[%s2] sm:$0x1]
  %v51 = vperm.slane %v49, 0
  %v53 = vmul.f32 %v33, %v51
  %v54 = vmul.f32 %v34, %v51
  %v55 = vmul.f32 %v35, %v51
  %v56 = vmul.f32 %v36, %v51
  %v57 = vmul.f32 %v37, %v51
  %v58 = vmul.f32 %v38, %v51
  %v59 = vmul.f32 %v39, %v51
  %v60 = vmul.f32 %v40, %v51
  %v61 = vmul.f32 %v41, %v51
  %v62 = vmul.f32 %v42, %v51
  %v63 = vmul.f32 %v43, %v51
  %v64 = vmul.f32 %v44, %v51
  %v65 = vmul.f32 %v45, %v51
  %v66 = vmul.f32 %v46, %v51
  %v67 = vmul.f32 %v47, %v51
  %v68 = vmul.f32 %v48, %v51
  %v69 = vld [vmem:[%s3] sm:$0x1]
  %v71 = vperm.slane %v69, 0
  %v73 = vadd.f32 %v53, %v71
  %v74 = vadd.f32 %v54, %v71
  %v75 = vadd.f32 %v55, %v71
  %v76 = vadd.f32 %v56, %v71
  %v77 = vadd.f32 %v57, %v71
  %v78 = vadd.f32 %v58, %v71
  %v79 = vadd.f32 %v59, %v71
  %v80 = vadd.f32 %v60, %v71
  %v81 = vadd.f32 %v61, %v71
  %v82 = vadd.f32 %v62, %v71
  %v83 = vadd.f32 %v63, %v71
  %v84 = vadd.f32 %v64, %v71
  %v85 = vadd.f32 %v65, %v71
  %v86 = vadd.f32 %v66, %v71
  %v87 = vadd.f32 %v67, %v71
  %v88 = vadd.f32 %v68, %v71
  %v89 = vmax.f32 %v73, 0.0
  %v90 = vmax.f32 %v74, 0.0
  %v91 = vmax.f32 %v75, 0.0
  %v92 = vmax.f32 %v76, 0.0
  %v93 = vmax.f32 %v77, 0.0
  %v94 = vmax.f32 %v78, 0.0
  %v95 = vmax.f32 %v79, 0.0
  %v96 = vmax.f32 %v80, 0.0
  %v97 = vmax.f32 %v81, 0.0
  %v98 = vmax.f32 %v82, 0.0
  %v99 = vmax.f32 %v83, 0.0
  %v100 = vmax.f32 %v84, 0.0
  %v101 = vmax.f32 %v85, 0.0
  %v102 = vmax.f32 %v86, 0.0
  %v103 = vmax.f32 %v87, 0.0
  %v104 = vmax.f32 %v88, 0.0
  %v105 = vld [vmem:[%s1] sm:$0xf]
  %v106 = vld [vmem:[%s1 + $0x4] sm:$0xf]
  %v107 = vld [vmem:[%s1 + $0x8] sm:$0xf]
  %v108 = vld [vmem:[%s1 + $0xc] sm:$0xf]
  %v109 = vld [vmem:[%s1 + $0x10] sm:$0xf]
  %v110 = vld [vmem:[%s1 + $0x14] sm:$0xf]
  %v111 = vld [vmem:[%s1 + $0x18] sm:$0xf]
  %v112 = vld [vmem:[%s1 + $0x1c] sm:$0xf]
  %v113 = vld [vmem:[%s1 + $0x20] sm:$0xf]
  %v114 = vld [vmem:[%s1 + $0x24] sm:$0xf]
  %v115 = vld [vmem:[%s1 + $0x28] sm:$0xf]
  %v116 = vld [vmem:[%s1 + $0x2c] sm:$0xf]
  %v117 = vld [vmem:[%s1 + $0x30] sm:$0xf]
  %v118 = vld [vmem:[%s1 + $0x34] sm:$0xf]
  %v119 = vld [vmem:[%s1 + $0x38] sm:$0xf]
  %v120 = vld [vmem:[%s1 + $0x3c] sm:$0xf]
  %v121 = vunpack.c.l.bf16 %v105
  %v122 = vunpack.c.l.bf16 %v106
  %v123 = vunpack.c.l.bf16 %v107
  %v124 = vunpack.c.l.bf16 %v108
  %v125 = vunpack.c.l.bf16 %v109
  %v126 = vunpack.c.l.bf16 %v110
  %v127 = vunpack.c.l.bf16 %v111
  %v128 = vunpack.c.l.bf16 %v112
  %v129 = vunpack.c.l.bf16 %v113
  %v130 = vunpack.c.l.bf16 %v114
  %v131 = vunpack.c.l.bf16 %v115
  %v132 = vunpack.c.l.bf16 %v116
  %v133 = vunpack.c.l.bf16 %v117
  %v134 = vunpack.c.l.bf16 %v118
  %v135 = vunpack.c.l.bf16 %v119
  %v136 = vunpack.c.l.bf16 %v120
  %v137 = vadd.f32 %v121, %v89
  %v138 = vadd.f32 %v122, %v90
  %v139 = vadd.f32 %v123, %v91
  %v140 = vadd.f32 %v124, %v92
  %v141 = vadd.f32 %v125, %v93
  %v142 = vadd.f32 %v126, %v94
  %v143 = vadd.f32 %v127, %v95
  %v144 = vadd.f32 %v128, %v96
  %v145 = vadd.f32 %v129, %v97
  %v146 = vadd.f32 %v130, %v98
  %v147 = vadd.f32 %v131, %v99
  %v148 = vadd.f32 %v132, %v100
  %v149 = vadd.f32 %v133, %v101
  %v150 = vadd.f32 %v134, %v102
  %v151 = vadd.f32 %v135, %v103
  %v152 = vadd.f32 %v136, %v104
  %153 = vst [vmem:[%s4] sm:$0xff] %v137
  %154 = vst [vmem:[%s4 + $0x8] sm:$0xff] %v138
  %155 = vst [vmem:[%s4 + $0x10] sm:$0xff] %v139
  %156 = vst [vmem:[%s4 + $0x18] sm:$0xff] %v140
  %157 = vst [vmem:[%s4 + $0x20] sm:$0xff] %v141
  %158 = vst [vmem:[%s4 + $0x28] sm:$0xff] %v142
  %159 = vst [vmem:[%s4 + $0x30] sm:$0xff] %v143
  %160 = vst [vmem:[%s4 + $0x38] sm:$0xff] %v144
  %161 = vst [vmem:[%s4 + $0x40] sm:$0xff] %v145
  %162 = vst [vmem:[%s4 + $0x48] sm:$0xff] %v146
  %163 = vst [vmem:[%s4 + $0x50] sm:$0xff] %v147
  %164 = vst [vmem:[%s4 + $0x58] sm:$0xff] %v148
  %165 = vst [vmem:[%s4 + $0x60] sm:$0xff] %v149
  %166 = vst [vmem:[%s4 + $0x68] sm:$0xff] %v150
  %167 = vst [vmem:[%s4 + $0x70] sm:$0xff] %v151
  %168 = vst [vmem:[%s4 + $0x78] sm:$0xff] %v152
  // Predicated region
  $region18: #{bottleneck_block_forward.5} parent=0 // pred_check
    _
  $region19: #{bottleneck_block_forward.5} parent=0 // pred_check_branch
    %170 = sbr.rel (0) target = $region21
  $region20: #{bottleneck_block_forward.5} parent=0 // pred_region
    _
  $region21: #{bottleneck_block_forward.5} parent=0 // pred_fallthru
    _
  // Predicated region
  $region22: #{bottleneck_block_forward.5} parent=0 // pred_check
    _
  $region23: #{bottleneck_block_forward.5} parent=0 // pred_check_branch
    %172 = sbr.rel (0) target = $region25
  $region24: #{bottleneck_block_forward.5} parent=0 // pred_region
    _
  $region25: #{bottleneck_block_forward.5} parent=0 // pred_fallthru
    _

// kernel: bottleneck_block_forward.3
$region0: #{bottleneck_block_forward.3}
  #allocation0 [shape = 'u32[]', space=smem, size = 0x4, offset = 0x4, fixed_abs, tag = 'smem constant byte address 0x4 - core index']
  #allocation1 [shape = 'u32[72,128]{1,0:T(1,128)}', space=vmem, size = 0x9000, scoped, tag = 'internal scratch']
  #allocation2 [shape = 'f32[64,128]{1,0:T(8,128)}', space=vmem, size = 0x8000, scoped, tag = 'scratch operand']
  %s0 = inlined_call_operand.vmem [shape: bf16[2,9,9,4], index: 0, kind: input, shape index: {}]
  %s1 = inlined_call_operand.vmem [shape: bf16[2,9,9,4], index: 1, kind: input, shape index: {}]
  %s2 = inlined_call_operand.vmem [shape: bf16[2,9,9,4], index: 2, kind: input, shape index: {}]
  %s3 = inlined_call_operand.vmem [shape: bf16[2,9,9,4], index: 3, kind: input, shape index: {}]
  %s4 = inlined_call_operand.vmem [shape: bf16[9,4,128], index: 4, kind: input, shape index: {}]
  %s5 = inlined_call_operand.vmem [shape: bf16[4,128], index: 5, kind: input, shape index: {}]
  %s6 = inlined_call_operand.vmem [shape: f32[1,128], index: 6, kind: input, shape index: {}]
  %s7 = inlined_call_operand.vmem [shape: bf16[2,8,8,128], index: 7, kind: output, shape index: {0}]
  %s8 = inlined_call_operand.vmem [shape: bf16[2,8,8,128], index: 8, kind: output, shape index: {1}]
  %s9 = inlined_call_operand.vmem [shape: f32[2,1,128], index: 9, kind: output, shape index: {2}]
  %s10 = inlined_call_operand.vmem [shape: f32[2,1,128], index: 10, kind: output, shape index: {3}]
  %11 = xla_tuple %s7, %s8, %s9, %s10
  %s12 = sld [smem:[#allocation0]]
  $region85: #{bottleneck_block_forward.3} parent=0
    _
  %s14 = ssub.s32 1, %s12
  %s15 = scalar_select 0, %s14, %s12
  loop: start=0, step=1, limit=4
  $region2: #{bottleneck_block_forward.3} parent=0 // loop_pre_header
    _
  $region3: #{bottleneck_block_forward.3} parent=0 // loop_header
    %s17 = sphi 0, %s21
    %p18 = scmp.ge.s32.totalorder %s17, 4
    %s27 = sphi 0, %s29
    %s30 = sphi 0, %s27
    %s31 = sphi 0, %s30
    %s47 = sphi 0, %s31
    %s53 = sphi 0, %s55
    %s56 = sphi 0, %s53
    %s57 = sphi 0, %s56
    %s73 = sphi 0, %s57
    %s79 = sphi 0, %s81
    %s82 = sphi 0, %s79
    %s83 = sphi 0, %s82
    %s99 = sphi 0, %s83
    %s105 = sphi 0, %s107
    %s108 = sphi 0, %s105
    %s109 = sphi 0, %s108
    %s125 = sphi 0, %s109
    %s129 = sphi 0, %s129
    %s131 = sphi 0, %s129
    %s132 = sphi 0, %s131
    %s146 = sphi 0, %s132
    %s150 = sphi 0, %s150
    %s152 = sphi 0, %s150
    %s153 = sphi 0, %s152
    %s167 = sphi 0, %s153
    %s171 = sphi 0, %s171
    %s173 = sphi 0, %s171
    %s174 = sphi 0, %s173
    %s188 = sphi 0, %s174
    %s194 = sphi 0, %s196
    %s197 = sphi 0, %s194
    %s198 = sphi 0, %s197
    %s214 = sphi 0, %s198
    %s220 = sphi 0, %s222
    %s223 = sphi 0, %s220
    %s224 = sphi 0, %s223
    %s240 = sphi 0, %s224
    %s246 = sphi 0, %s248
    %s249 = sphi 0, %s246
    %s250 = sphi 0, %s249
    %s266 = sphi 0, %s250
    %s272 = sphi 0, %s274
    %s275 = sphi 0, %s272
    %s276 = sphi 0, %s275
    %s292 = sphi 0, %s276
  $region4: #{bottleneck_block_forward.3} parent=0 // loop_header_branch
    %20 = sbr.rel (%p18) target = $region8
  $region5: #{bottleneck_block_forward.3} parent=0 // loop_body
    %s22 = ssub.s32 %s17, 1
    %s23 = ssub.s32 %s17, 2
    %s24 = sadd.s32 %s17, 1
    %s25 = ssub.s32 %s17, %s24
    %p26 = scmp.eq.s32.totalorder %s25, 0
    %s28 = sadd.s32 %s27, 1
    %s29 = scalar_select %p26, %s27, %s28
    %p32 = pneg %p26
    %p33 = scmp.eq.s32.totalorder %s17, 1
    %p34 = por %p32, %p33
    %p35 = scmp.ne.s32.totalorder %s27, %s30
    %p36 = scmp.eq.s32.totalorder %s17, 0
    %p37 = por %p35, %p36
    %p38 = scmp.ne.s32.totalorder %s27, %s30
    %p39 = scmp.eq.s32.totalorder %s22, 1
    %p40 = por %p38, %p39
    %p41 = scmp.ne.s32.totalorder %s30, %s31
    %p42 = scmp.eq.s32.totalorder %s22, 0
    %p43 = por %p41, %p42
    %p44 = scmp.ne.s32.totalorder %s30, %s31
    %p45 = scmp.eq.s32.totalorder %s23, 1
    %p46 = por %p44, %p45
    %p48 = scmp.ne.s32.totalorder %s31, %s47
    %p49 = scmp.eq.s32.totalorder %s23, 0
    %p50 = por %p48, %p49
    %s51 = ssub.s32 %s17, %s24
    %p52 = scmp.eq.s32.totalorder %s51, 0
    %s54 = sadd.s32 %s53, 1
    %s55 = scalar_select %p52, %s53, %s54
    %p58 = pneg %p52
    %p59 = scmp.eq.s32.totalorder %s17, 1
    %p60 = por %p58, %p59
    %p61 = scmp.ne.s32.totalorder %s53, %s56
    %p62 = scmp.eq.s32.totalorder %s17, 0
    %p63 = por %p61, %p62
    %p64 = scmp.ne.s32.totalorder %s53, %s56
    %p65 = scmp.eq.s32.totalorder %s22, 1
    %p66 = por %p64, %p65
    %p67 = scmp.ne.s32.totalorder %s56, %s57
    %p68 = scmp.eq.s32.totalorder %s22, 0
    %p69 = por %p67, %p68
    %p70 = scmp.ne.s32.totalorder %s56, %s57
    %p71 = scmp.eq.s32.totalorder %s23, 1
    %p72 = por %p70, %p71
    %p74 = scmp.ne.s32.totalorder %s57, %s73
    %p75 = scmp.eq.s32.totalorder %s23, 0
    %p76 = por %p74, %p75
    %s77 = ssub.s32 %s17, %s24
    %p78 = scmp.eq.s32.totalorder %s77, 0
    %s80 = sadd.s32 %s79, 1
    %s81 = scalar_select %p78, %s79, %s80
    %p84 = pneg %p78
    %p85 = scmp.eq.s32.totalorder %s17, 1
    %p86 = por %p84, %p85
    %p87 = scmp.ne.s32.totalorder %s79, %s82
    %p88 = scmp.eq.s32.totalorder %s17, 0
    %p89 = por %p87, %p88
    %p90 = scmp.ne.s32.totalorder %s79, %s82
    %p91 = scmp.eq.s32.totalorder %s22, 1
    %p92 = por %p90, %p91
    %p93 = scmp.ne.s32.totalorder %s82, %s83
    %p94 = scmp.eq.s32.totalorder %s22, 0
    %p95 = por %p93, %p94
    %p96 = scmp.ne.s32.totalorder %s82, %s83
    %p97 = scmp.eq.s32.totalorder %s23, 1
    %p98 = por %p96, %p97
    %p100 = scmp.ne.s32.totalorder %s83, %s99
    %p101 = scmp.eq.s32.totalorder %s23, 0
    %p102 = por %p100, %p101
    %s103 = ssub.s32 %s17, %s24
    %p104 = scmp.eq.s32.totalorder %s103, 0
    %s106 = sadd.s32 %s105, 1
    %s107 = scalar_select %p104, %s105, %s106
    %p110 = pneg %p104
    %p111 = scmp.eq.s32.totalorder %s17, 1
    %p112 = por %p110, %p111
    %p113 = scmp.ne.s32.totalorder %s105, %s108
    %p114 = scmp.eq.s32.totalorder %s17, 0
    %p115 = por %p113, %p114
    %p116 = scmp.ne.s32.totalorder %s105, %s108
    %p117 = scmp.eq.s32.totalorder %s22, 1
    %p118 = por %p116, %p117
    %p119 = scmp.ne.s32.totalorder %s108, %s109
    %p120 = scmp.eq.s32.totalorder %s22, 0
    %p121 = por %p119, %p120
    %p122 = scmp.ne.s32.totalorder %s108, %s109
    %p123 = scmp.eq.s32.totalorder %s23, 1
    %p124 = por %p122, %p123
    %p126 = scmp.ne.s32.totalorder %s109, %s125
    %p127 = scmp.eq.s32.totalorder %s23, 0
    %p128 = por %p126, %p127
    %s130 = sadd.s32 %s129, 1
    %p133 = scmp.eq.s32.totalorder %s17, 1
    %p134 = scmp.ne.s32.totalorder %s129, %s131
    %p135 = scmp.eq.s32.totalorder %s17, 0
    %p136 = por %p134, %p135
    %p137 = scmp.ne.s32.totalorder %s129, %s131
    %p138 = scmp.eq.s32.totalorder %s22, 1
    %p139 = por %p137, %p138
    %p140 = scmp.ne.s32.totalorder %s131, %s132
    %p141 = scmp.eq.s32.totalorder %s22, 0
    %p142 = por %p140, %p141
    %p143 = scmp.ne.s32.totalorder %s131, %s132
    %p144 = scmp.eq.s32.totalorder %s23, 1
    %p145 = por %p143, %p144
    %p147 = scmp.ne.s32.totalorder %s132, %s146
    %p148 = scmp.eq.s32.totalorder %s23, 0
    %p149 = por %p147, %p148
    %s151 = sadd.s32 %s150, 1
    %p154 = scmp.eq.s32.totalorder %s17, 1
    %p155 = scmp.ne.s32.totalorder %s150, %s152
    %p156 = scmp.eq.s32.totalorder %s17, 0
    %p157 = por %p155, %p156
    %p158 = scmp.ne.s32.totalorder %s150, %s152
    %p159 = scmp.eq.s32.totalorder %s22, 1
    %p160 = por %p158, %p159
    %p161 = scmp.ne.s32.totalorder %s152, %s153
    %p162 = scmp.eq.s32.totalorder %s22, 0
    %p163 = por %p161, %p162
    %p164 = scmp.ne.s32.totalorder %s152, %s153
    %p165 = scmp.eq.s32.totalorder %s23, 1
    %p166 = por %p164, %p165
    %p168 = scmp.ne.s32.totalorder %s153, %s167
    %p169 = scmp.eq.s32.totalorder %s23, 0
    %p170 = por %p168, %p169
    %s172 = sadd.s32 %s171, 1
    %p175 = scmp.eq.s32.totalorder %s17, 1
    %p176 = scmp.ne.s32.totalorder %s171, %s173
    %p177 = scmp.eq.s32.totalorder %s17, 0
    %p178 = por %p176, %p177
    %p179 = scmp.ne.s32.totalorder %s171, %s173
    %p180 = scmp.eq.s32.totalorder %s22, 1
    %p181 = por %p179, %p180
    %p182 = scmp.ne.s32.totalorder %s173, %s174
    %p183 = scmp.eq.s32.totalorder %s22, 0
    %p184 = por %p182, %p183
    %p185 = scmp.ne.s32.totalorder %s173, %s174
    %p186 = scmp.eq.s32.totalorder %s23, 1
    %p187 = por %p185, %p186
    %p189 = scmp.ne.s32.totalorder %s174, %s188
    %p190 = scmp.eq.s32.totalorder %s23, 0
    %p191 = por %p189, %p190
    %s192 = ssub.s32 %s17, %s24
    %p193 = scmp.eq.s32.totalorder %s192, 0
    %s195 = sadd.s32 %s194, 1
    %s196 = scalar_select %p193, %s194, %s195
    %p199 = pneg %p193
    %p200 = scmp.eq.s32.totalorder %s17, 1
    %p201 = por %p199, %p200
    %p202 = scmp.ne.s32.totalorder %s194, %s197
    %p203 = scmp.eq.s32.totalorder %s17, 0
    %p204 = por %p202, %p203
    %p205 = scmp.ne.s32.totalorder %s194, %s197
    %p206 = scmp.eq.s32.totalorder %s22, 1
    %p207 = por %p205, %p206
    %p208 = scmp.ne.s32.totalorder %s197, %s198
    %p209 = scmp.eq.s32.totalorder %s22, 0
    %p210 = por %p208, %p209
    %p211 = scmp.ne.s32.totalorder %s197, %s198
    %p212 = scmp.eq.s32.totalorder %s23, 1
    %p213 = por %p211, %p212
    %p215 = scmp.ne.s32.totalorder %s198, %s214
    %p216 = scmp.eq.s32.totalorder %s23, 0
    %p217 = por %p215, %p216
    %s218 = ssub.s32 %s17, %s24
    %p219 = scmp.eq.s32.totalorder %s218, 0
    %s221 = sadd.s32 %s220, 1
    %s222 = scalar_select %p219, %s220, %s221
    %p225 = pneg %p219
    %p226 = scmp.eq.s32.totalorder %s17, 1
    %p227 = por %p225, %p226
    %p228 = scmp.ne.s32.totalorder %s220, %s223
    %p229 = scmp.eq.s32.totalorder %s17, 0
    %p230 = por %p228, %p229
    %p231 = scmp.ne.s32.totalorder %s220, %s223
    %p232 = scmp.eq.s32.totalorder %s22, 1
    %p233 = por %p231, %p232
    %p234 = scmp.ne.s32.totalorder %s223, %s224
    %p235 = scmp.eq.s32.totalorder %s22, 0
    %p236 = por %p234, %p235
    %p237 = scmp.ne.s32.totalorder %s223, %s224
    %p238 = scmp.eq.s32.totalorder %s23, 1
    %p239 = por %p237, %p238
    %p241 = scmp.ne.s32.totalorder %s224, %s240
    %p242 = scmp.eq.s32.totalorder %s23, 0
    %p243 = por %p241, %p242
    %s244 = ssub.s32 %s17, %s24
    %p245 = scmp.eq.s32.totalorder %s244, 0
    %s247 = sadd.s32 %s246, 1
    %s248 = scalar_select %p245, %s246, %s247
    %p251 = pneg %p245
    %p252 = scmp.eq.s32.totalorder %s17, 1
    %p253 = por %p251, %p252
    %p254 = scmp.ne.s32.totalorder %s246, %s249
    %p255 = scmp.eq.s32.totalorder %s17, 0
    %p256 = por %p254, %p255
    %p257 = scmp.ne.s32.totalorder %s246, %s249
    %p258 = scmp.eq.s32.totalorder %s22, 1
    %p259 = por %p257, %p258
    %p260 = scmp.ne.s32.totalorder %s249, %s250
    %p261 = scmp.eq.s32.totalorder %s22, 0
    %p262 = por %p260, %p261
    %p263 = scmp.ne.s32.totalorder %s249, %s250
    %p264 = scmp.eq.s32.totalorder %s23, 1
    %p265 = por %p263, %p264
    %p267 = scmp.ne.s32.totalorder %s250, %s266
    %p268 = scmp.eq.s32.totalorder %s23, 0
    %p269 = por %p267, %p268
    %s270 = ssub.s32 %s17, %s24
    %p271 = scmp.eq.s32.totalorder %s270, 0
    %s273 = sadd.s32 %s272, 1
    %s274 = scalar_select %p271, %s272, %s273
    %p277 = pneg %p271
    %p278 = scmp.eq.s32.totalorder %s17, 1
    %p279 = por %p277, %p278
    %p280 = scmp.ne.s32.totalorder %s272, %s275
    %p281 = scmp.eq.s32.totalorder %s17, 0
    %p282 = por %p280, %p281
    %p283 = scmp.ne.s32.totalorder %s272, %s275
    %p284 = scmp.eq.s32.totalorder %s22, 1
    %p285 = por %p283, %p284
    %p286 = scmp.ne.s32.totalorder %s275, %s276
    %p287 = scmp.eq.s32.totalorder %s22, 0
    %p288 = por %p286, %p287
    %p289 = scmp.ne.s32.totalorder %s275, %s276
    %p290 = scmp.eq.s32.totalorder %s23, 1
    %p291 = por %p289, %p290
    %p293 = scmp.ne.s32.totalorder %s276, %s292
    %p294 = scmp.eq.s32.totalorder %s23, 0
    %p295 = por %p293, %p294
    %p296 = scmp.le.s32.totalorder 1, %s17
    %p297 = scmp.lt.s32.totalorder %s17, 3
    %p298 = pnand %p296, %p297
    %p299 = pneg %p298
    // Predicated region
    $region9: #{bottleneck_block_forward.3} parent=5 // pred_check
      _
    $region10: #{bottleneck_block_forward.3} parent=5 // pred_check_branch
      %301 = sbr.rel (%p298) target = $region12
    $region11: #{bottleneck_block_forward.3} parent=5 // pred_region
      %s302 = ssub.s32 %s17, 1
      // Predicated region
      $region13: #{bottleneck_block_forward.3} parent=11 // pred_check
        %p303 = pneg %p142
      $region14: #{bottleneck_block_forward.3} parent=11 // pred_check_branch
        %305 = sbr.rel (%p303) target = $region16
      $region15: #{bottleneck_block_forward.3} parent=11 // pred_region
        _
      $region16: #{bottleneck_block_forward.3} parent=11 // pred_fallthru
        _
      // Predicated region
      $region17: #{bottleneck_block_forward.3} parent=11 // pred_check
        %p306 = pneg %p163
      $region18: #{bottleneck_block_forward.3} parent=11 // pred_check_branch
        %308 = sbr.rel (%p306) target = $region20
      $region19: #{bottleneck_block_forward.3} parent=11 // pred_region
        _
      $region20: #{bottleneck_block_forward.3} parent=11 // pred_fallthru
        _
      // Predicated region
      $region21: #{bottleneck_block_forward.3} parent=11 // pred_check
        %p309 = pneg %p184
      $region22: #{bottleneck_block_forward.3} parent=11 // pred_check_branch
        %311 = sbr.rel (%p309) target = $region24
      $region23: #{bottleneck_block_forward.3} parent=11 // pred_region
        _
      $region24: #{bottleneck_block_forward.3} parent=11 // pred_fallthru
        _
    $region12: #{bottleneck_block_forward.3} parent=5 // pred_fallthru
      _
    %p312 = scmp.lt.s32.totalorder %s17, 2
    // Predicated region
    $region25: #{bottleneck_block_forward.3} parent=5 // pred_check
      %p313 = pneg %p312
    $region26: #{bottleneck_block_forward.3} parent=5 // pred_check_branch
      %315 = sbr.rel (%p313) target = $region28
    $region27: #{bottleneck_block_forward.3} parent=5 // pred_region
      // Predicated region
      $region29: #{bottleneck_block_forward.3} parent=27 // pred_check
        %p316 = pneg %p37
      $region30: #{bottleneck_block_forward.3} parent=27 // pred_check_branch
        %318 = sbr.rel (%p316) target = $region32
      $region31: #{bottleneck_block_forward.3} parent=27 // pred_region
        %p319 = scmp.lt.s32.totalorder %s17, 1
        %s320 = scalar_select %p319, %s17, 1
        %s321 = smul.addr %s320, 18
        %s322 = smul.addr %s321, 4
        %s323 = scalar_lea.vmem %s0, %s322
      $region32: #{bottleneck_block_forward.3} parent=27 // pred_fallthru
        _
      // Predicated region
      $region33: #{bottleneck_block_forward.3} parent=27 // pred_check
        %p324 = pneg %p63
      $region34: #{bottleneck_block_forward.3} parent=27 // pred_check_branch
        %326 = sbr.rel (%p324) target = $region36
      $region35: #{bottleneck_block_forward.3} parent=27 // pred_region
        %p327 = scmp.lt.s32.totalorder %s17, 1
        %s328 = scalar_select %p327, %s17, 1
        %s329 = smul.addr %s328, 18
        %s330 = smul.addr %s329, 4
        %s331 = scalar_lea.vmem %s1, %s330
      $region36: #{bottleneck_block_forward.3} parent=27 // pred_fallthru
        _
      // Predicated region
      $region37: #{bottleneck_block_forward.3} parent=27 // pred_check
        %p332 = pneg %p89
      $region38: #{bottleneck_block_forward.3} parent=27 // pred_check_branch
        %334 = sbr.rel (%p332) target = $region40
      $region39: #{bottleneck_block_forward.3} parent=27 // pred_region
        %p335 = scmp.lt.s32.totalorder %s17, 1
        %s336 = scalar_select %p335, %s17, 1
        %s337 = smul.addr %s336, 18
        %s338 = smul.addr %s337, 4
        %s339 = scalar_lea.vmem %s2, %s338
      $region40: #{bottleneck_block_forward.3} parent=27 // pred_fallthru
        _
      // Predicated region
      $region41: #{bottleneck_block_forward.3} parent=27 // pred_check
        %p340 = pneg %p115
      $region42: #{bottleneck_block_forward.3} parent=27 // pred_check_branch
        %342 = sbr.rel (%p340) target = $region44
      $region43: #{bottleneck_block_forward.3} parent=27 // pred_region
        %p343 = scmp.lt.s32.totalorder %s17, 1
        %s344 = scalar_select %p343, %s17, 1
        %s345 = smul.addr %s344, 18
        %s346 = smul.addr %s345, 4
        %s347 = scalar_lea.vmem %s3, %s346
      $region44: #{bottleneck_block_forward.3} parent=27 // pred_fallthru
        _
    $region28: #{bottleneck_block_forward.3} parent=5 // pred_fallthru
      _
    %p348 = scmp.le.s32.totalorder 1, %s17
    %p349 = scmp.lt.s32.totalorder %s17, 3
    %p350 = pnand %p348, %p349
    %p351 = pneg %p350
    // Predicated region
    $region45: #{bottleneck_block_forward.3} parent=5 // pred_check
      _
    $region46: #{bottleneck_block_forward.3} parent=5 // pred_check_branch
      %353 = sbr.rel (%p350) target = $region48
    $region47: #{bottleneck_block_forward.3} parent=5 // pred_region
      %s354 = ssub.s32 %s17, 1
      %p355 = scmp.lt.s32.totalorder %s22, 1
      %s356 = scalar_select %p355, %s22, 1
      %s357 = smul.addr %s356, 18
      %s358 = smul.addr %s357, 4
      %s359 = scalar_lea.vmem %s0, %s358
      %p360 = pneg %p43
      %p361 = pneg %p40
      %p362 = scmp.lt.s32.totalorder %s22, 1
      %s363 = scalar_select %p362, %s22, 1
      %s364 = smul.addr %s363, 18
      %s365 = smul.addr %s364, 4
      %s366 = scalar_lea.vmem %s1, %s365
      %p367 = pneg %p69
      %p368 = pneg %p66
      %p369 = scmp.lt.s32.totalorder %s22, 1
      %s370 = scalar_select %p369, %s22, 1
      %s371 = smul.addr %s370, 18
      %s372 = smul.addr %s371, 4
      %s373 = scalar_lea.vmem %s2, %s372
      %p374 = pneg %p95
      %p375 = pneg %p92
      %p376 = scmp.lt.s32.totalorder %s22, 1
      %s377 = scalar_select %p376, %s22, 1
      %s378 = smul.addr %s377, 18
      %s379 = smul.addr %s378, 4
      %s380 = scalar_lea.vmem %s3, %s379
      %p381 = pneg %p121
      %p382 = pneg %p118
      %p383 = pneg %p142
      %p384 = pneg %p139
      %p385 = pneg %p163
      %p386 = pneg %p160
      %p387 = pneg %p184
      %p388 = pneg %p181
      %p389 = pneg %p210
      %p390 = pneg %p207
      %p391 = scmp.lt.s32.totalorder %s22, 1
      %s392 = scalar_select %p391, %s22, 1
      %s393 = smul.addr %s392, 8
      %s394 = smul.addr %s393, 4
      %s395 = scalar_lea.vmem %s7, %s394
      %p396 = pneg %p236
      %p397 = pneg %p233
      %p398 = scmp.lt.s32.totalorder %s22, 1
      %s399 = scalar_select %p398, %s22, 1
      %s400 = smul.addr %s399, 8
      %s401 = smul.addr %s400, 4
      %s402 = scalar_lea.vmem %s8, %s401
      %p403 = pneg %p262
      %p404 = pneg %p259
      %p405 = scmp.lt.s32.totalorder %s22, 1
      %s406 = scalar_select %p405, %s22, 1
      %s407 = scalar_lea.vmem %s9, %s406
      %p408 = pneg %p288
      %p409 = pneg %p285
      %p410 = scmp.lt.s32.totalorder %s22, 1
      %s411 = scalar_select %p410, %s22, 1
      %s412 = scalar_lea.vmem %s10, %s411
      %p413 = scmp.lt.s32.totalorder %s22, 1
      %s414 = scalar_select %p413, %s22, 1
      %s415 = smul.addr %s414, 18
      %s416 = smul.addr %s415, 4
      %s417 = scalar_lea.vmem %s0, %s416
      %p418 = scmp.lt.s32.totalorder %s22, 1
      %s419 = scalar_select %p418, %s22, 1
      %s420 = smul.addr %s419, 18
      %s421 = smul.addr %s420, 4
      %s422 = scalar_lea.vmem %s1, %s421
      %p423 = scmp.lt.s32.totalorder %s22, 1
      %s424 = scalar_select %p423, %s22, 1
      %s425 = smul.addr %s424, 18
      %s426 = smul.addr %s425, 4
      %s427 = scalar_lea.vmem %s2, %s426
      %p428 = scmp.lt.s32.totalorder %s22, 1
      %s429 = scalar_select %p428, %s22, 1
      %s430 = smul.addr %s429, 18
      %s431 = smul.addr %s430, 4
      %s432 = scalar_lea.vmem %s3, %s431
      %p433 = scmp.lt.s32.totalorder %s22, 1
      %s434 = scalar_select %p433, %s22, 1
      %s435 = smul.addr %s434, 8
      %s436 = smul.addr %s435, 4
      %s437 = scalar_lea.vmem %s7, %s436
      %p438 = scmp.lt.s32.totalorder %s22, 1
      %s439 = scalar_select %p438, %s22, 1
      %s440 = smul.addr %s439, 8
      %s441 = smul.addr %s440, 4
      %s442 = scalar_lea.vmem %s8, %s441
      %p443 = scmp.lt.s32.totalorder %s22, 1
      %s444 = scalar_select %p443, %s22, 1
      %s445 = scalar_lea.vmem %s9, %s444
      %p446 = scmp.lt.s32.totalorder %s22, 1
      %s447 = scalar_select %p446, %s22, 1
      %s448 = scalar_lea.vmem %s10, %s447
      %v450 = vld [vmem:[%s417] sm:$0xf]
      %v451 = vld [vmem:[%s417 + $0x4] sm:$0x1]
      %v452 = vld [vmem:[%s417 + $0x8] sm:$0xf]
      %v453 = vld [vmem:[%s417 + $0xc] sm:$0x1]
      %v454 = vld [vmem:[%s417 + $0x10] sm:$0xf]
      %v455 = vld [vmem:[%s417 + $0x14] sm:$0x1]
      %v456 = vld [vmem:[%s417 + $0x18] sm:$0xf]
      %v457 = vld [vmem:[%s417 + $0x1c] sm:$0x1]
      %v458 = vld [vmem:[%s417 + $0x20] sm:$0xf]
      %v459 = vld [vmem:[%s417 + $0x24] sm:$0x1]
      %v460 = vld [vmem:[%s417 + $0x28] sm:$0xf]
      %v461 = vld [vmem:[%s417 + $0x2c] sm:$0x1]
      %v462 = vld [vmem:[%s417 + $0x30] sm:$0xf]
      %v463 = vld [vmem:[%s417 + $0x34] sm:$0x1]
      %v464 = vld [vmem:[%s417 + $0x38] sm:$0xf]
      %v465 = vld [vmem:[%s417 + $0x3c] sm:$0x1]
      %v466 = vld [vmem:[%s417 + $0x40] sm:$0xf]
      %v467 = vld [vmem:[%s417 + $0x44] sm:$0x1]
      %v468 = vld [vmem:[%s422] sm:$0xf]
      %v469 = vld [vmem:[%s422 + $0x8] sm:$0xf]
      %v470 = vld [vmem:[%s422 + $0x10] sm:$0xf]
      %v471 = vld [vmem:[%s422 + $0x18] sm:$0xf]
      %v472 = vld [vmem:[%s422 + $0x20] sm:$0xf]
      %v473 = vld [vmem:[%s422 + $0x28] sm:$0xf]
      %v474 = vld [vmem:[%s422 + $0x30] sm:$0xf]
      %v475 = vld [vmem:[%s422 + $0x38] sm:$0xf]
      %v476 = vld [vmem:[%s422 + $0x40] sm:$0xf]
      %v477 = vld [vmem:[%s427] sm:$0xf]
      %v478 = vld [vmem:[%s427 + $0x4] sm:$0x1]
      %v479 = vld [vmem:[%s427 + $0x8] sm:$0xf]
      %v480 = vld [vmem:[%s427 + $0xc] sm:$0x1]
      %v481 = vld [vmem:[%s427 + $0x10] sm:$0xf]
      %v482 = vld [vmem:[%s427 + $0x14] sm:$0x1]
      %v483 = vld [vmem:[%s427 + $0x18] sm:$0xf]
      %v484 = vld [vmem:[%s427 + $0x1c] sm:$0x1]
      %v485 = vld [vmem:[%s427 + $0x20] sm:$0xf]
      %v486 = vld [vmem:[%s427 + $0x24] sm:$0x1]
      %v487 = vld [vmem:[%s427 + $0x28] sm:$0xf]
      %v488 = vld [vmem:[%s427 + $0x2c] sm:$0x1]
      %v489 = vld [vmem:[%s427 + $0x30] sm:$0xf]
      %v490 = vld [vmem:[%s427 + $0x34] sm:$0x1]
      %v491 = vld [vmem:[%s427 + $0x38] sm:$0xf]
      %v492 = vld [vmem:[%s427 + $0x3c] sm:$0x1]
      %v493 = vld [vmem:[%s432] sm:$0xf]
      %v494 = vld [vmem:[%s432 + $0x8] sm:$0xf]
      %v495 = vld [vmem:[%s432 + $0x10] sm:$0xf]
      %v496 = vld [vmem:[%s432 + $0x18] sm:$0xf]
      %v497 = vld [vmem:[%s432 + $0x20] sm:$0xf]
      %v498 = vld [vmem:[%s432 + $0x28] sm:$0xf]
      %v499 = vld [vmem:[%s432 + $0x30] sm:$0xf]
      %v500 = vld [vmem:[%s432 + $0x38] sm:$0xf]
      %v501 = vld [vmem:[%s4] sm:$0x3]
      %v510 = vunpack.c.l.b16 %v450
      %v511 = vunpack.c.l.b16 %v452
      %v512 = vunpack.c.l.b16 %v454
      %v513 = vunpack.c.l.b16 %v456
      %v514 = vunpack.c.l.b16 %v458
      %v515 = vunpack.c.l.b16 %v460
      %v516 = vunpack.c.l.b16 %v462
      %v517 = vunpack.c.l.b16 %v464
      %v518 = vpack.c.b16 %v511, %v510
      %v519 = vpack.c.b16 %v513, %v512
      %v520 = vpack.c.b16 %v515, %v514
      %v521 = vpack.c.b16 %v517, %v516
      %vm522 = vcmask 31744
      %v524 = vsel %vm522, %v518, 0
      %v527 = vsel %vm522, %v519, 0
      %v530 = vsel %vm522, %v520, 0
      %v533 = vsel %vm522, %v521, 0
      %vm535 = vcmask 1041408
      %v537 = vsel %vm535, %v501, 0
      %539 = vmatpush.bf16.msra.mxu0 0
      %540 = vmatpush.bf16.msra.mxu0 0
      %541 = vmatpush.bf16.msra.mxu0 0
      %542 = vmatpush.bf16.msra.mxu0 0
      %543 = vmatpush.bf16.msra.mxu0 0
      %544 = vmatpush.bf16.msra.mxu0 0
      %545 = vmatpush.bf16.msra.mxu0 0
      %546 = vmatpush.bf16.msra.mxu0 %v537
      %547 = vmatmul.bf16.gmra.mxu0 %v524
      %v548 = vpop.f32.mrf.mxu0
      %v549 = vadd.f32 0.0, %v548
      %v550 = vpop.f32.mrf.mxu0
      %v551 = vadd.f32 0.0, %v550
      %552 = vmatmul.bf16.gmra.mxu0 %v527
      %v553 = vpop.f32.mrf.mxu0
      %v554 = vadd.f32 0.0, %v553
      %v555 = vpop.f32.mrf.mxu0
      %v556 = vadd.f32 0.0, %v555
      %557 = vmatmul.bf16.gmra.mxu0 %v530
      %v558 = vpop.f32.mrf.mxu0
      %v559 = vadd.f32 0.0, %v558
      %v560 = vpop.f32.mrf.mxu0
      %v561 = vadd.f32 0.0, %v560
      %562 = vmatmul.bf16.gmra.mxu0 %v533
      %v563 = vpop.f32.mrf.mxu0
      %v564 = vadd.f32 0.0, %v563
      %v565 = vpop.f32.mrf.mxu0
      %v566 = vadd.f32 0.0, %v565
      %567 = vdwg.mxu0
      %568 = vst [vmem:[#allocation2] sm:$0xff] %v549
      %569 = vst [vmem:[#allocation2 + $0x8] sm:$0xff] %v551
      %570 = vst [vmem:[#allocation2 + $0x10] sm:$0xff] %v554
      %571 = vst [vmem:[#allocation2 + $0x18] sm:$0xff] %v556
      %572 = vst [vmem:[#allocation2 + $0x20] sm:$0xff] %v559
      %573 = vst [vmem:[#allocation2 + $0x28] sm:$0xff] %v561
      %574 = vst [vmem:[#allocation2 + $0x30] sm:$0xff] %v564
      %575 = vst [vmem:[#allocation2 + $0x38] sm:$0xff] %v566
      %s576 = scalar_lea.vmem %s4, 2
      %v577 = vld [vmem:[%s576] sm:$0x3]
      %v586 = vunpack.c.l.b16 %v468
      %v587 = vunpack.c.l.b16 %v469
      %v588 = vunpack.c.l.b16 %v470
      %v589 = vunpack.c.l.b16 %v471
      %v590 = vunpack.c.l.b16 %v472
      %v591 = vunpack.c.l.b16 %v473
      %v592 = vunpack.c.l.b16 %v474
      %v593 = vunpack.c.l.b16 %v475
      %v594 = vpack.c.b16 %v587, %v586
      %v595 = vpack.c.b16 %v589, %v588
      %v596 = vpack.c.b16 %v591, %v590
      %v597 = vpack.c.b16 %v593, %v592
      %v599 = vsel %vm522, %v594, 0
      %v602 = vsel %vm522, %v595, 0
      %v605 = vsel %vm522, %v596, 0
      %v608 = vsel %vm522, %v597, 0
      %v611 = vsel %vm535, %v577, 0
      %613 = vmatpush.bf16.msra.mxu0 0
      %614 = vmatpush.bf16.msra.mxu0 0
      %615 = vmatpush.bf16.msra.mxu0 0
      %616 = vmatpush.bf16.msra.mxu0 0
      %617 = vmatpush.bf16.msra.mxu0 0
      %618 = vmatpush.bf16.msra.mxu0 0
      %619 = vmatpush.bf16.msra.mxu0 0
      %620 = vmatpush.bf16.msra.mxu0 %v611
      %621 = vmatmul.bf16.gmra.mxu0 %v599
      %v622 = vpop.f32.mrf.mxu0
      %v623 = vadd.f32 0.0, %v622
      %v624 = vpop.f32.mrf.mxu0
      %v625 = vadd.f32 0.0, %v624
      %626 = vmatmul.bf16.gmra.mxu0 %v602
      %v627 = vpop.f32.mrf.mxu0
      %v628 = vadd.f32 0.0, %v627
      %v629 = vpop.f32.mrf.mxu0
      %v630 = vadd.f32 0.0, %v629
      %631 = vmatmul.bf16.gmra.mxu0 %v605
      %v632 = vpop.f32.mrf.mxu0
      %v633 = vadd.f32 0.0, %v632
      %v634 = vpop.f32.mrf.mxu0
      %v635 = vadd.f32 0.0, %v634
      %636 = vmatmul.bf16.gmra.mxu0 %v608
      %v637 = vpop.f32.mrf.mxu0
      %v638 = vadd.f32 0.0, %v637
      %v639 = vpop.f32.mrf.mxu0
      %v640 = vadd.f32 0.0, %v639
      %641 = vdwg.mxu0
      %v642 = vld [vmem:[#allocation2] sm:$0xff]
      %v643 = vld [vmem:[#allocation2 + $0x8] sm:$0xff]
      %v644 = vld [vmem:[#allocation2 + $0x10] sm:$0xff]
      %v645 = vld [vmem:[#allocation2 + $0x18] sm:$0xff]
      %v646 = vld [vmem:[#allocation2 + $0x20] sm:$0xff]
      %v647 = vld [vmem:[#allocation2 + $0x28] sm:$0xff]
      %v648 = vld [vmem:[#allocation2 + $0x30] sm:$0xff]
      %v649 = vld [vmem:[#allocation2 + $0x38] sm:$0xff]
      %v650 = vadd.f32 %v642, %v623
      %v651 = vadd.f32 %v643, %v625
      %v652 = vadd.f32 %v644, %v628
      %v653 = vadd.f32 %v645, %v630
      %v654 = vadd.f32 %v646, %v633
      %v655 = vadd.f32 %v647, %v635
      %v656 = vadd.f32 %v648, %v638
      %v657 = vadd.f32 %v649, %v640
      %658 = vst [vmem:[#allocation2] sm:$0xff] %v650
      %659 = vst [vmem:[#allocation2 + $0x8] sm:$0xff] %v651
      %660 = vst [vmem:[#allocation2 + $0x10] sm:$0xff] %v652
      %661 = vst [vmem:[#allocation2 + $0x18] sm:$0xff] %v653
      %662 = vst [vmem:[#allocation2 + $0x20] sm:$0xff] %v654
      %663 = vst [vmem:[#allocation2 + $0x28] sm:$0xff] %v655
      %664 = vst [vmem:[#allocation2 + $0x30] sm:$0xff] %v656
      %665 = vst [vmem:[#allocation2 + $0x38] sm:$0xff] %v657
      %vm666 = vsmask.f32 3328
      %vm667 = vsmask.f32 7440
      %vm668 = vmor %vm666, %vm667
      %v670 = vshrl.u32 %v450, 16
      %v672 = vrot.slane %v670, 4
      %v673 = vshll.u32 %v450, 16
      %v675 = vrot.slane %v673, 5
      %v676 = vor.u32 %v672, %v675
      %v677 = vrot.slane %v676, 4
      %v679 = vshll.u32 %v451, 16
      %v681 = vrot.slane %v679, 5
      %v682 = vsel %vm668, %v677, %v681
      %v684 = vshrl.u32 %v452, 16
      %v686 = vrot.slane %v684, 4
      %v687 = vshll.u32 %v452, 16
      %v689 = vrot.slane %v687, 5
      %v690 = vor.u32 %v686, %v689
      %v691 = vrot.slane %v690, 4
      %v693 = vshll.u32 %v453, 16
      %v695 = vrot.slane %v693, 5
      %v696 = vsel %vm668, %v691, %v695
      %v698 = vshrl.u32 %v454, 16
      %v700 = vrot.slane %v698, 4
      %v701 = vshll.u32 %v454, 16
      %v703 = vrot.slane %v701, 5
      %v704 = vor.u32 %v700, %v703
      %v705 = vrot.slane %v704, 4
      %v707 = vshll.u32 %v455, 16
      %v709 = vrot.slane %v707, 5
      %v710 = vsel %vm668, %v705, %v709
      %v712 = vshrl.u32 %v456, 16
      %v714 = vrot.slane %v712, 4
      %v715 = vshll.u32 %v456, 16
      %v717 = vrot.slane %v715, 5
      %v718 = vor.u32 %v714, %v717
      %v719 = vrot.slane %v718, 4
      %v721 = vshll.u32 %v457, 16
      %v723 = vrot.slane %v721, 5
      %v724 = vsel %vm668, %v719, %v723
      %v726 = vshrl.u32 %v458, 16
      %v728 = vrot.slane %v726, 4
      %v729 = vshll.u32 %v458, 16
      %v731 = vrot.slane %v729, 5
      %v732 = vor.u32 %v728, %v731
      %v733 = vrot.slane %v732, 4
      %v735 = vshll.u32 %v459, 16
      %v737 = vrot.slane %v735, 5
      %v738 = vsel %vm668, %v733, %v737
      %v740 = vshrl.u32 %v460, 16
      %v742 = vrot.slane %v740, 4
      %v743 = vshll.u32 %v460, 16
      %v745 = vrot.slane %v743, 5
      %v746 = vor.u32 %v742, %v745
      %v747 = vrot.slane %v746, 4
      %v749 = vshll.u32 %v461, 16
      %v751 = vrot.slane %v749, 5
      %v752 = vsel %vm668, %v747, %v751
      %v754 = vshrl.u32 %v462, 16
      %v756 = vrot.slane %v754, 4
      %v757 = vshll.u32 %v462, 16
      %v759 = vrot.slane %v757, 5
      %v760 = vor.u32 %v756, %v759
      %v761 = vrot.slane %v760, 4
      %v763 = vshll.u32 %v463, 16
      %v765 = vrot.slane %v763, 5
      %v766 = vsel %vm668, %v761, %v765
      %v768 = vshrl.u32 %v464, 16
      %v770 = vrot.slane %v768, 4
      %v771 = vshll.u32 %v464, 16
      %v773 = vrot.slane %v771, 5
      %v774 = vor.u32 %v770, %v773
      %v775 = vrot.slane %v774, 4
      %v777 = vshll.u32 %v465, 16
      %v779 = vrot.slane %v777, 5
      %v780 = vsel %vm668, %v775, %v779
      %s781 = scalar_lea.vmem %s4, 4
      %v782 = vld [vmem:[%s781] sm:$0x3]
      %v783 = vunpack.c.l.b16 %v682
      %v784 = vunpack.c.l.b16 %v696
      %v785 = vunpack.c.l.b16 %v710
      %v786 = vunpack.c.l.b16 %v724
      %v787 = vunpack.c.l.b16 %v738
      %v788 = vunpack.c.l.b16 %v752
      %v789 = vunpack.c.l.b16 %v766
      %v790 = vunpack.c.l.b16 %v780
      %v791 = vpack.c.b16 %v784, %v783
      %v792 = vpack.c.b16 %v786, %v785
      %v793 = vpack.c.b16 %v788, %v787
      %v794 = vpack.c.b16 %v790, %v789
      %v796 = vsel %vm522, %v791, 0
      %v799 = vsel %vm522, %v792, 0
      %v802 = vsel %vm522, %v793, 0
      %v805 = vsel %vm522, %v794, 0
      %v808 = vsel %vm535, %v782, 0
      %810 = vmatpush.bf16.msra.mxu0 0
      %811 = vmatpush.bf16.msra.mxu0 0
      %812 = vmatpush.bf16.msra.mxu0 0
      %813 = vmatpush.bf16.msra.mxu0 0
      %814 = vmatpush.bf16.msra.mxu0 0
      %815 = vmatpush.bf16.msra.mxu0 0
      %816 = vmatpush.bf16.msra.mxu0 0
      %817 = vmatpush.bf16.msra.mxu0 %v808
      %818 = vmatmul.bf16.gmra.mxu0 %v796
      %v819 = vpop.f32.mrf.mxu0
      %v820 = vadd.f32 0.0, %v819
      %v821 = vpop.f32.mrf.mxu0
      %v822 = vadd.f32 0.0, %v821
      %823 = vmatmul.bf16.gmra.mxu0 %v799
      %v824 = vpop.f32.mrf.mxu0
      %v825 = vadd.f32 0.0, %v824
      %v826 = vpop.f32.mrf.mxu0
      %v827 = vadd.f32 0.0, %v826
      %828 = vmatmul.bf16.gmra.mxu0 %v802
      %v829 = vpop.f32.mrf.mxu0
      %v830 = vadd.f32 0.0, %v829
      %v831 = vpop.f32.mrf.mxu0
      %v832 = vadd.f32 0.0, %v831
      %833 = vmatmul.bf16.gmra.mxu0 %v805
      %v834 = vpop.f32.mrf.mxu0
      %v835 = vadd.f32 0.0, %v834
      %v836 = vpop.f32.mrf.mxu0
      %v837 = vadd.f32 0.0, %v836
      %838 = vdwg.mxu0
      %v839 = vld [vmem:[#allocation2] sm:$0xff]
      %v840 = vld [vmem:[#allocation2 + $0x8] sm:$0xff]
      %v841 = vld [vmem:[#allocation2 + $0x10] sm:$0xff]
      %v842 = vld [vmem:[#allocation2 + $0x18] sm:$0xff]
      %v843 = vld [vmem:[#allocation2 + $0x20] sm:$0xff]
      %v844 = vld [vmem:[#allocation2 + $0x28] sm:$0xff]
      %v845 = vld [vmem:[#allocation2 + $0x30] sm:$0xff]
      %v846 = vld [vmem:[#allocation2 + $0x38] sm:$0xff]
      %v847 = vadd.f32 %v839, %v820
      %v848 = vadd.f32 %v840, %v822
      %v849 = vadd.f32 %v841, %v825
      %v850 = vadd.f32 %v842, %v827
      %v851 = vadd.f32 %v843, %v830
      %v852 = vadd.f32 %v844, %v832
      %v853 = vadd.f32 %v845, %v835
      %v854 = vadd.f32 %v846, %v837
      %855 = vst [vmem:[#allocation2] sm:$0xff] %v847
      %856 = vst [vmem:[#allocation2 + $0x8] sm:$0xff] %v848
      %857 = vst [vmem:[#allocation2 + $0x10] sm:$0xff] %v849
      %858 = vst [vmem:[#allocation2 + $0x18] sm:$0xff] %v850
      %859 = vst [vmem:[#allocation2 + $0x20] sm:$0xff] %v851
      %860 = vst [vmem:[#allocation2 + $0x28] sm:$0xff] %v852
      %861 = vst [vmem:[#allocation2 + $0x30] sm:$0xff] %v853
      %862 = vst [vmem:[#allocation2 + $0x38] sm:$0xff] %v854
      %s863 = scalar_lea.vmem %s4, 6
      %v864 = vld [vmem:[%s863] sm:$0x3]
      %v873 = vunpack.c.l.b16 %v477
      %v874 = vunpack.c.l.b16 %v479
      %v875 = vunpack.c.l.b16 %v481
      %v876 = vunpack.c.l.b16 %v483
      %v877 = vunpack.c.l.b16 %v485
      %v878 = vunpack.c.l.b16 %v487
      %v879 = vunpack.c.l.b16 %v489
      %v880 = vunpack.c.l.b16 %v491
      %v881 = vpack.c.b16 %v874, %v873
      %v882 = vpack.c.b16 %v876, %v875
      %v883 = vpack.c.b16 %v878, %v877
      %v884 = vpack.c.b16 %v880, %v879
      %v886 = vsel %vm522, %v881, 0
      %v889 = vsel %vm522, %v882, 0
      %v892 = vsel %vm522, %v883, 0
      %v895 = vsel %vm522, %v884, 0
      %v898 = vsel %vm535, %v864, 0
      %900 = vmatpush.bf16.msra.mxu0 0
      %901 = vmatpush.bf16.msra.mxu0 0
      %902 = vmatpush.bf16.msra.mxu0 0
      %903 = vmatpush.bf16.msra.mxu0 0
      %904 = vmatpush.bf16.msra.mxu0 0
      %905 = vmatpush.bf16.msra.mxu0 0
      %906 = vmatpush.bf16.msra.mxu0 0
      %907 = vmatpush.bf16.msra.mxu0 %v898
      %908 = vmatmul.bf16.gmra.mxu0 %v886
      %v909 = vpop.f32.mrf.mxu0
      %v910 = vadd.f32 0.0, %v909
      %v911 = vpop.f32.mrf.mxu0
      %v912 = vadd.f32 0.0, %v911
      %913 = vmatmul.bf16.gmra.mxu0 %v889
      %v914 = vpop.f32.mrf.mxu0
      %v915 = vadd.f32 0.0, %v914
      %v916 = vpop.f32.mrf.mxu0
      %v917 = vadd.f32 0.0, %v916
      %918 = vmatmul.bf16.gmra.mxu0 %v892
      %v919 = vpop.f32.mrf.mxu0
      %v920 = vadd.f32 0.0, %v919
      %v921 = vpop.f32.mrf.mxu0
      %v922 = vadd.f32 0.0, %v921
      %923 = vmatmul.bf16.gmra.mxu0 %v895
      %v924 = vpop.f32.mrf.mxu0
      %v925 = vadd.f32 0.0, %v924
      %v926 = vpop.f32.mrf.mxu0
      %v927 = vadd.f32 0.0, %v926
      %928 = vdwg.mxu0
      %v929 = vld [vmem:[#allocation2] sm:$0xff]
      %v930 = vld [vmem:[#allocation2 + $0x8] sm:$0xff]
      %v931 = vld [vmem:[#allocation2 + $0x10] sm:$0xff]
      %v932 = vld [vmem:[#allocation2 + $0x18] sm:$0xff]
      %v933 = vld [vmem:[#allocation2 + $0x20] sm:$0xff]
      %v934 = vld [vmem:[#allocation2 + $0x28] sm:$0xff]
      %v935 = vld [vmem:[#allocation2 + $0x30] sm:$0xff]
      %v936 = vld [vmem:[#allocation2 + $0x38] sm:$0xff]
      %v937 = vadd.f32 %v929, %v910
      %v938 = vadd.f32 %v930, %v912
      %v939 = vadd.f32 %v931, %v915
      %v940 = vadd.f32 %v932, %v917
      %v941 = vadd.f32 %v933, %v920
      %v942 = vadd.f32 %v934, %v922
      %v943 = vadd.f32 %v935, %v925
      %v944 = vadd.f32 %v936, %v927
      %945 = vst [vmem:[#allocation2] sm:$0xff] %v937
      %946 = vst [vmem:[#allocation2 + $0x8] sm:$0xff] %v938
      %947 = vst [vmem:[#allocation2 + $0x10] sm:$0xff] %v939
      %948 = vst [vmem:[#allocation2 + $0x18] sm:$0xff] %v940
      %949 = vst [vmem:[#allocation2 + $0x20] sm:$0xff] %v941
      %950 = vst [vmem:[#allocation2 + $0x28] sm:$0xff] %v942
      %951 = vst [vmem:[#allocation2 + $0x30] sm:$0xff] %v943
      %952 = vst [vmem:[#allocation2 + $0x38] sm:$0xff] %v944
      %s953 = scalar_lea.vmem %s4, 8
      %v954 = vld [vmem:[%s953] sm:$0x3]
      %v963 = vunpack.c.l.b16 %v493
      %v964 = vunpack.c.l.b16 %v494
      %v965 = vunpack.c.l.b16 %v495
      %v966 = vunpack.c.l.b16 %v496
      %v967 = vunpack.c.l.b16 %v497
      %v968 = vunpack.c.l.b16 %v498
      %v969 = vunpack.c.l.b16 %v499
      %v970 = vunpack.c.l.b16 %v500
      %v971 = vpack.c.b16 %v964, %v963
      %v972 = vpack.c.b16 %v966, %v965
      %v973 = vpack.c.b16 %v968, %v967
      %v974 = vpack.c.b16 %v970, %v969
      %v976 = vsel %vm522, %v971, 0
      %v979 = vsel %vm522, %v972, 0
      %v982 = vsel %vm522, %v973, 0
      %v985 = vsel %vm522, %v974, 0
      %v988 = vsel %vm535, %v954, 0
      %990 = vmatpush.bf16.msra.mxu0 0
      %991 = vmatpush.bf16.msra.mxu0 0
      %992 = vmatpush.bf16.msra.mxu0 0
      %993 = vmatpush.bf16.msra.mxu0 0
      %994 = vmatpush.bf16.msra.mxu0 0
      %995 = vmatpush.bf16.msra.mxu0 0
      %996 = vmatpush.bf16.msra.mxu0 0
      %997 = vmatpush.bf16.msra.mxu0 %v988
      %998 = vmatmul.bf16.gmra.mxu0 %v976
      %v999 = vpop.f32.mrf.mxu0
      %v1000 = vadd.f32 0.0, %v999
      %v1001 = vpop.f32.mrf.mxu0
      %v1002 = vadd.f32 0.0, %v1001
      %1003 = vmatmul.bf16.gmra.mxu0 %v979
      %v1004 = vpop.f32.mrf.mxu0
      %v1005 = vadd.f32 0.0, %v1004
      %v1006 = vpop.f32.mrf.mxu0
      %v1007 = vadd.f32 0.0, %v1006
      %1008 = vmatmul.bf16.gmra.mxu0 %v982
      %v1009 = vpop.f32.mrf.mxu0
      %v1010 = vadd.f32 0.0, %v1009
      %v1011 = vpop.f32.mrf.mxu0
      %v1012 = vadd.f32 0.0, %v1011
      %1013 = vmatmul.bf16.gmra.mxu0 %v985
      %v1014 = vpop.f32.mrf.mxu0
      %v1015 = vadd.f32 0.0, %v1014
      %v1016 = vpop.f32.mrf.mxu0
      %v1017 = vadd.f32 0.0, %v1016
      %1018 = vdwg.mxu0
      %v1019 = vld [vmem:[#allocation2] sm:$0xff]
      %v1020 = vld [vmem:[#allocation2 + $0x8] sm:$0xff]
      %v1021 = vld [vmem:[#allocation2 + $0x10] sm:$0xff]
      %v1022 = vld [vmem:[#allocation2 + $0x18] sm:$0xff]
      %v1023 = vld [vmem:[#allocation2 + $0x20] sm:$0xff]
      %v1024 = vld [vmem:[#allocation2 + $0x28] sm:$0xff]
      %v1025 = vld [vmem:[#allocation2 + $0x30] sm:$0xff]
      %v1026 = vld [vmem:[#allocation2 + $0x38] sm:$0xff]
      %v1027 = vadd.f32 %v1019, %v1000
      %v1028 = vadd.f32 %v1020, %v1002
      %v1029 = vadd.f32 %v1021, %v1005
      %v1030 = vadd.f32 %v1022, %v1007
      %v1031 = vadd.f32 %v1023, %v1010
      %v1032 = vadd.f32 %v1024, %v1012
      %v1033 = vadd.f32 %v1025, %v1015
      %v1034 = vadd.f32 %v1026, %v1017
      %1035 = vst [vmem:[#allocation2] sm:$0xff] %v1027
      %1036 = vst [vmem:[#allocation2 + $0x8] sm:$0xff] %v1028
      %1037 = vst [vmem:[#allocation2 + $0x10] sm:$0xff] %v1029
      %1038 = vst [vmem:[#allocation2 + $0x18] sm:$0xff] %v1030
      %1039 = vst [vmem:[#allocation2 + $0x20] sm:$0xff] %v1031
      %1040 = vst [vmem:[#allocation2 + $0x28] sm:$0xff] %v1032
      %1041 = vst [vmem:[#allocation2 + $0x30] sm:$0xff] %v1033
      %1042 = vst [vmem:[#allocation2 + $0x38] sm:$0xff] %v1034
      %v1043 = vld [vmem:[%s5] sm:$0x3]
      %v1044 = vld [vmem:[%s6] sm:$0x1]
      %v1046 = vperm.slane %v1044, 0
      %v1049 = vsel %vm535, %v1043, 0
      %1051 = vmatpush.bf16.msra.mxu0 0
      %1052 = vmatpush.bf16.msra.mxu0 0
      %1053 = vmatpush.bf16.msra.mxu0 0
      %1054 = vmatpush.bf16.msra.mxu0 0
      %1055 = vmatpush.bf16.msra.mxu0 0
      %1056 = vmatpush.bf16.msra.mxu0 0
      %1057 = vmatpush.bf16.msra.mxu0 0
      %1058 = vmatpush.bf16.msra.mxu0 %v1049
      %1059 = vmatmul.bf16.gmra.mxu0 %v976
      %v1060 = vpop.f32.mrf.mxu0
      %v1061 = vadd.f32 %v1046, %v1060
      %v1062 = vpop.f32.mrf.mxu0
      %v1063 = vadd.f32 %v1046, %v1062
      %1064 = vmatmul.bf16.gmra.mxu0 %v979
      %v1065 = vpop.f32.mrf.mxu0
      %v1066 = vadd.f32 %v1046, %v1065
      %v1067 = vpop.f32.mrf.mxu0
      %v1068 = vadd.f32 %v1046, %v1067
      %1069 = vmatmul.bf16.gmra.mxu0 %v982
      %v1070 = vpop.f32.mrf.mxu0
      %v1071 = vadd.f32 %v1046, %v1070
      %v1072 = vpop.f32.mrf.mxu0
      %v1073 = vadd.f32 %v1046, %v1072
      %1074 = vmatmul.bf16.gmra.mxu0 %v985
      %v1075 = vpop.f32.mrf.mxu0
      %v1076 = vadd.f32 %v1046, %v1075
      %v1077 = vpop.f32.mrf.mxu0
      %v1078 = vadd.f32 %v1046, %v1077
      %1079 = vdwg.mxu0
      %v1080 = vpack.c.bf16 %v1061, %v1061
      %v1081 = vpack.c.bf16 %v1063, %v1063
      %v1082 = vpack.c.bf16 %v1066, %v1066
      %v1083 = vpack.c.bf16 %v1068, %v1068
      %v1084 = vpack.c.bf16 %v1071, %v1071
      %v1085 = vpack.c.bf16 %v1073, %v1073
      %v1086 = vpack.c.bf16 %v1076, %v1076
      %v1087 = vpack.c.bf16 %v1078, %v1078
      %1088 = vst [vmem:[%s442] sm:$0xf] %v1080
      %1089 = vst [vmem:[%s442 + $0x4] sm:$0xf] %v1081
      %1090 = vst [vmem:[%s442 + $0x8] sm:$0xf] %v1082
      %1091 = vst [vmem:[%s442 + $0xc] sm:$0xf] %v1083
      %1092 = vst [vmem:[%s442 + $0x10] sm:$0xf] %v1084
      %1093 = vst [vmem:[%s442 + $0x14] sm:$0xf] %v1085
      %1094 = vst [vmem:[%s442 + $0x18] sm:$0xf] %v1086
      %1095 = vst [vmem:[%s442 + $0x1c] sm:$0xf] %v1087
      %v1097 = vshrl.u32 %v477, 16
      %v1099 = vrot.slane %v1097, 4
      %v1100 = vshll.u32 %v477, 16
      %v1102 = vrot.slane %v1100, 5
      %v1103 = vor.u32 %v1099, %v1102
      %v1104 = vrot.slane %v1103, 4
      %v1106 = vshll.u32 %v478, 16
      %v1108 = vrot.slane %v1106, 5
      %v1109 = vsel %vm668, %v1104, %v1108
      %v1111 = vshrl.u32 %v479, 16
      %v1113 = vrot.slane %v1111, 4
      %v1114 = vshll.u32 %v479, 16
      %v1116 = vrot.slane %v1114, 5
      %v1117 = vor.u32 %v1113, %v1116
      %v1118 = vrot.slane %v1117, 4
      %v1120 = vshll.u32 %v480, 16
      %v1122 = vrot.slane %v1120, 5
      %v1123 = vsel %vm668, %v1118, %v1122
      %v1125 = vshrl.u32 %v481, 16
      %v1127 = vrot.slane %v1125, 4
      %v1128 = vshll.u32 %v481, 16
      %v1130 = vrot.slane %v1128, 5
      %v1131 = vor.u32 %v1127, %v1130
      %v1132 = vrot.slane %v1131, 4
      %v1134 = vshll.u32 %v482, 16
      %v1136 = vrot.slane %v1134, 5
      %v1137 = vsel %vm668, %v1132, %v1136
      %v1139 = vshrl.u32 %v483, 16
      %v1141 = vrot.slane %v1139, 4
      %v1142 = vshll.u32 %v483, 16
      %v1144 = vrot.slane %v1142, 5
      %v1145 = vor.u32 %v1141, %v1144
      %v1146 = vrot.slane %v1145, 4
      %v1148 = vshll.u32 %v484, 16
      %v1150 = vrot.slane %v1148, 5
      %v1151 = vsel %vm668, %v1146, %v1150
      %v1153 = vshrl.u32 %v485, 16
      %v1155 = vrot.slane %v1153, 4
      %v1156 = vshll.u32 %v485, 16
      %v1158 = vrot.slane %v1156, 5
      %v1159 = vor.u32 %v1155, %v1158
      %v1160 = vrot.slane %v1159, 4
      %v1162 = vshll.u32 %v486, 16
      %v1164 = vrot.slane %v1162, 5
      %v1165 = vsel %vm668, %v1160, %v1164
      %v1167 = vshrl.u32 %v487, 16
      %v1169 = vrot.slane %v1167, 4
      %v1170 = vshll.u32 %v487, 16
      %v1172 = vrot.slane %v1170, 5
      %v1173 = vor.u32 %v1169, %v1172
      %v1174 = vrot.slane %v1173, 4
      %v1176 = vshll.u32 %v488, 16
      %v1178 = vrot.slane %v1176, 5
      %v1179 = vsel %vm668, %v1174, %v1178
      %v1181 = vshrl.u32 %v489, 16
      %v1183 = vrot.slane %v1181, 4
      %v1184 = vshll.u32 %v489, 16
      %v1186 = vrot.slane %v1184, 5
      %v1187 = vor.u32 %v1183, %v1186
      %v1188 = vrot.slane %v1187, 4
      %v1190 = vshll.u32 %v490, 16
      %v1192 = vrot.slane %v1190, 5
      %v1193 = vsel %vm668, %v1188, %v1192
      %v1195 = vshrl.u32 %v491, 16
      %v1197 = vrot.slane %v1195, 4
      %v1198 = vshll.u32 %v491, 16
      %v1200 = vrot.slane %v1198, 5
      %v1201 = vor.u32 %v1197, %v1200
      %v1202 = vrot.slane %v1201, 4
      %v1204 = vshll.u32 %v492, 16
      %v1206 = vrot.slane %v1204, 5
      %v1207 = vsel %vm668, %v1202, %v1206
      %s1208 = scalar_lea.vmem %s4, 10
      %v1209 = vld [vmem:[%s1208] sm:$0x3]
      %v1210 = vunpack.c.l.b16 %v1109
      %v1211 = vunpack.c.l.b16 %v1123
      %v1212 = vunpack.c.l.b16 %v1137
      %v1213 = vunpack.c.l.b16 %v1151
      %v1214 = vunpack.c.l.b16 %v1165
      %v1215 = vunpack.c.l.b16 %v1179
      %v1216 = vunpack.c.l.b16 %v1193
      %v1217 = vunpack.c.l.b16 %v1207
      %v1218 = vpack.c.b16 %v1211, %v1210
      %v1219 = vpack.c.b16 %v1213, %v1212
      %v1220 = vpack.c.b16 %v1215, %v1214
      %v1221 = vpack.c.b16 %v1217, %v1216
      %v1223 = vsel %vm522, %v1218, 0
      %v1226 = vsel %vm522, %v1219, 0
      %v1229 = vsel %vm522, %v1220, 0
      %v1232 = vsel %vm522, %v1221, 0
      %v1235 = vsel %vm535, %v1209, 0
      %1237 = vmatpush.bf16.msra.mxu0 0
      %1238 = vmatpush.bf16.msra.mxu0 0
      %1239 = vmatpush.bf16.msra.mxu0 0
      %1240 = vmatpush.bf16.msra.mxu0 0
      %1241 = vmatpush.bf16.msra.mxu0 0
      %1242 = vmatpush.bf16.msra.mxu0 0
      %1243 = vmatpush.bf16.msra.mxu0 0
      %1244 = vmatpush.bf16.msra.mxu0 %v1235
      %1245 = vmatmul.bf16.gmra.mxu0 %v1223
      %v1246 = vpop.f32.mrf.mxu0
      %v1247 = vadd.f32 0.0, %v1246
      %v1248 = vpop.f32.mrf.mxu0
      %v1249 = vadd.f32 0.0, %v1248
      %1250 = vmatmul.bf16.gmra.mxu0 %v1226
      %v1251 = vpop.f32.mrf.mxu0
      %v1252 = vadd.f32 0.0, %v1251
      %v1253 = vpop.f32.mrf.mxu0
      %v1254 = vadd.f32 0.0, %v1253
      %1255 = vmatmul.bf16.gmra.mxu0 %v1229
      %v1256 = vpop.f32.mrf.mxu0
      %v1257 = vadd.f32 0.0, %v1256
      %v1258 = vpop.f32.mrf.mxu0
      %v1259 = vadd.f32 0.0, %v1258
      %1260 = vmatmul.bf16.gmra.mxu0 %v1232
      %v1261 = vpop.f32.mrf.mxu0
      %v1262 = vadd.f32 0.0, %v1261
      %v1263 = vpop.f32.mrf.mxu0
      %v1264 = vadd.f32 0.0, %v1263
      %1265 = vdwg.mxu0
      %v1266 = vld [vmem:[#allocation2] sm:$0xff]
      %v1267 = vld [vmem:[#allocation2 + $0x8] sm:$0xff]
      %v1268 = vld [vmem:[#allocation2 + $0x10] sm:$0xff]
      %v1269 = vld [vmem:[#allocation2 + $0x18] sm:$0xff]
      %v1270 = vld [vmem:[#allocation2 + $0x20] sm:$0xff]
      %v1271 = vld [vmem:[#allocation2 + $0x28] sm:$0xff]
      %v1272 = vld [vmem:[#allocation2 + $0x30] sm:$0xff]
      %v1273 = vld [vmem:[#allocation2 + $0x38] sm:$0xff]
      %v1274 = vadd.f32 %v1266, %v1247
      %v1275 = vadd.f32 %v1267, %v1249
      %v1276 = vadd.f32 %v1268, %v1252
      %v1277 = vadd.f32 %v1269, %v1254
      %v1278 = vadd.f32 %v1270, %v1257
      %v1279 = vadd.f32 %v1271, %v1259
      %v1280 = vadd.f32 %v1272, %v1262
      %v1281 = vadd.f32 %v1273, %v1264
      %1282 = vst [vmem:[#allocation2] sm:$0xff] %v1274
      %1283 = vst [vmem:[#allocation2 + $0x8] sm:$0xff] %v1275
      %1284 = vst [vmem:[#allocation2 + $0x10] sm:$0xff] %v1276
      %1285 = vst [vmem:[#allocation2 + $0x18] sm:$0xff] %v1277
      %1286 = vst [vmem:[#allocation2 + $0x20] sm:$0xff] %v1278
      %1287 = vst [vmem:[#allocation2 + $0x28] sm:$0xff] %v1279
      %1288 = vst [vmem:[#allocation2 + $0x30] sm:$0xff] %v1280
      %1289 = vst [vmem:[#allocation2 + $0x38] sm:$0xff] %v1281
      %s1290 = scalar_lea.vmem %s4, 12
      %v1291 = vld [vmem:[%s1290] sm:$0x3]
      %v1293 = vunpack.c.l.b16 %v466
      %v1294 = vpack.c.b16 %v512, %v511
      %v1295 = vpack.c.b16 %v514, %v513
      %v1296 = vpack.c.b16 %v516, %v515
      %v1297 = vpack.c.b16 %v1293, %v517
      %v1299 = vsel %vm522, %v1294, 0
      %v1302 = vsel %vm522, %v1295, 0
      %v1305 = vsel %vm522, %v1296, 0
      %v1308 = vsel %vm522, %v1297, 0
      %v1311 = vsel %vm535, %v1291, 0
      %1313 = vmatpush.bf16.msra.mxu0 0
      %1314 = vmatpush.bf16.msra.mxu0 0
      %1315 = vmatpush.bf16.msra.mxu0 0
      %1316 = vmatpush.bf16.msra.mxu0 0
      %1317 = vmatpush.bf16.msra.mxu0 0
      %1318 = vmatpush.bf16.msra.mxu0 0
      %1319 = vmatpush.bf16.msra.mxu0 0
      %1320 = vmatpush.bf16.msra.mxu0 %v1311
      %1321 = vmatmul.bf16.gmra.mxu0 %v1299
      %v1322 = vpop.f32.mrf.mxu0
      %v1323 = vadd.f32 0.0, %v1322
      %v1324 = vpop.f32.mrf.mxu0
      %v1325 = vadd.f32 0.0, %v1324
      %1326 = vmatmul.bf16.gmra.mxu0 %v1302
      %v1327 = vpop.f32.mrf.mxu0
      %v1328 = vadd.f32 0.0, %v1327
      %v1329 = vpop.f32.mrf.mxu0
      %v1330 = vadd.f32 0.0, %v1329
      %1331 = vmatmul.bf16.gmra.mxu0 %v1305
      %v1332 = vpop.f32.mrf.mxu0
      %v1333 = vadd.f32 0.0, %v1332
      %v1334 = vpop.f32.mrf.mxu0
      %v1335 = vadd.f32 0.0, %v1334
      %1336 = vmatmul.bf16.gmra.mxu0 %v1308
      %v1337 = vpop.f32.mrf.mxu0
      %v1338 = vadd.f32 0.0, %v1337
      %v1339 = vpop.f32.mrf.mxu0
      %v1340 = vadd.f32 0.0, %v1339
      %1341 = vdwg.mxu0
      %v1342 = vld [vmem:[#allocation2] sm:$0xff]
      %v1343 = vld [vmem:[#allocation2 + $0x8] sm:$0xff]
      %v1344 = vld [vmem:[#allocation2 + $0x10] sm:$0xff]
      %v1345 = vld [vmem:[#allocation2 + $0x18] sm:$0xff]
      %v1346 = vld [vmem:[#allocation2 + $0x20] sm:$0xff]
      %v1347 = vld [vmem:[#allocation2 + $0x28] sm:$0xff]
      %v1348 = vld [vmem:[#allocation2 + $0x30] sm:$0xff]
      %v1349 = vld [vmem:[#allocation2 + $0x38] sm:$0xff]
      %v1350 = vadd.f32 %v1342, %v1323
      %v1351 = vadd.f32 %v1343, %v1325
      %v1352 = vadd.f32 %v1344, %v1328
      %v1353 = vadd.f32 %v1345, %v1330
      %v1354 = vadd.f32 %v1346, %v1333
      %v1355 = vadd.f32 %v1347, %v1335
      %v1356 = vadd.f32 %v1348, %v1338
      %v1357 = vadd.f32 %v1349, %v1340
      %1358 = vst [vmem:[#allocation2] sm:$0xff] %v1350
      %1359 = vst [vmem:[#allocation2 + $0x8] sm:$0xff] %v1351
      %1360 = vst [vmem:[#allocation2 + $0x10] sm:$0xff] %v1352
      %1361 = vst [vmem:[#allocation2 + $0x18] sm:$0xff] %v1353
      %1362 = vst [vmem:[#allocation2 + $0x20] sm:$0xff] %v1354
      %1363 = vst [vmem:[#allocation2 + $0x28] sm:$0xff] %v1355
      %1364 = vst [vmem:[#allocation2 + $0x30] sm:$0xff] %v1356
      %1365 = vst [vmem:[#allocation2 + $0x38] sm:$0xff] %v1357
      %s1366 = scalar_lea.vmem %s4, 14
      %v1367 = vld [vmem:[%s1366] sm:$0x3]
      %v1369 = vunpack.c.l.b16 %v476
      %v1370 = vpack.c.b16 %v588, %v587
      %v1371 = vpack.c.b16 %v590, %v589
      %v1372 = vpack.c.b16 %v592, %v591
      %v1373 = vpack.c.b16 %v1369, %v593
      %v1375 = vsel %vm522, %v1370, 0
      %v1378 = vsel %vm522, %v1371, 0
      %v1381 = vsel %vm522, %v1372, 0
      %v1384 = vsel %vm522, %v1373, 0
      %v1387 = vsel %vm535, %v1367, 0
      %1389 = vmatpush.bf16.msra.mxu0 0
      %1390 = vmatpush.bf16.msra.mxu0 0
      %1391 = vmatpush.bf16.msra.mxu0 0
      %1392 = vmatpush.bf16.msra.mxu0 0
      %1393 = vmatpush.bf16.msra.mxu0 0
      %1394 = vmatpush.bf16.msra.mxu0 0
      %1395 = vmatpush.bf16.msra.mxu0 0
      %1396 = vmatpush.bf16.msra.mxu0 %v1387
      %1397 = vmatmul.bf16.gmra.mxu0 %v1375
      %v1398 = vpop.f32.mrf.mxu0
      %v1399 = vadd.f32 0.0, %v1398
      %v1400 = vpop.f32.mrf.mxu0
      %v1401 = vadd.f32 0.0, %v1400
      %1402 = vmatmul.bf16.gmra.mxu0 %v1378
      %v1403 = vpop.f32.mrf.mxu0
      %v1404 = vadd.f32 0.0, %v1403
      %v1405 = vpop.f32.mrf.mxu0
      %v1406 = vadd.f32 0.0, %v1405
      %1407 = vmatmul.bf16.gmra.mxu0 %v1381
      %v1408 = vpop.f32.mrf.mxu0
      %v1409 = vadd.f32 0.0, %v1408
      %v1410 = vpop.f32.mrf.mxu0
      %v1411 = vadd.f32 0.0, %v1410
      %1412 = vmatmul.bf16.gmra.mxu0 %v1384
      %v1413 = vpop.f32.mrf.mxu0
      %v1414 = vadd.f32 0.0, %v1413
      %v1415 = vpop.f32.mrf.mxu0
      %v1416 = vadd.f32 0.0, %v1415
      %1417 = vdwg.mxu0
      %v1418 = vld [vmem:[#allocation2] sm:$0xff]
      %v1419 = vld [vmem:[#allocation2 + $0x8] sm:$0xff]
      %v1420 = vld [vmem:[#allocation2 + $0x10] sm:$0xff]
      %v1421 = vld [vmem:[#allocation2 + $0x18] sm:$0xff]
      %v1422 = vld [vmem:[#allocation2 + $0x20] sm:$0xff]
      %v1423 = vld [vmem:[#allocation2 + $0x28] sm:$0xff]
      %v1424 = vld [vmem:[#allocation2 + $0x30] sm:$0xff]
      %v1425 = vld [vmem:[#allocation2 + $0x38] sm:$0xff]
      %v1426 = vadd.f32 %v1418, %v1399
      %v1427 = vadd.f32 %v1419, %v1401
      %v1428 = vadd.f32 %v1420, %v1404
      %v1429 = vadd.f32 %v1421, %v1406
      %v1430 = vadd.f32 %v1422, %v1409
      %v1431 = vadd.f32 %v1423, %v1411
      %v1432 = vadd.f32 %v1424, %v1414
      %v1433 = vadd.f32 %v1425, %v1416
      %1434 = vst [vmem:[#allocation2] sm:$0xff] %v1426
      %1435 = vst [vmem:[#allocation2 + $0x8] sm:$0xff] %v1427
      %1436 = vst [vmem:[#allocation2 + $0x10] sm:$0xff] %v1428
      %1437 = vst [vmem:[#allocation2 + $0x18] sm:$0xff] %v1429
      %1438 = vst [vmem:[#allocation2 + $0x20] sm:$0xff] %v1430
      %1439 = vst [vmem:[#allocation2 + $0x28] sm:$0xff] %v1431
      %1440 = vst [vmem:[#allocation2 + $0x30] sm:$0xff] %v1432
      %1441 = vst [vmem:[#allocation2 + $0x38] sm:$0xff] %v1433
      %v1443 = vshrl.u32 %v466, 16
      %v1445 = vrot.slane %v1443, 4
      %v1446 = vshll.u32 %v466, 16
      %v1448 = vrot.slane %v1446, 5
      %v1449 = vor.u32 %v1445, %v1448
      %v1450 = vrot.slane %v1449, 4
      %v1452 = vshll.u32 %v467, 16
      %v1454 = vrot.slane %v1452, 5
      %v1455 = vsel %vm668, %v1450, %v1454
      %s1456 = scalar_lea.vmem %s4, 16
      %v1457 = vld [vmem:[%s1456] sm:$0x3]
      %v1458 = vunpack.c.l.b16 %v1455
      %v1459 = vpack.c.b16 %v785, %v784
      %v1460 = vpack.c.b16 %v787, %v786
      %v1461 = vpack.c.b16 %v789, %v788
      %v1462 = vpack.c.b16 %v1458, %v790
      %v1464 = vsel %vm522, %v1459, 0
      %v1467 = vsel %vm522, %v1460, 0
      %v1470 = vsel %vm522, %v1461, 0
      %v1473 = vsel %vm522, %v1462, 0
      %v1476 = vsel %vm535, %v1457, 0
      %1478 = vmatpush.bf16.msra.mxu0 0
      %1479 = vmatpush.bf16.msra.mxu0 0
      %1480 = vmatpush.bf16.msra.mxu0 0
      %1481 = vmatpush.bf16.msra.mxu0 0
      %1482 = vmatpush.bf16.msra.mxu0 0
      %1483 = vmatpush.bf16.msra.mxu0 0
      %1484 = vmatpush.bf16.msra.mxu0 0
      %1485 = vmatpush.bf16.msra.mxu0 %v1476
      %1486 = vmatmul.bf16.gmra.mxu0 %v1464
      %v1487 = vpop.f32.mrf.mxu0
      %v1488 = vadd.f32 0.0, %v1487
      %v1489 = vpop.f32.mrf.mxu0
      %v1490 = vadd.f32 0.0, %v1489
      %1491 = vmatmul.bf16.gmra.mxu0 %v1467
      %v1492 = vpop.f32.mrf.mxu0
      %v1493 = vadd.f32 0.0, %v1492
      %v1494 = vpop.f32.mrf.mxu0
      %v1495 = vadd.f32 0.0, %v1494
      %1496 = vmatmul.bf16.gmra.mxu0 %v1470
      %v1497 = vpop.f32.mrf.mxu0
      %v1498 = vadd.f32 0.0, %v1497
      %v1499 = vpop.f32.mrf.mxu0
      %v1500 = vadd.f32 0.0, %v1499
      %1501 = vmatmul.bf16.gmra.mxu0 %v1473
      %v1502 = vpop.f32.mrf.mxu0
      %v1503 = vadd.f32 0.0, %v1502
      %v1504 = vpop.f32.mrf.mxu0
      %v1505 = vadd.f32 0.0, %v1504
      %1506 = vdwg.mxu0
      %v1507 = vld [vmem:[#allocation2] sm:$0xff]
      %v1508 = vld [vmem:[#allocation2 + $0x8] sm:$0xff]
      %v1509 = vld [vmem:[#allocation2 + $0x10] sm:$0xff]
      %v1510 = vld [vmem:[#allocation2 + $0x18] sm:$0xff]
      %v1511 = vld [vmem:[#allocation2 + $0x20] sm:$0xff]
      %v1512 = vld [vmem:[#allocation2 + $0x28] sm:$0xff]
      %v1513 = vld [vmem:[#allocation2 + $0x30] sm:$0xff]
      %v1514 = vld [vmem:[#allocation2 + $0x38] sm:$0xff]
      %v1515 = vadd.f32 %v1507, %v1488
      %v1516 = vadd.f32 %v1508, %v1490
      %v1517 = vadd.f32 %v1509, %v1493
      %v1518 = vadd.f32 %v1510, %v1495
      %v1519 = vadd.f32 %v1511, %v1498
      %v1520 = vadd.f32 %v1512, %v1500
      %v1521 = vadd.f32 %v1513, %v1503
      %v1522 = vadd.f32 %v1514, %v1505
      %1523 = vst [vmem:[#allocation2] sm:$0xff] %v1515
      %1524 = vst [vmem:[#allocation2 + $0x8] sm:$0xff] %v1516
      %1525 = vst [vmem:[#allocation2 + $0x10] sm:$0xff] %v1517
      %1526 = vst [vmem:[#allocation2 + $0x18] sm:$0xff] %v1518
      %1527 = vst [vmem:[#allocation2 + $0x20] sm:$0xff] %v1519
      %1528 = vst [vmem:[#allocation2 + $0x28] sm:$0xff] %v1520
      %1529 = vst [vmem:[#allocation2 + $0x30] sm:$0xff] %v1521
      %1530 = vst [vmem:[#allocation2 + $0x38] sm:$0xff] %v1522
      %v1531 = vld [vmem:[#allocation2] sm:$0xff]
      %v1532 = vld [vmem:[#allocation2 + $0x8] sm:$0xff]
      %v1533 = vld [vmem:[#allocation2 + $0x10] sm:$0xff]
      %v1534 = vld [vmem:[#allocation2 + $0x18] sm:$0xff]
      %v1535 = vld [vmem:[#allocation2 + $0x20] sm:$0xff]
      %v1536 = vld [vmem:[#allocation2 + $0x28] sm:$0xff]
      %v1537 = vld [vmem:[#allocation2 + $0x30] sm:$0xff]
      %v1538 = vld [vmem:[#allocation2 + $0x38] sm:$0xff]
      %v1539 = vpack.c.bf16 %v1531, %v1531
      %v1540 = vpack.c.bf16 %v1532, %v1532
      %v1541 = vpack.c.bf16 %v1533, %v1533
      %v1542 = vpack.c.bf16 %v1534, %v1534
      %v1543 = vpack.c.bf16 %v1535, %v1535
      %v1544 = vpack.c.bf16 %v1536, %v1536
      %v1545 = vpack.c.bf16 %v1537, %v1537
      %v1546 = vpack.c.bf16 %v1538, %v1538
      %1547 = vst [vmem:[%s437] sm:$0xf] %v1539
      %1548 = vst [vmem:[%s437 + $0x4] sm:$0xf] %v1540
      %1549 = vst [vmem:[%s437 + $0x8] sm:$0xf] %v1541
      %1550 = vst [vmem:[%s437 + $0xc] sm:$0xf] %v1542
      %1551 = vst [vmem:[%s437 + $0x10] sm:$0xf] %v1543
      %1552 = vst [vmem:[%s437 + $0x14] sm:$0xf] %v1544
      %1553 = vst [vmem:[%s437 + $0x18] sm:$0xf] %v1545
      %1554 = vst [vmem:[%s437 + $0x1c] sm:$0xf] %v1546
      %v1555 = vadd.f32 %v1531, %v1532
      %v1556 = vadd.f32 %v1555, %v1533
      %v1557 = vadd.f32 %v1556, %v1534
      %v1558 = vadd.f32 %v1557, %v1535
      %v1559 = vadd.f32 %v1558, %v1536
      %v1560 = vadd.f32 %v1559, %v1537
      %v1561 = vadd.f32 %v1560, %v1538
      %v1562 = vrot.slane %v1561, 4
      %v1563 = vadd.f32 %v1561, %v1562
      %v1564 = vrot.slane %v1563, 2
      %v1565 = vadd.f32 %v1563, %v1564
      %v1566 = vrot.slane %v1565, 1
      %v1567 = vadd.f32 %v1565, %v1566
      %1568 = vst [vmem:[%s445] sm:$0x1] %v1567
      %v1569 = vmul.f32 %v1531, %v1531
      %v1570 = vmul.f32 %v1532, %v1532
      %v1571 = vmul.f32 %v1533, %v1533
      %v1572 = vmul.f32 %v1534, %v1534
      %v1573 = vmul.f32 %v1535, %v1535
      %v1574 = vmul.f32 %v1536, %v1536
      %v1575 = vmul.f32 %v1537, %v1537
      %v1576 = vmul.f32 %v1538, %v1538
      %v1577 = vadd.f32 %v1569, %v1570
      %v1578 = vadd.f32 %v1577, %v1571
      %v1579 = vadd.f32 %v1578, %v1572
      %v1580 = vadd.f32 %v1579, %v1573
      %v1581 = vadd.f32 %v1580, %v1574
      %v1582 = vadd.f32 %v1581, %v1575
      %v1583 = vadd.f32 %v1582, %v1576
      %v1584 = vrot.slane %v1583, 4
      %v1585 = vadd.f32 %v1583, %v1584
      %v1586 = vrot.slane %v1585, 2
      %v1587 = vadd.f32 %v1585, %v1586
      %v1588 = vrot.slane %v1587, 1
      %v1589 = vadd.f32 %v1587, %v1588
      %1590 = vst [vmem:[%s448] sm:$0x1] %v1589
      %p1591 = scmp.lt.s32.totalorder %s22, 1
      %s1592 = scalar_select %p1591, %s22, 1
      %s1593 = smul.addr %s1592, 8
      %s1594 = smul.addr %s1593, 4
      %s1595 = scalar_lea.vmem %s7, %s1594
      %p1596 = scmp.lt.s32.totalorder %s22, 1
      %s1597 = scalar_select %p1596, %s22, 1
      %s1598 = smul.addr %s1597, 8
      %s1599 = smul.addr %s1598, 4
      %s1600 = scalar_lea.vmem %s8, %s1599
      %p1601 = scmp.lt.s32.totalorder %s22, 1
      %s1602 = scalar_select %p1601, %s22, 1
      %s1603 = scalar_lea.vmem %s9, %s1602
      %p1604 = scmp.lt.s32.totalorder %s22, 1
      %s1605 = scalar_select %p1604, %s22, 1
      %s1606 = scalar_lea.vmem %s10, %s1605
      // Predicated region
      $region49: #{bottleneck_block_forward.3} parent=47 // pred_check
        %p1607 = pneg %p207
      $region50: #{bottleneck_block_forward.3} parent=47 // pred_check_branch
        %1609 = sbr.rel (%p1607) target = $region52
      $region51: #{bottleneck_block_forward.3} parent=47 // pred_region
        _
      $region52: #{bottleneck_block_forward.3} parent=47 // pred_fallthru
        _
      // Predicated region
      $region53: #{bottleneck_block_forward.3} parent=47 // pred_check
        %p1610 = pneg %p233
      $region54: #{bottleneck_block_forward.3} parent=47 // pred_check_branch
        %1612 = sbr.rel (%p1610) target = $region56
      $region55: #{bottleneck_block_forward.3} parent=47 // pred_region
        _
      $region56: #{bottleneck_block_forward.3} parent=47 // pred_fallthru
        _
      // Predicated region
      $region57: #{bottleneck_block_forward.3} parent=47 // pred_check
        %p1613 = pneg %p259
      $region58: #{bottleneck_block_forward.3} parent=47 // pred_check_branch
        %1615 = sbr.rel (%p1613) target = $region60
      $region59: #{bottleneck_block_forward.3} parent=47 // pred_region
        _
      $region60: #{bottleneck_block_forward.3} parent=47 // pred_fallthru
        _
      // Predicated region
      $region61: #{bottleneck_block_forward.3} parent=47 // pred_check
        %p1616 = pneg %p285
      $region62: #{bottleneck_block_forward.3} parent=47 // pred_check_branch
        %1618 = sbr.rel (%p1616) target = $region64
      $region63: #{bottleneck_block_forward.3} parent=47 // pred_region
        _
      $region64: #{bottleneck_block_forward.3} parent=47 // pred_fallthru
        _
    $region48: #{bottleneck_block_forward.3} parent=5 // pred_fallthru
      _
    %p1619 = scmp.le.s32.totalorder 2, %s17
    // Predicated region
    $region65: #{bottleneck_block_forward.3} parent=5 // pred_check
      %p1620 = pneg %p1619
    $region66: #{bottleneck_block_forward.3} parent=5 // pred_check_branch
      %1622 = sbr.rel (%p1620) target = $region68
    $region67: #{bottleneck_block_forward.3} parent=5 // pred_region
      %s1623 = ssub.s32 %s17, 2
      // Predicated region
      $region69: #{bottleneck_block_forward.3} parent=67 // pred_check
        %p1624 = pneg %p213
      $region70: #{bottleneck_block_forward.3} parent=67 // pred_check_branch
        %1626 = sbr.rel (%p1624) target = $region72
      $region71: #{bottleneck_block_forward.3} parent=67 // pred_region
        %p1627 = scmp.lt.s32.totalorder %s23, 1
        %s1628 = scalar_select %p1627, %s23, 1
        %s1629 = smul.addr %s1628, 8
        %s1630 = smul.addr %s1629, 4
        %s1631 = scalar_lea.vmem %s7, %s1630
      $region72: #{bottleneck_block_forward.3} parent=67 // pred_fallthru
        _
      // Predicated region
      $region73: #{bottleneck_block_forward.3} parent=67 // pred_check
        %p1632 = pneg %p239
      $region74: #{bottleneck_block_forward.3} parent=67 // pred_check_branch
        %1634 = sbr.rel (%p1632) target = $region76
      $region75: #{bottleneck_block_forward.3} parent=67 // pred_region
        %p1635 = scmp.lt.s32.totalorder %s23, 1
        %s1636 = scalar_select %p1635, %s23, 1
        %s1637 = smul.addr %s1636, 8
        %s1638 = smul.addr %s1637, 4
        %s1639 = scalar_lea.vmem %s8, %s1638
      $region76: #{bottleneck_block_forward.3} parent=67 // pred_fallthru
        _
      // Predicated region
      $region77: #{bottleneck_block_forward.3} parent=67 // pred_check
        %p1640 = pneg %p265
      $region78: #{bottleneck_block_forward.3} parent=67 // pred_check_branch
        %1642 = sbr.rel (%p1640) target = $region80
      $region79: #{bottleneck_block_forward.3} parent=67 // pred_region
        %p1643 = scmp.lt.s32.totalorder %s23, 1
        %s1644 = scalar_select %p1643, %s23, 1
        %s1645 = scalar_lea.vmem %s9, %s1644
      $region80: #{bottleneck_block_forward.3} parent=67 // pred_fallthru
        _
      // Predicated region
      $region81: #{bottleneck_block_forward.3} parent=67 // pred_check
        %p1646 = pneg %p291
      $region82: #{bottleneck_block_forward.3} parent=67 // pred_check_branch
        %1648 = sbr.rel (%p1646) target = $region84
      $region83: #{bottleneck_block_forward.3} parent=67 // pred_region
        %p1649 = scmp.lt.s32.totalorder %s23, 1
        %s1650 = scalar_select %p1649, %s23, 1
        %s1651 = scalar_lea.vmem %s10, %s1650
      $region84: #{bottleneck_block_forward.3} parent=67 // pred_fallthru
        _
    $region68: #{bottleneck_block_forward.3} parent=5 // pred_fallthru
      _
  $region6: #{bottleneck_block_forward.3} parent=0 // loop_footer
    %s21 = sadd.s32 1, %s17
  $region7: #{bottleneck_block_forward.3} parent=0 // loop_footer_branch
    %16 = sbr.rel target = $region3
  $region8: #{bottleneck_block_forward.3} parent=0 // loop_exit
    _

// kernel: bottleneck_block_forward.4
$region0: #{bottleneck_block_forward.4}
  #allocation0 [shape = 'u32[]', space=smem, size = 0x4, offset = 0x4, fixed_abs, tag = 'smem constant byte address 0x4 - core index']
  #allocation1 [shape = 'u32[72,128]{1,0:T(1,128)}', space=vmem, size = 0x9000, scoped, tag = 'internal scratch']
  #allocation2 [shape = 'bf16[10,10,128]{2,1,0:T(8,128)(2,1)}', space=vmem, size = 0xa000, scoped, tag = 'scratch operand']
  #allocation3 [shape = 'f32[64,128]{1,0:T(8,128)}', space=vmem, size = 0x8000, scoped, tag = 'scratch operand']
  %s0 = inlined_call_operand.vmem [shape: bf16[2,8,8,128], index: 0, kind: input, shape index: {}]
  %s1 = inlined_call_operand.vmem [shape: f32[1,128], index: 1, kind: input, shape index: {}]
  %s2 = inlined_call_operand.vmem [shape: f32[1,128], index: 2, kind: input, shape index: {}]
  %s3 = inlined_call_operand.vmem [shape: bf16[3,384,128], index: 3, kind: input, shape index: {}]
  %s4 = inlined_call_operand.vmem [shape: bf16[2,8,8,128], index: 4, kind: output, shape index: {0}]
  %s5 = inlined_call_operand.vmem [shape: f32[2,1,128], index: 5, kind: output, shape index: {1}]
  %s6 = inlined_call_operand.vmem [shape: f32[2,1,128], index: 6, kind: output, shape index: {2}]
  %7 = xla_tuple %s4, %s5, %s6
  %s8 = sld [smem:[#allocation0]]
  $region65: #{bottleneck_block_forward.4} parent=0
    _
  %s10 = ssub.s32 1, %s8
  %s11 = scalar_select 0, %s10, %s8
  loop: start=0, step=1, limit=4
  $region2: #{bottleneck_block_forward.4} parent=0 // loop_pre_header
    _
  $region3: #{bottleneck_block_forward.4} parent=0 // loop_header
    %s13 = sphi 0, %s17
    %p14 = scmp.ge.s32.totalorder %s13, 4
    %s23 = sphi 0, %s25
    %s26 = sphi 0, %s23
    %s27 = sphi 0, %s26
    %s43 = sphi 0, %s27
    %s47 = sphi 0, %s47
    %s49 = sphi 0, %s47
    %s50 = sphi 0, %s49
    %s64 = sphi 0, %s50
    %s68 = sphi 0, %s68
    %s70 = sphi 0, %s68
    %s71 = sphi 0, %s70
    %s85 = sphi 0, %s71
    %s89 = sphi 0, %s89
    %s91 = sphi 0, %s89
    %s92 = sphi 0, %s91
    %s106 = sphi 0, %s92
    %s112 = sphi 0, %s114
    %s115 = sphi 0, %s112
    %s116 = sphi 0, %s115
    %s132 = sphi 0, %s116
    %s138 = sphi 0, %s140
    %s141 = sphi 0, %s138
    %s142 = sphi 0, %s141
    %s158 = sphi 0, %s142
    %s164 = sphi 0, %s166
    %s167 = sphi 0, %s164
    %s168 = sphi 0, %s167
    %s184 = sphi 0, %s168
  $region4: #{bottleneck_block_forward.4} parent=0 // loop_header_branch
    %16 = sbr.rel (%p14) target = $region8
  $region5: #{bottleneck_block_forward.4} parent=0 // loop_body
    %s18 = ssub.s32 %s13, 1
    %s19 = ssub.s32 %s13, 2
    %s20 = sadd.s32 %s13, 1
    %s21 = ssub.s32 %s13, %s20
    %p22 = scmp.eq.s32.totalorder %s21, 0
    %s24 = sadd.s32 %s23, 1
    %s25 = scalar_select %p22, %s23, %s24
    %p28 = pneg %p22
    %p29 = scmp.eq.s32.totalorder %s13, 1
    %p30 = por %p28, %p29
    %p31 = scmp.ne.s32.totalorder %s23, %s26
    %p32 = scmp.eq.s32.totalorder %s13, 0
    %p33 = por %p31, %p32
    %p34 = scmp.ne.s32.totalorder %s23, %s26
    %p35 = scmp.eq.s32.totalorder %s18, 1
    %p36 = por %p34, %p35
    %p37 = scmp.ne.s32.totalorder %s26, %s27
    %p38 = scmp.eq.s32.totalorder %s18, 0
    %p39 = por %p37, %p38
    %p40 = scmp.ne.s32.totalorder %s26, %s27
    %p41 = scmp.eq.s32.totalorder %s19, 1
    %p42 = por %p40, %p41
    %p44 = scmp.ne.s32.totalorder %s27, %s43
    %p45 = scmp.eq.s32.totalorder %s19, 0
    %p46 = por %p44, %p45
    %s48 = sadd.s32 %s47, 1
    %p51 = scmp.eq.s32.totalorder %s13, 1
    %p52 = scmp.ne.s32.totalorder %s47, %s49
    %p53 = scmp.eq.s32.totalorder %s13, 0
    %p54 = por %p52, %p53
    %p55 = scmp.ne.s32.totalorder %s47, %s49
    %p56 = scmp.eq.s32.totalorder %s18, 1
    %p57 = por %p55, %p56
    %p58 = scmp.ne.s32.totalorder %s49, %s50
    %p59 = scmp.eq.s32.totalorder %s18, 0
    %p60 = por %p58, %p59
    %p61 = scmp.ne.s32.totalorder %s49, %s50
    %p62 = scmp.eq.s32.totalorder %s19, 1
    %p63 = por %p61, %p62
    %p65 = scmp.ne.s32.totalorder %s50, %s64
    %p66 = scmp.eq.s32.totalorder %s19, 0
    %p67 = por %p65, %p66
    %s69 = sadd.s32 %s68, 1
    %p72 = scmp.eq.s32.totalorder %s13, 1
    %p73 = scmp.ne.s32.totalorder %s68, %s70
    %p74 = scmp.eq.s32.totalorder %s13, 0
    %p75 = por %p73, %p74
    %p76 = scmp.ne.s32.totalorder %s68, %s70
    %p77 = scmp.eq.s32.totalorder %s18, 1
    %p78 = por %p76, %p77
    %p79 = scmp.ne.s32.totalorder %s70, %s71
    %p80 = scmp.eq.s32.totalorder %s18, 0
    %p81 = por %p79, %p80
    %p82 = scmp.ne.s32.totalorder %s70, %s71
    %p83 = scmp.eq.s32.totalorder %s19, 1
    %p84 = por %p82, %p83
    %p86 = scmp.ne.s32.totalorder %s71, %s85
    %p87 = scmp.eq.s32.totalorder %s19, 0
    %p88 = por %p86, %p87
    %s90 = sadd.s32 %s89, 1
    %p93 = scmp.eq.s32.totalorder %s13, 1
    %p94 = scmp.ne.s32.totalorder %s89, %s91
    %p95 = scmp.eq.s32.totalorder %s13, 0
    %p96 = por %p94, %p95
    %p97 = scmp.ne.s32.totalorder %s89, %s91
    %p98 = scmp.eq.s32.totalorder %s18, 1
    %p99 = por %p97, %p98
    %p100 = scmp.ne.s32.totalorder %s91, %s92
    %p101 = scmp.eq.s32.totalorder %s18, 0
    %p102 = por %p100, %p101
    %p103 = scmp.ne.s32.totalorder %s91, %s92
    %p104 = scmp.eq.s32.totalorder %s19, 1
    %p105 = por %p103, %p104
    %p107 = scmp.ne.s32.totalorder %s92, %s106
    %p108 = scmp.eq.s32.totalorder %s19, 0
    %p109 = por %p107, %p108
    %s110 = ssub.s32 %s13, %s20
    %p111 = scmp.eq.s32.totalorder %s110, 0
    %s113 = sadd.s32 %s112, 1
    %s114 = scalar_select %p111, %s112, %s113
    %p117 = pneg %p111
    %p118 = scmp.eq.s32.totalorder %s13, 1
    %p119 = por %p117, %p118
    %p120 = scmp.ne.s32.totalorder %s112, %s115
    %p121 = scmp.eq.s32.totalorder %s13, 0
    %p122 = por %p120, %p121
    %p123 = scmp.ne.s32.totalorder %s112, %s115
    %p124 = scmp.eq.s32.totalorder %s18, 1
    %p125 = por %p123, %p124
    %p126 = scmp.ne.s32.totalorder %s115, %s116
    %p127 = scmp.eq.s32.totalorder %s18, 0
    %p128 = por %p126, %p127
    %p129 = scmp.ne.s32.totalorder %s115, %s116
    %p130 = scmp.eq.s32.totalorder %s19, 1
    %p131 = por %p129, %p130
    %p133 = scmp.ne.s32.totalorder %s116, %s132
    %p134 = scmp.eq.s32.totalorder %s19, 0
    %p135 = por %p133, %p134
    %s136 = ssub.s32 %s13, %s20
    %p137 = scmp.eq.s32.totalorder %s136, 0
    %s139 = sadd.s32 %s138, 1
    %s140 = scalar_select %p137, %s138, %s139
    %p143 = pneg %p137
    %p144 = scmp.eq.s32.totalorder %s13, 1
    %p145 = por %p143, %p144
    %p146 = scmp.ne.s32.totalorder %s138, %s141
    %p147 = scmp.eq.s32.totalorder %s13, 0
    %p148 = por %p146, %p147
    %p149 = scmp.ne.s32.totalorder %s138, %s141
    %p150 = scmp.eq.s32.totalorder %s18, 1
    %p151 = por %p149, %p150
    %p152 = scmp.ne.s32.totalorder %s141, %s142
    %p153 = scmp.eq.s32.totalorder %s18, 0
    %p154 = por %p152, %p153
    %p155 = scmp.ne.s32.totalorder %s141, %s142
    %p156 = scmp.eq.s32.totalorder %s19, 1
    %p157 = por %p155, %p156
    %p159 = scmp.ne.s32.totalorder %s142, %s158
    %p160 = scmp.eq.s32.totalorder %s19, 0
    %p161 = por %p159, %p160
    %s162 = ssub.s32 %s13, %s20
    %p163 = scmp.eq.s32.totalorder %s162, 0
    %s165 = sadd.s32 %s164, 1
    %s166 = scalar_select %p163, %s164, %s165
    %p169 = pneg %p163
    %p170 = scmp.eq.s32.totalorder %s13, 1
    %p171 = por %p169, %p170
    %p172 = scmp.ne.s32.totalorder %s164, %s167
    %p173 = scmp.eq.s32.totalorder %s13, 0
    %p174 = por %p172, %p173
    %p175 = scmp.ne.s32.totalorder %s164, %s167
    %p176 = scmp.eq.s32.totalorder %s18, 1
    %p177 = por %p175, %p176
    %p178 = scmp.ne.s32.totalorder %s167, %s168
    %p179 = scmp.eq.s32.totalorder %s18, 0
    %p180 = por %p178, %p179
    %p181 = scmp.ne.s32.totalorder %s167, %s168
    %p182 = scmp.eq.s32.totalorder %s19, 1
    %p183 = por %p181, %p182
    %p185 = scmp.ne.s32.totalorder %s168, %s184
    %p186 = scmp.eq.s32.totalorder %s19, 0
    %p187 = por %p185, %p186
    %p188 = scmp.le.s32.totalorder 1, %s13
    %p189 = scmp.lt.s32.totalorder %s13, 3
    %p190 = pnand %p188, %p189
    %p191 = pneg %p190
    // Predicated region
    $region9: #{bottleneck_block_forward.4} parent=5 // pred_check
      _
    $region10: #{bottleneck_block_forward.4} parent=5 // pred_check_branch
      %193 = sbr.rel (%p190) target = $region12
    $region11: #{bottleneck_block_forward.4} parent=5 // pred_region
      %s194 = ssub.s32 %s13, 1
      // Predicated region
      $region13: #{bottleneck_block_forward.4} parent=11 // pred_check
        %p195 = pneg %p60
      $region14: #{bottleneck_block_forward.4} parent=11 // pred_check_branch
        %197 = sbr.rel (%p195) target = $region16
      $region15: #{bottleneck_block_forward.4} parent=11 // pred_region
        _
      $region16: #{bottleneck_block_forward.4} parent=11 // pred_fallthru
        _
      // Predicated region
      $region17: #{bottleneck_block_forward.4} parent=11 // pred_check
        %p198 = pneg %p81
      $region18: #{bottleneck_block_forward.4} parent=11 // pred_check_branch
        %200 = sbr.rel (%p198) target = $region20
      $region19: #{bottleneck_block_forward.4} parent=11 // pred_region
        _
      $region20: #{bottleneck_block_forward.4} parent=11 // pred_fallthru
        _
      // Predicated region
      $region21: #{bottleneck_block_forward.4} parent=11 // pred_check
        %p201 = pneg %p102
      $region22: #{bottleneck_block_forward.4} parent=11 // pred_check_branch
        %203 = sbr.rel (%p201) target = $region24
      $region23: #{bottleneck_block_forward.4} parent=11 // pred_region
        _
      $region24: #{bottleneck_block_forward.4} parent=11 // pred_fallthru
        _
    $region12: #{bottleneck_block_forward.4} parent=5 // pred_fallthru
      _
    %p204 = scmp.lt.s32.totalorder %s13, 2
    // Predicated region
    $region25: #{bottleneck_block_forward.4} parent=5 // pred_check
      %p205 = pneg %p204
    $region26: #{bottleneck_block_forward.4} parent=5 // pred_check_branch
      %207 = sbr.rel (%p205) target = $region28
    $region27: #{bottleneck_block_forward.4} parent=5 // pred_region
      // Predicated region
      $region29: #{bottleneck_block_forward.4} parent=27 // pred_check
        %p208 = pneg %p33
      $region30: #{bottleneck_block_forward.4} parent=27 // pred_check_branch
        %210 = sbr.rel (%p208) target = $region32
      $region31: #{bottleneck_block_forward.4} parent=27 // pred_region
        %p211 = scmp.lt.s32.totalorder %s13, 1
        %s212 = scalar_select %p211, %s13, 1
        %s213 = smul.addr %s212, 8
        %s214 = smul.addr %s213, 4
        %s215 = scalar_lea.vmem %s0, %s214
      $region32: #{bottleneck_block_forward.4} parent=27 // pred_fallthru
        _
    $region28: #{bottleneck_block_forward.4} parent=5 // pred_fallthru
      _
    %p216 = scmp.le.s32.totalorder 1, %s13
    %p217 = scmp.lt.s32.totalorder %s13, 3
    %p218 = pnand %p216, %p217
    %p219 = pneg %p218
    // Predicated region
    $region33: #{bottleneck_block_forward.4} parent=5 // pred_check
      _
    $region34: #{bottleneck_block_forward.4} parent=5 // pred_check_branch
      %221 = sbr.rel (%p218) target = $region36
    $region35: #{bottleneck_block_forward.4} parent=5 // pred_region
      %s222 = ssub.s32 %s13, 1
      %p223 = scmp.lt.s32.totalorder %s18, 1
      %s224 = scalar_select %p223, %s18, 1
      %s225 = smul.addr %s224, 8
      %s226 = smul.addr %s225, 4
      %s227 = scalar_lea.vmem %s0, %s226
      %p228 = pneg %p39
      %p229 = pneg %p36
      %p230 = pneg %p60
      %p231 = pneg %p57
      %p232 = pneg %p81
      %p233 = pneg %p78
      %p234 = pneg %p102
      %p235 = pneg %p99
      %p236 = pneg %p128
      %p237 = pneg %p125
      %p238 = scmp.lt.s32.totalorder %s18, 1
      %s239 = scalar_select %p238, %s18, 1
      %s240 = smul.addr %s239, 8
      %s241 = smul.addr %s240, 4
      %s242 = scalar_lea.vmem %s4, %s241
      %p243 = pneg %p154
      %p244 = pneg %p151
      %p245 = scmp.lt.s32.totalorder %s18, 1
      %s246 = scalar_select %p245, %s18, 1
      %s247 = scalar_lea.vmem %s5, %s246
      %p248 = pneg %p180
      %p249 = pneg %p177
      %p250 = scmp.lt.s32.totalorder %s18, 1
      %s251 = scalar_select %p250, %s18, 1
      %s252 = scalar_lea.vmem %s6, %s251
      %p253 = scmp.lt.s32.totalorder %s18, 1
      %s254 = scalar_select %p253, %s18, 1
      %s255 = smul.addr %s254, 8
      %s256 = smul.addr %s255, 4
      %s257 = scalar_lea.vmem %s0, %s256
      %p258 = scmp.lt.s32.totalorder %s18, 1
      %s259 = scalar_select %p258, %s18, 1
      %s260 = smul.addr %s259, 8
      %s261 = smul.addr %s260, 4
      %s262 = scalar_lea.vmem %s4, %s261
      %p263 = scmp.lt.s32.totalorder %s18, 1
      %s264 = scalar_select %p263, %s18, 1
      %s265 = scalar_lea.vmem %s5, %s264
      %p266 = scmp.lt.s32.totalorder %s18, 1
      %s267 = scalar_select %p266, %s18, 1
      %s268 = scalar_lea.vmem %s6, %s267
      %v270 = vld [vmem:[%s257] sm:$0xf]
      %v271 = vld [vmem:[%s257 + $0x4] sm:$0xf]
      %v272 = vld [vmem:[%s257 + $0x8] sm:$0xf]
      %v273 = vld [vmem:[%s257 + $0xc] sm:$0xf]
      %v274 = vld [vmem:[%s257 + $0x10] sm:$0xf]
      %v275 = vld [vmem:[%s257 + $0x14] sm:$0xf]
      %v276 = vld [vmem:[%s257 + $0x18] sm:$0xf]
      %v277 = vld [vmem:[%s257 + $0x1c] sm:$0xf]
      %v278 = vunpack.c.l.bf16 %v270
      %v279 = vunpack.c.l.bf16 %v271
      %v280 = vunpack.c.l.bf16 %v272
      %v281 = vunpack.c.l.bf16 %v273
      %v282 = vunpack.c.l.bf16 %v274
      %v283 = vunpack.c.l.bf16 %v275
      %v284 = vunpack.c.l.bf16 %v276
      %v285 = vunpack.c.l.bf16 %v277
      %v286 = vld [vmem:[%s1] sm:$0x1]
      %v288 = vperm.slane %v286, 0
      %v290 = vmul.f32 %v278, %v288
      %v291 = vmul.f32 %v279, %v288
      %v292 = vmul.f32 %v280, %v288
      %v293 = vmul.f32 %v281, %v288
      %v294 = vmul.f32 %v282, %v288
      %v295 = vmul.f32 %v283, %v288
      %v296 = vmul.f32 %v284, %v288
      %v297 = vmul.f32 %v285, %v288
      %v298 = vld [vmem:[%s2] sm:$0x1]
      %v300 = vperm.slane %v298, 0
      %v302 = vadd.f32 %v290, %v300
      %v303 = vadd.f32 %v291, %v300
      %v304 = vadd.f32 %v292, %v300
      %v305 = vadd.f32 %v293, %v300
      %v306 = vadd.f32 %v294, %v300
      %v307 = vadd.f32 %v295, %v300
      %v308 = vadd.f32 %v296, %v300
      %v309 = vadd.f32 %v297, %v300
      %v310 = vmax.f32 %v302, 0.0
      %v311 = vmax.f32 %v303, 0.0
      %v312 = vmax.f32 %v304, 0.0
      %v313 = vmax.f32 %v305, 0.0
      %v314 = vmax.f32 %v306, 0.0
      %v315 = vmax.f32 %v307, 0.0
      %v316 = vmax.f32 %v308, 0.0
      %v317 = vmax.f32 %v309, 0.0
      %318 = vst [vmem:[#allocation2] sm:$0xf] 0
      %319 = vst [vmem:[#allocation2 + $0x4] sm:$0x1] 0
      %320 = vst [vmem:[#allocation2 + $0x8] sm:$0xf] 0
      %321 = vst [vmem:[#allocation2 + $0xc] sm:$0x1] 0
      %322 = vst [vmem:[#allocation2 + $0x10] sm:$0xf] 0
      %323 = vst [vmem:[#allocation2 + $0x14] sm:$0x1] 0
      %324 = vst [vmem:[#allocation2 + $0x18] sm:$0xf] 0
      %325 = vst [vmem:[#allocation2 + $0x1c] sm:$0x1] 0
      %326 = vst [vmem:[#allocation2 + $0x20] sm:$0xf] 0
      %327 = vst [vmem:[#allocation2 + $0x24] sm:$0x1] 0
      %328 = vst [vmem:[#allocation2 + $0x28] sm:$0xf] 0
      %329 = vst [vmem:[#allocation2 + $0x2c] sm:$0x1] 0
      %330 = vst [vmem:[#allocation2 + $0x30] sm:$0xf] 0
      %331 = vst [vmem:[#allocation2 + $0x34] sm:$0x1] 0
      %332 = vst [vmem:[#allocation2 + $0x38] sm:$0xf] 0
      %333 = vst [vmem:[#allocation2 + $0x3c] sm:$0x1] 0
      %334 = vst [vmem:[#allocation2 + $0x40] sm:$0xf] 0
      %335 = vst [vmem:[#allocation2 + $0x44] sm:$0x1] 0
      %336 = vst [vmem:[#allocation2 + $0x48] sm:$0xf] 0
      %337 = vst [vmem:[#allocation2 + $0x4c] sm:$0x1] 0
      %v338 = vpack.c.bf16 %v310, %v310
      %v339 = vpack.c.bf16 %v311, %v311
      %v340 = vpack.c.bf16 %v312, %v312
      %v341 = vpack.c.bf16 %v313, %v313
      %v342 = vpack.c.bf16 %v314, %v314
      %v343 = vpack.c.bf16 %v315, %v315
      %v344 = vpack.c.bf16 %v316, %v316
      %v345 = vpack.c.bf16 %v317, %v317
      %v347 = vshrl.u32 %v338, 16
      %v349 = vrot.slane %v347, 7
      %v350 = vshll.u32 %v338, 16
      %v352 = vor.u32 %v349, %v350
      %v353 = vrot.slane %v349, 4
      %v355 = vshrl.u32 %v339, 16
      %v357 = vrot.slane %v355, 7
      %v358 = vshll.u32 %v339, 16
      %v360 = vor.u32 %v357, %v358
      %v361 = vrot.slane %v357, 4
      %v363 = vshrl.u32 %v340, 16
      %v365 = vrot.slane %v363, 7
      %v366 = vshll.u32 %v340, 16
      %v368 = vor.u32 %v365, %v366
      %v369 = vrot.slane %v365, 4
      %v371 = vshrl.u32 %v341, 16
      %v373 = vrot.slane %v371, 7
      %v374 = vshll.u32 %v341, 16
      %v376 = vor.u32 %v373, %v374
      %v377 = vrot.slane %v373, 4
      %v379 = vshrl.u32 %v342, 16
      %v381 = vrot.slane %v379, 7
      %v382 = vshll.u32 %v342, 16
      %v384 = vor.u32 %v381, %v382
      %v385 = vrot.slane %v381, 4
      %v387 = vshrl.u32 %v343, 16
      %v389 = vrot.slane %v387, 7
      %v390 = vshll.u32 %v343, 16
      %v392 = vor.u32 %v389, %v390
      %v393 = vrot.slane %v389, 4
      %v395 = vshrl.u32 %v344, 16
      %v397 = vrot.slane %v395, 7
      %v398 = vshll.u32 %v344, 16
      %v400 = vor.u32 %v397, %v398
      %v401 = vrot.slane %v397, 4
      %v403 = vshrl.u32 %v345, 16
      %v405 = vrot.slane %v403, 7
      %v406 = vshll.u32 %v345, 16
      %v408 = vor.u32 %v405, %v406
      %v409 = vrot.slane %v405, 4
      %s426 = scalar_lea.vmem [#allocation2], 8
      %vm427 = vcmask 1043456
      %vm428 = vsmask.f32 7938
      %vm429 = vmand %vm427, %vm428
      %v430 = vld [vmem:[%s426] sm:$0xf]
      %v431 = vsel %vm429, %v352, %v430
      %432 = vst [vmem:[%s426] sm:$0xf] %v431
      %vm433 = vcmask 1040384
      %vm434 = vsmask.f32 256
      %vm435 = vmand %vm433, %vm434
      %v436 = vld [vmem:[%s426 + $0x4] sm:$0x1]
      %v437 = vsel %vm435, %v353, %v436
      %438 = vst [vmem:[%s426 + $0x4] sm:$0x1] %v437
      %v439 = vld [vmem:[%s426 + $0x8] sm:$0xf]
      %v440 = vsel %vm429, %v360, %v439
      %441 = vst [vmem:[%s426 + $0x8] sm:$0xf] %v440
      %v442 = vld [vmem:[%s426 + $0xc] sm:$0x1]
      %v443 = vsel %vm435, %v361, %v442
      %444 = vst [vmem:[%s426 + $0xc] sm:$0x1] %v443
      %v445 = vld [vmem:[%s426 + $0x10] sm:$0xf]
      %v446 = vsel %vm429, %v368, %v445
      %447 = vst [vmem:[%s426 + $0x10] sm:$0xf] %v446
      %v448 = vld [vmem:[%s426 + $0x14] sm:$0x1]
      %v449 = vsel %vm435, %v369, %v448
      %450 = vst [vmem:[%s426 + $0x14] sm:$0x1] %v449
      %v451 = vld [vmem:[%s426 + $0x18] sm:$0xf]
      %v452 = vsel %vm429, %v376, %v451
      %453 = vst [vmem:[%s426 + $0x18] sm:$0xf] %v452
      %v454 = vld [vmem:[%s426 + $0x1c] sm:$0x1]
      %v455 = vsel %vm435, %v377, %v454
      %456 = vst [vmem:[%s426 + $0x1c] sm:$0x1] %v455
      %v457 = vld [vmem:[%s426 + $0x20] sm:$0xf]
      %v458 = vsel %vm429, %v384, %v457
      %459 = vst [vmem:[%s426 + $0x20] sm:$0xf] %v458
      %v460 = vld [vmem:[%s426 + $0x24] sm:$0x1]
      %v461 = vsel %vm435, %v385, %v460
      %462 = vst [vmem:[%s426 + $0x24] sm:$0x1] %v461
      %v463 = vld [vmem:[%s426 + $0x28] sm:$0xf]
      %v464 = vsel %vm429, %v392, %v463
      %465 = vst [vmem:[%s426 + $0x28] sm:$0xf] %v464
      %v466 = vld [vmem:[%s426 + $0x2c] sm:$0x1]
      %v467 = vsel %vm435, %v393, %v466
      %468 = vst [vmem:[%s426 + $0x2c] sm:$0x1] %v467
      %v469 = vld [vmem:[%s426 + $0x30] sm:$0xf]
      %v470 = vsel %vm429, %v400, %v469
      %471 = vst [vmem:[%s426 + $0x30] sm:$0xf] %v470
      %v472 = vld [vmem:[%s426 + $0x34] sm:$0x1]
      %v473 = vsel %vm435, %v401, %v472
      %474 = vst [vmem:[%s426 + $0x34] sm:$0x1] %v473
      %v475 = vld [vmem:[%s426 + $0x38] sm:$0xf]
      %v476 = vsel %vm429, %v408, %v475
      %477 = vst [vmem:[%s426 + $0x38] sm:$0xf] %v476
      %v478 = vld [vmem:[%s426 + $0x3c] sm:$0x1]
      %v479 = vsel %vm435, %v409, %v478
      %480 = vst [vmem:[%s426 + $0x3c] sm:$0x1] %v479
      %v481 = vld [vmem:[#allocation2] sm:$0xf]
      %v482 = vld [vmem:[#allocation2 + $0x8] sm:$0xf]
      %v483 = vld [vmem:[#allocation2 + $0x10] sm:$0xf]
      %v484 = vld [vmem:[#allocation2 + $0x18] sm:$0xf]
      %v485 = vld [vmem:[#allocation2 + $0x20] sm:$0xf]
      %v486 = vld [vmem:[#allocation2 + $0x28] sm:$0xf]
      %v487 = vld [vmem:[#allocation2 + $0x30] sm:$0xf]
      %v488 = vld [vmem:[#allocation2 + $0x38] sm:$0xf]
      %v489 = vld [vmem:[#allocation2 + $0x4] sm:$0x1]
      %v490 = vld [vmem:[#allocation2 + $0xc] sm:$0x1]
      %v491 = vld [vmem:[#allocation2 + $0x14] sm:$0x1]
      %v492 = vld [vmem:[#allocation2 + $0x1c] sm:$0x1]
      %v493 = vld [vmem:[#allocation2 + $0x24] sm:$0x1]
      %v494 = vld [vmem:[#allocation2 + $0x2c] sm:$0x1]
      %v495 = vld [vmem:[#allocation2 + $0x34] sm:$0x1]
      %v496 = vld [vmem:[#allocation2 + $0x3c] sm:$0x1]
      %v497 = vld [vmem:[#allocation2] sm:$0xe]
      %v498 = vld [vmem:[#allocation2 + $0x8] sm:$0xe]
      %v499 = vld [vmem:[#allocation2 + $0x10] sm:$0xe]
      %v500 = vld [vmem:[#allocation2 + $0x18] sm:$0xe]
      %v501 = vld [vmem:[#allocation2 + $0x20] sm:$0xe]
      %v502 = vld [vmem:[#allocation2 + $0x28] sm:$0xe]
      %v503 = vld [vmem:[#allocation2 + $0x30] sm:$0xe]
      %v504 = vld [vmem:[#allocation2 + $0x38] sm:$0xe]
      %v521 = vunpack.c.l.b16 %v481
      %v522 = vunpack.c.l.b16 %v489
      %v523 = vunpack.c.l.b16 %v482
      %v524 = vunpack.c.l.b16 %v490
      %v525 = vunpack.c.l.b16 %v483
      %v526 = vunpack.c.l.b16 %v491
      %v527 = vunpack.c.l.b16 %v484
      %v528 = vunpack.c.l.b16 %v492
      %v529 = vunpack.c.l.b16 %v485
      %v530 = vunpack.c.l.b16 %v493
      %v531 = vunpack.c.l.b16 %v486
      %v532 = vunpack.c.l.b16 %v494
      %v533 = vunpack.c.l.b16 %v487
      %v534 = vunpack.c.l.b16 %v495
      %v535 = vunpack.c.l.b16 %v488
      %v536 = vunpack.c.l.b16 %v496
      %v537 = vpack.c.b16 %v522, %v521
      %v538 = vpack.c.b16 %v524, %v523
      %v539 = vpack.c.b16 %v526, %v525
      %v540 = vpack.c.b16 %v528, %v527
      %v541 = vpack.c.b16 %v530, %v529
      %v542 = vpack.c.b16 %v532, %v531
      %v543 = vpack.c.b16 %v534, %v533
      %v544 = vpack.c.b16 %v536, %v535
      %v546 = vshrl.u32 %v537, 16
      %v548 = vshll.u32 %v537, 16
      %v550 = vrot.slane %v548, 1
      %v551 = vor.u32 %v546, %v550
      %v553 = vshrl.u32 %v538, 16
      %v555 = vshll.u32 %v538, 16
      %v557 = vrot.slane %v555, 1
      %v558 = vor.u32 %v553, %v557
      %v560 = vshrl.u32 %v539, 16
      %v562 = vshll.u32 %v539, 16
      %v564 = vrot.slane %v562, 1
      %v565 = vor.u32 %v560, %v564
      %v567 = vshrl.u32 %v540, 16
      %v569 = vshll.u32 %v540, 16
      %v571 = vrot.slane %v569, 1
      %v572 = vor.u32 %v567, %v571
      %v574 = vshrl.u32 %v541, 16
      %v576 = vshll.u32 %v541, 16
      %v578 = vrot.slane %v576, 1
      %v579 = vor.u32 %v574, %v578
      %v581 = vshrl.u32 %v542, 16
      %v583 = vshll.u32 %v542, 16
      %v585 = vrot.slane %v583, 1
      %v586 = vor.u32 %v581, %v585
      %v588 = vshrl.u32 %v543, 16
      %v590 = vshll.u32 %v543, 16
      %v592 = vrot.slane %v590, 1
      %v593 = vor.u32 %v588, %v592
      %v595 = vshrl.u32 %v544, 16
      %v597 = vshll.u32 %v544, 16
      %v599 = vrot.slane %v597, 1
      %v600 = vor.u32 %v595, %v599
      %v609 = vunpack.c.l.b16 %v497
      %v610 = vunpack.c.l.b16 %v498
      %v611 = vunpack.c.l.b16 %v499
      %v612 = vunpack.c.l.b16 %v500
      %v613 = vunpack.c.l.b16 %v501
      %v614 = vunpack.c.l.b16 %v502
      %v615 = vunpack.c.l.b16 %v503
      %v616 = vunpack.c.l.b16 %v504
      %v617 = vpack.c.b16 %v522, %v609
      %v618 = vpack.c.b16 %v524, %v610
      %v619 = vpack.c.b16 %v526, %v611
      %v620 = vpack.c.b16 %v528, %v612
      %v621 = vpack.c.b16 %v530, %v613
      %v622 = vpack.c.b16 %v532, %v614
      %v623 = vpack.c.b16 %v534, %v615
      %v624 = vpack.c.b16 %v536, %v616
      %v625 = vrot.slane %v617, 1
      %v626 = vrot.slane %v618, 1
      %v627 = vrot.slane %v619, 1
      %v628 = vrot.slane %v620, 1
      %v629 = vrot.slane %v621, 1
      %v630 = vrot.slane %v622, 1
      %v631 = vrot.slane %v623, 1
      %v632 = vrot.slane %v624, 1
      %v633 = vunpack.c.l.b16 %v551
      %v634 = vunpack.c.l.b16 %v625
      %v635 = vunpack.c.l.b16 %v558
      %v636 = vunpack.c.l.b16 %v626
      %v637 = vunpack.c.l.b16 %v565
      %v638 = vunpack.c.l.b16 %v627
      %v639 = vunpack.c.l.b16 %v572
      %v640 = vunpack.c.l.b16 %v628
      %v641 = vunpack.c.l.b16 %v579
      %v642 = vunpack.c.l.b16 %v629
      %v643 = vunpack.c.l.b16 %v586
      %v644 = vunpack.c.l.b16 %v630
      %v645 = vunpack.c.l.b16 %v593
      %v646 = vunpack.c.l.b16 %v631
      %v647 = vunpack.c.l.b16 %v600
      %v648 = vunpack.c.l.b16 %v632
      %v649 = vld [vmem:[%s3] sm:$0xf]
      %v650 = vld [vmem:[%s3 + $0x4] sm:$0xf]
      %v651 = vld [vmem:[%s3 + $0x8] sm:$0xf]
      %v652 = vld [vmem:[%s3 + $0xc] sm:$0xf]
      %v653 = vld [vmem:[%s3 + $0x10] sm:$0xf]
      %v654 = vld [vmem:[%s3 + $0x14] sm:$0xf]
      %v655 = vld [vmem:[%s3 + $0x18] sm:$0xf]
      %v656 = vld [vmem:[%s3 + $0x1c] sm:$0xf]
      %v657 = vld [vmem:[%s3 + $0x20] sm:$0xf]
      %v658 = vld [vmem:[%s3 + $0x24] sm:$0xf]
      %v659 = vld [vmem:[%s3 + $0x28] sm:$0xf]
      %v660 = vld [vmem:[%s3 + $0x2c] sm:$0xf]
      %v661 = vld [vmem:[%s3 + $0x30] sm:$0xf]
      %v662 = vld [vmem:[%s3 + $0x34] sm:$0xf]
      %v663 = vld [vmem:[%s3 + $0x38] sm:$0xf]
      %v664 = vld [vmem:[%s3 + $0x3c] sm:$0xf]
      %v665 = vld [vmem:[%s3 + $0x40] sm:$0xf]
      %v666 = vld [vmem:[%s3 + $0x44] sm:$0xf]
      %v667 = vld [vmem:[%s3 + $0x48] sm:$0xf]
      %v668 = vld [vmem:[%s3 + $0x4c] sm:$0xf]
      %v669 = vld [vmem:[%s3 + $0x50] sm:$0xf]
      %v670 = vld [vmem:[%s3 + $0x54] sm:$0xf]
      %v671 = vld [vmem:[%s3 + $0x58] sm:$0xf]
      %v672 = vld [vmem:[%s3 + $0x5c] sm:$0xf]
      %v673 = vld [vmem:[%s3 + $0x60] sm:$0xf]
      %v674 = vld [vmem:[%s3 + $0x64] sm:$0xf]
      %v675 = vld [vmem:[%s3 + $0x68] sm:$0xf]
      %v676 = vld [vmem:[%s3 + $0x6c] sm:$0xf]
      %v677 = vld [vmem:[%s3 + $0x70] sm:$0xf]
      %v678 = vld [vmem:[%s3 + $0x74] sm:$0xf]
      %v679 = vld [vmem:[%s3 + $0x78] sm:$0xf]
      %v680 = vld [vmem:[%s3 + $0x7c] sm:$0xf]
      %v681 = vld [vmem:[%s3 + $0x80] sm:$0xf]
      %v682 = vld [vmem:[%s3 + $0x84] sm:$0xf]
      %v683 = vld [vmem:[%s3 + $0x88] sm:$0xf]
      %v684 = vld [vmem:[%s3 + $0x8c] sm:$0xf]
      %v685 = vld [vmem:[%s3 + $0x90] sm:$0xf]
      %v686 = vld [vmem:[%s3 + $0x94] sm:$0xf]
      %v687 = vld [vmem:[%s3 + $0x98] sm:$0xf]
      %v688 = vld [vmem:[%s3 + $0x9c] sm:$0xf]
      %v689 = vld [vmem:[%s3 + $0xa0] sm:$0xf]
      %v690 = vld [vmem:[%s3 + $0xa4] sm:$0xf]
      %v691 = vld [vmem:[%s3 + $0xa8] sm:$0xf]
      %v692 = vld [vmem:[%s3 + $0xac] sm:$0xf]
      %v693 = vld [vmem:[%s3 + $0xb0] sm:$0xf]
      %v694 = vld [vmem:[%s3 + $0xb4] sm:$0xf]
      %v695 = vld [vmem:[%s3 + $0xb8] sm:$0xf]
      %v696 = vld [vmem:[%s3 + $0xbc] sm:$0xf]
      %v697 = vpack.c.b16 %v523, %v521
      %v698 = vpack.c.b16 %v635, %v633
      %v699 = vpack.c.b16 %v636, %v634
      %v700 = vpack.c.b16 %v527, %v525
      %v701 = vpack.c.b16 %v639, %v637
      %v702 = vpack.c.b16 %v640, %v638
      %v703 = vpack.c.b16 %v531, %v529
      %v704 = vpack.c.b16 %v643, %v641
      %v705 = vpack.c.b16 %v644, %v642
      %v706 = vpack.c.b16 %v535, %v533
      %v707 = vpack.c.b16 %v647, %v645
      %v708 = vpack.c.b16 %v648, %v646
      %v769 = vunpack.c.l.b16 %v649
      %v770 = vunpack.c.l.b16 %v650
      %v771 = vunpack.c.l.b16 %v651
      %v772 = vunpack.c.l.b16 %v652
      %v773 = vunpack.c.l.b16 %v653
      %v774 = vunpack.c.l.b16 %v654
      %v775 = vunpack.c.l.b16 %v655
      %v776 = vunpack.c.l.b16 %v656
      %v777 = vunpack.c.l.b16 %v657
      %v778 = vunpack.c.l.b16 %v658
      %v779 = vunpack.c.l.b16 %v659
      %v780 = vunpack.c.l.b16 %v660
      %v781 = vunpack.c.l.b16 %v661
      %v782 = vunpack.c.l.b16 %v662
      %v783 = vunpack.c.l.b16 %v663
      %v784 = vunpack.c.l.b16 %v664
      %v785 = vunpack.c.l.b16 %v665
      %v786 = vunpack.c.l.b16 %v666
      %v787 = vunpack.c.l.b16 %v667
      %v788 = vunpack.c.l.b16 %v668
      %v789 = vunpack.c.l.b16 %v669
      %v790 = vunpack.c.l.b16 %v670
      %v791 = vunpack.c.l.b16 %v671
      %v792 = vunpack.c.l.b16 %v672
      %v793 = vunpack.c.l.b16 %v673
      %v794 = vunpack.c.l.b16 %v674
      %v795 = vunpack.c.l.b16 %v675
      %v796 = vunpack.c.l.b16 %v676
      %v797 = vunpack.c.l.b16 %v677
      %v798 = vunpack.c.l.b16 %v678
      %v799 = vunpack.c.l.b16 %v679
      %v800 = vunpack.c.l.b16 %v680
      %v801 = vunpack.c.l.b16 %v681
      %v802 = vunpack.c.l.b16 %v682
      %v803 = vunpack.c.l.b16 %v683
      %v804 = vunpack.c.l.b16 %v684
      %v805 = vunpack.c.l.b16 %v685
      %v806 = vunpack.c.l.b16 %v686
      %v807 = vunpack.c.l.b16 %v687
      %v808 = vunpack.c.l.b16 %v688
      %v809 = vunpack.c.l.b16 %v689
      %v810 = vunpack.c.l.b16 %v690
      %v811 = vunpack.c.l.b16 %v691
      %v812 = vunpack.c.l.b16 %v692
      %v813 = vunpack.c.l.b16 %v693
      %v814 = vunpack.c.l.b16 %v694
      %v815 = vunpack.c.l.b16 %v695
      %v816 = vunpack.c.l.b16 %v696
      %v817 = vpack.c.b16 %v770, %v769
      %v818 = vpack.c.b16 %v772, %v771
      %v819 = vpack.c.b16 %v774, %v773
      %v820 = vpack.c.b16 %v776, %v775
      %v821 = vpack.c.b16 %v778, %v777
      %v822 = vpack.c.b16 %v780, %v779
      %v823 = vpack.c.b16 %v782, %v781
      %v824 = vpack.c.b16 %v784, %v783
      %v825 = vpack.c.b16 %v786, %v785
      %v826 = vpack.c.b16 %v788, %v787
      %v827 = vpack.c.b16 %v790, %v789
      %v828 = vpack.c.b16 %v792, %v791
      %v829 = vpack.c.b16 %v794, %v793
      %v830 = vpack.c.b16 %v796, %v795
      %v831 = vpack.c.b16 %v798, %v797
      %v832 = vpack.c.b16 %v800, %v799
      %v833 = vpack.c.b16 %v802, %v801
      %v834 = vpack.c.b16 %v804, %v803
      %v835 = vpack.c.b16 %v806, %v805
      %v836 = vpack.c.b16 %v808, %v807
      %v837 = vpack.c.b16 %v810, %v809
      %v838 = vpack.c.b16 %v812, %v811
      %v839 = vpack.c.b16 %v814, %v813
      %v840 = vpack.c.b16 %v816, %v815
      %865 = vmatpush.bf16.msra.mxu0 %v824
      %866 = vmatpush.bf16.msra.mxu0 %v823
      %867 = vmatpush.bf16.msra.mxu0 %v822
      %868 = vmatpush.bf16.msra.mxu0 %v821
      %869 = vmatpush.bf16.msra.mxu0 %v820
      %870 = vmatpush.bf16.msra.mxu0 %v819
      %871 = vmatpush.bf16.msra.mxu0 %v818
      %872 = vmatpush.bf16.msra.mxu0 %v817
      %873 = vmatmul.bf16.gmra.mxu0 %v697
      %v874 = vpop.f32.mrf.mxu0
      %v875 = vadd.f32 0.0, %v874
      %v876 = vpop.f32.mrf.mxu0
      %v877 = vadd.f32 0.0, %v876
      %878 = vmatmul.bf16.gmra.mxu0 %v700
      %v879 = vpop.f32.mrf.mxu0
      %v880 = vadd.f32 0.0, %v879
      %v881 = vpop.f32.mrf.mxu0
      %v882 = vadd.f32 0.0, %v881
      %883 = vmatmul.bf16.gmra.mxu0 %v703
      %v884 = vpop.f32.mrf.mxu0
      %v885 = vadd.f32 0.0, %v884
      %v886 = vpop.f32.mrf.mxu0
      %v887 = vadd.f32 0.0, %v886
      %888 = vmatmul.bf16.gmra.mxu0 %v706
      %v889 = vpop.f32.mrf.mxu0
      %v890 = vadd.f32 0.0, %v889
      %v891 = vpop.f32.mrf.mxu0
      %v892 = vadd.f32 0.0, %v891
      %893 = vdwg.mxu0
      %894 = vmatpush.bf16.msra.mxu0 %v832
      %895 = vmatpush.bf16.msra.mxu0 %v831
      %896 = vmatpush.bf16.msra.mxu0 %v830
      %897 = vmatpush.bf16.msra.mxu0 %v829
      %898 = vmatpush.bf16.msra.mxu0 %v828
      %899 = vmatpush.bf16.msra.mxu0 %v827
      %900 = vmatpush.bf16.msra.mxu0 %v826
      %901 = vmatpush.bf16.msra.mxu0 %v825
      %902 = vmatmul.bf16.gmra.mxu0 %v698
      %v903 = vpop.f32.mrf.mxu0
      %v904 = vadd.f32 %v875, %v903
      %v905 = vpop.f32.mrf.mxu0
      %v906 = vadd.f32 %v877, %v905
      %907 = vmatmul.bf16.gmra.mxu0 %v701
      %v908 = vpop.f32.mrf.mxu0
      %v909 = vadd.f32 %v880, %v908
      %v910 = vpop.f32.mrf.mxu0
      %v911 = vadd.f32 %v882, %v910
      %912 = vmatmul.bf16.gmra.mxu0 %v704
      %v913 = vpop.f32.mrf.mxu0
      %v914 = vadd.f32 %v885, %v913
      %v915 = vpop.f32.mrf.mxu0
      %v916 = vadd.f32 %v887, %v915
      %917 = vmatmul.bf16.gmra.mxu0 %v707
      %v918 = vpop.f32.mrf.mxu0
      %v919 = vadd.f32 %v890, %v918
      %v920 = vpop.f32.mrf.mxu0
      %v921 = vadd.f32 %v892, %v920
      %922 = vdwg.mxu0
      %923 = vmatpush.bf16.msra.mxu0 %v840
      %924 = vmatpush.bf16.msra.mxu0 %v839
      %925 = vmatpush.bf16.msra.mxu0 %v838
      %926 = vmatpush.bf16.msra.mxu0 %v837
      %927 = vmatpush.bf16.msra.mxu0 %v836
      %928 = vmatpush.bf16.msra.mxu0 %v835
      %929 = vmatpush.bf16.msra.mxu0 %v834
      %930 = vmatpush.bf16.msra.mxu0 %v833
      %931 = vmatmul.bf16.gmra.mxu0 %v699
      %v932 = vpop.f32.mrf.mxu0
      %v933 = vadd.f32 %v904, %v932
      %v934 = vpop.f32.mrf.mxu0
      %v935 = vadd.f32 %v906, %v934
      %936 = vmatmul.bf16.gmra.mxu0 %v702
      %v937 = vpop.f32.mrf.mxu0
      %v938 = vadd.f32 %v909, %v937
      %v939 = vpop.f32.mrf.mxu0
      %v940 = vadd.f32 %v911, %v939
      %941 = vmatmul.bf16.gmra.mxu0 %v705
      %v942 = vpop.f32.mrf.mxu0
      %v943 = vadd.f32 %v914, %v942
      %v944 = vpop.f32.mrf.mxu0
      %v945 = vadd.f32 %v916, %v944
      %946 = vmatmul.bf16.gmra.mxu0 %v708
      %v947 = vpop.f32.mrf.mxu0
      %v948 = vadd.f32 %v919, %v947
      %v949 = vpop.f32.mrf.mxu0
      %v950 = vadd.f32 %v921, %v949
      %951 = vdwg.mxu0
      %952 = vst [vmem:[#allocation3] sm:$0xff] %v933
      %953 = vst [vmem:[#allocation3 + $0x8] sm:$0xff] %v935
      %954 = vst [vmem:[#allocation3 + $0x10] sm:$0xff] %v938
      %955 = vst [vmem:[#allocation3 + $0x18] sm:$0xff] %v940
      %956 = vst [vmem:[#allocation3 + $0x20] sm:$0xff] %v943
      %957 = vst [vmem:[#allocation3 + $0x28] sm:$0xff] %v945
      %958 = vst [vmem:[#allocation3 + $0x30] sm:$0xff] %v948
      %959 = vst [vmem:[#allocation3 + $0x38] sm:$0xff] %v950
      %v960 = vld [vmem:[%s426] sm:$0xf]
      %v961 = vld [vmem:[%s426 + $0x8] sm:$0xf]
      %v962 = vld [vmem:[%s426 + $0x10] sm:$0xf]
      %v963 = vld [vmem:[%s426 + $0x18] sm:$0xf]
      %v964 = vld [vmem:[%s426 + $0x20] sm:$0xf]
      %v965 = vld [vmem:[%s426 + $0x28] sm:$0xf]
      %v966 = vld [vmem:[%s426 + $0x30] sm:$0xf]
      %v967 = vld [vmem:[%s426 + $0x38] sm:$0xf]
      %v968 = vld [vmem:[%s426 + $0x4] sm:$0x1]
      %v969 = vld [vmem:[%s426 + $0xc] sm:$0x1]
      %v970 = vld [vmem:[%s426 + $0x14] sm:$0x1]
      %v971 = vld [vmem:[%s426 + $0x1c] sm:$0x1]
      %v972 = vld [vmem:[%s426 + $0x24] sm:$0x1]
      %v973 = vld [vmem:[%s426 + $0x2c] sm:$0x1]
      %v974 = vld [vmem:[%s426 + $0x34] sm:$0x1]
      %v975 = vld [vmem:[%s426 + $0x3c] sm:$0x1]
      %v976 = vld [vmem:[%s426] sm:$0xe]
      %v977 = vld [vmem:[%s426 + $0x8] sm:$0xe]
      %v978 = vld [vmem:[%s426 + $0x10] sm:$0xe]
      %v979 = vld [vmem:[%s426 + $0x18] sm:$0xe]
      %v980 = vld [vmem:[%s426 + $0x20] sm:$0xe]
      %v981 = vld [vmem:[%s426 + $0x28] sm:$0xe]
      %v982 = vld [vmem:[%s426 + $0x30] sm:$0xe]
      %v983 = vld [vmem:[%s426 + $0x38] sm:$0xe]
      %v1000 = vunpack.c.l.b16 %v960
      %v1001 = vunpack.c.l.b16 %v968
      %v1002 = vunpack.c.l.b16 %v961
      %v1003 = vunpack.c.l.b16 %v969
      %v1004 = vunpack.c.l.b16 %v962
      %v1005 = vunpack.c.l.b16 %v970
      %v1006 = vunpack.c.l.b16 %v963
      %v1007 = vunpack.c.l.b16 %v971
      %v1008 = vunpack.c.l.b16 %v964
      %v1009 = vunpack.c.l.b16 %v972
      %v1010 = vunpack.c.l.b16 %v965
      %v1011 = vunpack.c.l.b16 %v973
      %v1012 = vunpack.c.l.b16 %v966
      %v1013 = vunpack.c.l.b16 %v974
      %v1014 = vunpack.c.l.b16 %v967
      %v1015 = vunpack.c.l.b16 %v975
      %v1016 = vpack.c.b16 %v1001, %v1000
      %v1017 = vpack.c.b16 %v1003, %v1002
      %v1018 = vpack.c.b16 %v1005, %v1004
      %v1019 = vpack.c.b16 %v1007, %v1006
      %v1020 = vpack.c.b16 %v1009, %v1008
      %v1021 = vpack.c.b16 %v1011, %v1010
      %v1022 = vpack.c.b16 %v1013, %v1012
      %v1023 = vpack.c.b16 %v1015, %v1014
      %v1025 = vshrl.u32 %v1016, 16
      %v1027 = vshll.u32 %v1016, 16
      %v1029 = vrot.slane %v1027, 1
      %v1030 = vor.u32 %v1025, %v1029
      %v1032 = vshrl.u32 %v1017, 16
      %v1034 = vshll.u32 %v1017, 16
      %v1036 = vrot.slane %v1034, 1
      %v1037 = vor.u32 %v1032, %v1036
      %v1039 = vshrl.u32 %v1018, 16
      %v1041 = vshll.u32 %v1018, 16
      %v1043 = vrot.slane %v1041, 1
      %v1044 = vor.u32 %v1039, %v1043
      %v1046 = vshrl.u32 %v1019, 16
      %v1048 = vshll.u32 %v1019, 16
      %v1050 = vrot.slane %v1048, 1
      %v1051 = vor.u32 %v1046, %v1050
      %v1053 = vshrl.u32 %v1020, 16
      %v1055 = vshll.u32 %v1020, 16
      %v1057 = vrot.slane %v1055, 1
      %v1058 = vor.u32 %v1053, %v1057
      %v1060 = vshrl.u32 %v1021, 16
      %v1062 = vshll.u32 %v1021, 16
      %v1064 = vrot.slane %v1062, 1
      %v1065 = vor.u32 %v1060, %v1064
      %v1067 = vshrl.u32 %v1022, 16
      %v1069 = vshll.u32 %v1022, 16
      %v1071 = vrot.slane %v1069, 1
      %v1072 = vor.u32 %v1067, %v1071
      %v1074 = vshrl.u32 %v1023, 16
      %v1076 = vshll.u32 %v1023, 16
      %v1078 = vrot.slane %v1076, 1
      %v1079 = vor.u32 %v1074, %v1078
      %v1088 = vunpack.c.l.b16 %v976
      %v1089 = vunpack.c.l.b16 %v977
      %v1090 = vunpack.c.l.b16 %v978
      %v1091 = vunpack.c.l.b16 %v979
      %v1092 = vunpack.c.l.b16 %v980
      %v1093 = vunpack.c.l.b16 %v981
      %v1094 = vunpack.c.l.b16 %v982
      %v1095 = vunpack.c.l.b16 %v983
      %v1096 = vpack.c.b16 %v1001, %v1088
      %v1097 = vpack.c.b16 %v1003, %v1089
      %v1098 = vpack.c.b16 %v1005, %v1090
      %v1099 = vpack.c.b16 %v1007, %v1091
      %v1100 = vpack.c.b16 %v1009, %v1092
      %v1101 = vpack.c.b16 %v1011, %v1093
      %v1102 = vpack.c.b16 %v1013, %v1094
      %v1103 = vpack.c.b16 %v1015, %v1095
      %v1104 = vrot.slane %v1096, 1
      %v1105 = vrot.slane %v1097, 1
      %v1106 = vrot.slane %v1098, 1
      %v1107 = vrot.slane %v1099, 1
      %v1108 = vrot.slane %v1100, 1
      %v1109 = vrot.slane %v1101, 1
      %v1110 = vrot.slane %v1102, 1
      %v1111 = vrot.slane %v1103, 1
      %v1112 = vunpack.c.l.b16 %v1030
      %v1113 = vunpack.c.l.b16 %v1104
      %v1114 = vunpack.c.l.b16 %v1037
      %v1115 = vunpack.c.l.b16 %v1105
      %v1116 = vunpack.c.l.b16 %v1044
      %v1117 = vunpack.c.l.b16 %v1106
      %v1118 = vunpack.c.l.b16 %v1051
      %v1119 = vunpack.c.l.b16 %v1107
      %v1120 = vunpack.c.l.b16 %v1058
      %v1121 = vunpack.c.l.b16 %v1108
      %v1122 = vunpack.c.l.b16 %v1065
      %v1123 = vunpack.c.l.b16 %v1109
      %v1124 = vunpack.c.l.b16 %v1072
      %v1125 = vunpack.c.l.b16 %v1110
      %v1126 = vunpack.c.l.b16 %v1079
      %v1127 = vunpack.c.l.b16 %v1111
      %s1128 = scalar_lea.vmem %s3, 192
      %v1129 = vld [vmem:[%s1128] sm:$0xf]
      %v1130 = vld [vmem:[%s1128 + $0x4] sm:$0xf]
      %v1131 = vld [vmem:[%s1128 + $0x8] sm:$0xf]
      %v1132 = vld [vmem:[%s1128 + $0xc] sm:$0xf]
      %v1133 = vld [vmem:[%s1128 + $0x10] sm:$0xf]
      %v1134 = vld [vmem:[%s1128 + $0x14] sm:$0xf]
      %v1135 = vld [vmem:[%s1128 + $0x18] sm:$0xf]
      %v1136 = vld [vmem:[%s1128 + $0x1c] sm:$0xf]
      %v1137 = vld [vmem:[%s1128 + $0x20] sm:$0xf]
      %v1138 = vld [vmem:[%s1128 + $0x24] sm:$0xf]
      %v1139 = vld [vmem:[%s1128 + $0x28] sm:$0xf]
      %v1140 = vld [vmem:[%s1128 + $0x2c] sm:$0xf]
      %v1141 = vld [vmem:[%s1128 + $0x30] sm:$0xf]
      %v1142 = vld [vmem:[%s1128 + $0x34] sm:$0xf]
      %v1143 = vld [vmem:[%s1128 + $0x38] sm:$0xf]
      %v1144 = vld [vmem:[%s1128 + $0x3c] sm:$0xf]
      %v1145 = vld [vmem:[%s1128 + $0x40] sm:$0xf]
      %v1146 = vld [vmem:[%s1128 + $0x44] sm:$0xf]
      %v1147 = vld [vmem:[%s1128 + $0x48] sm:$0xf]
      %v1148 = vld [vmem:[%s1128 + $0x4c] sm:$0xf]
      %v1149 = vld [vmem:[%s1128 + $0x50] sm:$0xf]
      %v1150 = vld [vmem:[%s1128 + $0x54] sm:$0xf]
      %v1151 = vld [vmem:[%s1128 + $0x58] sm:$0xf]
      %v1152 = vld [vmem:[%s1128 + $0x5c] sm:$0xf]
      %v1153 = vld [vmem:[%s1128 + $0x60] sm:$0xf]
      %v1154 = vld [vmem:[%s1128 + $0x64] sm:$0xf]
      %v1155 = vld [vmem:[%s1128 + $0x68] sm:$0xf]
      %v1156 = vld [vmem:[%s1128 + $0x6c] sm:$0xf]
      %v1157 = vld [vmem:[%s1128 + $0x70] sm:$0xf]
      %v1158 = vld [vmem:[%s1128 + $0x74] sm:$0xf]
      %v1159 = vld [vmem:[%s1128 + $0x78] sm:$0xf]
      %v1160 = vld [vmem:[%s1128 + $0x7c] sm:$0xf]
      %v1161 = vld [vmem:[%s1128 + $0x80] sm:$0xf]
      %v1162 = vld [vmem:[%s1128 + $0x84] sm:$0xf]
      %v1163 = vld [vmem:[%s1128 + $0x88] sm:$0xf]
      %v1164 = vld [vmem:[%s1128 + $0x8c] sm:$0xf]
      %v1165 = vld [vmem:[%s1128 + $0x90] sm:$0xf]
      %v1166 = vld [vmem:[%s1128 + $0x94] sm:$0xf]
      %v1167 = vld [vmem:[%s1128 + $0x98] sm:$0xf]
      %v1168 = vld [vmem:[%s1128 + $0x9c] sm:$0xf]
      %v1169 = vld [vmem:[%s1128 + $0xa0] sm:$0xf]
      %v1170 = vld [vmem:[%s1128 + $0xa4] sm:$0xf]
      %v1171 = vld [vmem:[%s1128 + $0xa8] sm:$0xf]
      %v1172 = vld [vmem:[%s1128 + $0xac] sm:$0xf]
      %v1173 = vld [vmem:[%s1128 + $0xb0] sm:$0xf]
      %v1174 = vld [vmem:[%s1128 + $0xb4] sm:$0xf]
      %v1175 = vld [vmem:[%s1128 + $0xb8] sm:$0xf]
      %v1176 = vld [vmem:[%s1128 + $0xbc] sm:$0xf]
      %v1177 = vpack.c.b16 %v1002, %v1000
      %v1178 = vpack.c.b16 %v1114, %v1112
      %v1179 = vpack.c.b16 %v1115, %v1113
      %v1180 = vpack.c.b16 %v1006, %v1004
      %v1181 = vpack.c.b16 %v1118, %v1116
      %v1182 = vpack.c.b16 %v1119, %v1117
      %v1183 = vpack.c.b16 %v1010, %v1008
      %v1184 = vpack.c.b16 %v1122, %v1120
      %v1185 = vpack.c.b16 %v1123, %v1121
      %v1186 = vpack.c.b16 %v1014, %v1012
      %v1187 = vpack.c.b16 %v1126, %v1124
      %v1188 = vpack.c.b16 %v1127, %v1125
      %v1249 = vunpack.c.l.b16 %v1129
      %v1250 = vunpack.c.l.b16 %v1130
      %v1251 = vunpack.c.l.b16 %v1131
      %v1252 = vunpack.c.l.b16 %v1132
      %v1253 = vunpack.c.l.b16 %v1133
      %v1254 = vunpack.c.l.b16 %v1134
      %v1255 = vunpack.c.l.b16 %v1135
      %v1256 = vunpack.c.l.b16 %v1136
      %v1257 = vunpack.c.l.b16 %v1137
      %v1258 = vunpack.c.l.b16 %v1138
      %v1259 = vunpack.c.l.b16 %v1139
      %v1260 = vunpack.c.l.b16 %v1140
      %v1261 = vunpack.c.l.b16 %v1141
      %v1262 = vunpack.c.l.b16 %v1142
      %v1263 = vunpack.c.l.b16 %v1143
      %v1264 = vunpack.c.l.b16 %v1144
      %v1265 = vunpack.c.l.b16 %v1145
      %v1266 = vunpack.c.l.b16 %v1146
      %v1267 = vunpack.c.l.b16 %v1147
      %v1268 = vunpack.c.l.b16 %v1148
      %v1269 = vunpack.c.l.b16 %v1149
      %v1270 = vunpack.c.l.b16 %v1150
      %v1271 = vunpack.c.l.b16 %v1151
      %v1272 = vunpack.c.l.b16 %v1152
      %v1273 = vunpack.c.l.b16 %v1153
      %v1274 = vunpack.c.l.b16 %v1154
      %v1275 = vunpack.c.l.b16 %v1155
      %v1276 = vunpack.c.l.b16 %v1156
      %v1277 = vunpack.c.l.b16 %v1157
      %v1278 = vunpack.c.l.b16 %v1158
      %v1279 = vunpack.c.l.b16 %v1159
      %v1280 = vunpack.c.l.b16 %v1160
      %v1281 = vunpack.c.l.b16 %v1161
      %v1282 = vunpack.c.l.b16 %v1162
      %v1283 = vunpack.c.l.b16 %v1163
      %v1284 = vunpack.c.l.b16 %v1164
      %v1285 = vunpack.c.l.b16 %v1165
      %v1286 = vunpack.c.l.b16 %v1166
      %v1287 = vunpack.c.l.b16 %v1167
      %v1288 = vunpack.c.l.b16 %v1168
      %v1289 = vunpack.c.l.b16 %v1169
      %v1290 = vunpack.c.l.b16 %v1170
      %v1291 = vunpack.c.l.b16 %v1171
      %v1292 = vunpack.c.l.b16 %v1172
      %v1293 = vunpack.c.l.b16 %v1173
      %v1294 = vunpack.c.l.b16 %v1174
      %v1295 = vunpack.c.l.b16 %v1175
      %v1296 = vunpack.c.l.b16 %v1176
      %v1297 = vpack.c.b16 %v1250, %v1249
      %v1298 = vpack.c.b16 %v1252, %v1251
      %v1299 = vpack.c.b16 %v1254, %v1253
      %v1300 = vpack.c.b16 %v1256, %v1255
      %v1301 = vpack.c.b16 %v1258, %v1257
      %v1302 = vpack.c.b16 %v1260, %v1259
      %v1303 = vpack.c.b16 %v1262, %v1261
      %v1304 = vpack.c.b16 %v1264, %v1263
      %v1305 = vpack.c.b16 %v1266, %v1265
      %v1306 = vpack.c.b16 %v1268, %v1267
      %v1307 = vpack.c.b16 %v1270, %v1269
      %v1308 = vpack.c.b16 %v1272, %v1271
      %v1309 = vpack.c.b16 %v1274, %v1273
      %v1310 = vpack.c.b16 %v1276, %v1275
      %v1311 = vpack.c.b16 %v1278, %v1277
      %v1312 = vpack.c.b16 %v1280, %v1279
      %v1313 = vpack.c.b16 %v1282, %v1281
      %v1314 = vpack.c.b16 %v1284, %v1283
      %v1315 = vpack.c.b16 %v1286, %v1285
      %v1316 = vpack.c.b16 %v1288, %v1287
      %v1317 = vpack.c.b16 %v1290, %v1289
      %v1318 = vpack.c.b16 %v1292, %v1291
      %v1319 = vpack.c.b16 %v1294, %v1293
      %v1320 = vpack.c.b16 %v1296, %v1295
      %1345 = vmatpush.bf16.msra.mxu0 %v1304
      %1346 = vmatpush.bf16.msra.mxu0 %v1303
      %1347 = vmatpush.bf16.msra.mxu0 %v1302
      %1348 = vmatpush.bf16.msra.mxu0 %v1301
      %1349 = vmatpush.bf16.msra.mxu0 %v1300
      %1350 = vmatpush.bf16.msra.mxu0 %v1299
      %1351 = vmatpush.bf16.msra.mxu0 %v1298
      %1352 = vmatpush.bf16.msra.mxu0 %v1297
      %1353 = vmatmul.bf16.gmra.mxu0 %v1177
      %v1354 = vpop.f32.mrf.mxu0
      %v1355 = vadd.f32 0.0, %v1354
      %v1356 = vpop.f32.mrf.mxu0
      %v1357 = vadd.f32 0.0, %v1356
      %1358 = vmatmul.bf16.gmra.mxu0 %v1180
      %v1359 = vpop.f32.mrf.mxu0
      %v1360 = vadd.f32 0.0, %v1359
      %v1361 = vpop.f32.mrf.mxu0
      %v1362 = vadd.f32 0.0, %v1361
      %1363 = vmatmul.bf16.gmra.mxu0 %v1183
      %v1364 = vpop.f32.mrf.mxu0
      %v1365 = vadd.f32 0.0, %v1364
      %v1366 = vpop.f32.mrf.mxu0
      %v1367 = vadd.f32 0.0, %v1366
      %1368 = vmatmul.bf16.gmra.mxu0 %v1186
      %v1369 = vpop.f32.mrf.mxu0
      %v1370 = vadd.f32 0.0, %v1369
      %v1371 = vpop.f32.mrf.mxu0
      %v1372 = vadd.f32 0.0, %v1371
      %1373 = vdwg.mxu0
      %1374 = vmatpush.bf16.msra.mxu0 %v1312
      %1375 = vmatpush.bf16.msra.mxu0 %v1311
      %1376 = vmatpush.bf16.msra.mxu0 %v1310
      %1377 = vmatpush.bf16.msra.mxu0 %v1309
      %1378 = vmatpush.bf16.msra.mxu0 %v1308
      %1379 = vmatpush.bf16.msra.mxu0 %v1307
      %1380 = vmatpush.bf16.msra.mxu0 %v1306
      %1381 = vmatpush.bf16.msra.mxu0 %v1305
      %1382 = vmatmul.bf16.gmra.mxu0 %v1178
      %v1383 = vpop.f32.mrf.mxu0
      %v1384 = vadd.f32 %v1355, %v1383
      %v1385 = vpop.f32.mrf.mxu0
      %v1386 = vadd.f32 %v1357, %v1385
      %1387 = vmatmul.bf16.gmra.mxu0 %v1181
      %v1388 = vpop.f32.mrf.mxu0
      %v1389 = vadd.f32 %v1360, %v1388
      %v1390 = vpop.f32.mrf.mxu0
      %v1391 = vadd.f32 %v1362, %v1390
      %1392 = vmatmul.bf16.gmra.mxu0 %v1184
      %v1393 = vpop.f32.mrf.mxu0
      %v1394 = vadd.f32 %v1365, %v1393
      %v1395 = vpop.f32.mrf.mxu0
      %v1396 = vadd.f32 %v1367, %v1395
      %1397 = vmatmul.bf16.gmra.mxu0 %v1187
      %v1398 = vpop.f32.mrf.mxu0
      %v1399 = vadd.f32 %v1370, %v1398
      %v1400 = vpop.f32.mrf.mxu0
      %v1401 = vadd.f32 %v1372, %v1400
      %1402 = vdwg.mxu0
      %1403 = vmatpush.bf16.msra.mxu0 %v1320
      %1404 = vmatpush.bf16.msra.mxu0 %v1319
      %1405 = vmatpush.bf16.msra.mxu0 %v1318
      %1406 = vmatpush.bf16.msra.mxu0 %v1317
      %1407 = vmatpush.bf16.msra.mxu0 %v1316
      %1408 = vmatpush.bf16.msra.mxu0 %v1315
      %1409 = vmatpush.bf16.msra.mxu0 %v1314
      %1410 = vmatpush.bf16.msra.mxu0 %v1313
      %1411 = vmatmul.bf16.gmra.mxu0 %v1179
      %v1412 = vpop.f32.mrf.mxu0
      %v1413 = vadd.f32 %v1384, %v1412
      %v1414 = vpop.f32.mrf.mxu0
      %v1415 = vadd.f32 %v1386, %v1414
      %1416 = vmatmul.bf16.gmra.mxu0 %v1182
      %v1417 = vpop.f32.mrf.mxu0
      %v1418 = vadd.f32 %v1389, %v1417
      %v1419 = vpop.f32.mrf.mxu0
      %v1420 = vadd.f32 %v1391, %v1419
      %1421 = vmatmul.bf16.gmra.mxu0 %v1185
      %v1422 = vpop.f32.mrf.mxu0
      %v1423 = vadd.f32 %v1394, %v1422
      %v1424 = vpop.f32.mrf.mxu0
      %v1425 = vadd.f32 %v1396, %v1424
      %1426 = vmatmul.bf16.gmra.mxu0 %v1188
      %v1427 = vpop.f32.mrf.mxu0
      %v1428 = vadd.f32 %v1399, %v1427
      %v1429 = vpop.f32.mrf.mxu0
      %v1430 = vadd.f32 %v1401, %v1429
      %1431 = vdwg.mxu0
      %v1432 = vld [vmem:[#allocation3] sm:$0xff]
      %v1433 = vld [vmem:[#allocation3 + $0x8] sm:$0xff]
      %v1434 = vld [vmem:[#allocation3 + $0x10] sm:$0xff]
      %v1435 = vld [vmem:[#allocation3 + $0x18] sm:$0xff]
      %v1436 = vld [vmem:[#allocation3 + $0x20] sm:$0xff]
      %v1437 = vld [vmem:[#allocation3 + $0x28] sm:$0xff]
      %v1438 = vld [vmem:[#allocation3 + $0x30] sm:$0xff]
      %v1439 = vld [vmem:[#allocation3 + $0x38] sm:$0xff]
      %v1440 = vadd.f32 %v1432, %v1413
      %v1441 = vadd.f32 %v1433, %v1415
      %v1442 = vadd.f32 %v1434, %v1418
      %v1443 = vadd.f32 %v1435, %v1420
      %v1444 = vadd.f32 %v1436, %v1423
      %v1445 = vadd.f32 %v1437, %v1425
      %v1446 = vadd.f32 %v1438, %v1428
      %v1447 = vadd.f32 %v1439, %v1430
      %1448 = vst [vmem:[#allocation3] sm:$0xff] %v1440
      %1449 = vst [vmem:[#allocation3 + $0x8] sm:$0xff] %v1441
      %1450 = vst [vmem:[#allocation3 + $0x10] sm:$0xff] %v1442
      %1451 = vst [vmem:[#allocation3 + $0x18] sm:$0xff] %v1443
      %1452 = vst [vmem:[#allocation3 + $0x20] sm:$0xff] %v1444
      %1453 = vst [vmem:[#allocation3 + $0x28] sm:$0xff] %v1445
      %1454 = vst [vmem:[#allocation3 + $0x30] sm:$0xff] %v1446
      %1455 = vst [vmem:[#allocation3 + $0x38] sm:$0xff] %v1447
      %s1456 = scalar_lea.vmem [#allocation2], 16
      %v1457 = vld [vmem:[%s1456] sm:$0xf]
      %v1458 = vld [vmem:[%s1456 + $0x8] sm:$0xf]
      %v1459 = vld [vmem:[%s1456 + $0x10] sm:$0xf]
      %v1460 = vld [vmem:[%s1456 + $0x18] sm:$0xf]
      %v1461 = vld [vmem:[%s1456 + $0x20] sm:$0xf]
      %v1462 = vld [vmem:[%s1456 + $0x28] sm:$0xf]
      %v1463 = vld [vmem:[%s1456 + $0x30] sm:$0xf]
      %v1464 = vld [vmem:[%s1456 + $0x38] sm:$0xf]
      %v1465 = vld [vmem:[%s1456 + $0x4] sm:$0x1]
      %v1466 = vld [vmem:[%s1456 + $0xc] sm:$0x1]
      %v1467 = vld [vmem:[%s1456 + $0x14] sm:$0x1]
      %v1468 = vld [vmem:[%s1456 + $0x1c] sm:$0x1]
      %v1469 = vld [vmem:[%s1456 + $0x24] sm:$0x1]
      %v1470 = vld [vmem:[%s1456 + $0x2c] sm:$0x1]
      %v1471 = vld [vmem:[%s1456 + $0x34] sm:$0x1]
      %v1472 = vld [vmem:[%s1456 + $0x3c] sm:$0x1]
      %v1473 = vld [vmem:[%s1456] sm:$0xe]
      %v1474 = vld [vmem:[%s1456 + $0x8] sm:$0xe]
      %v1475 = vld [vmem:[%s1456 + $0x10] sm:$0xe]
      %v1476 = vld [vmem:[%s1456 + $0x18] sm:$0xe]
      %v1477 = vld [vmem:[%s1456 + $0x20] sm:$0xe]
      %v1478 = vld [vmem:[%s1456 + $0x28] sm:$0xe]
      %v1479 = vld [vmem:[%s1456 + $0x30] sm:$0xe]
      %v1480 = vld [vmem:[%s1456 + $0x38] sm:$0xe]
      %v1497 = vunpack.c.l.b16 %v1457
      %v1498 = vunpack.c.l.b16 %v1465
      %v1499 = vunpack.c.l.b16 %v1458
      %v1500 = vunpack.c.l.b16 %v1466
      %v1501 = vunpack.c.l.b16 %v1459
      %v1502 = vunpack.c.l.b16 %v1467
      %v1503 = vunpack.c.l.b16 %v1460
      %v1504 = vunpack.c.l.b16 %v1468
      %v1505 = vunpack.c.l.b16 %v1461
      %v1506 = vunpack.c.l.b16 %v1469
      %v1507 = vunpack.c.l.b16 %v1462
      %v1508 = vunpack.c.l.b16 %v1470
      %v1509 = vunpack.c.l.b16 %v1463
      %v1510 = vunpack.c.l.b16 %v1471
      %v1511 = vunpack.c.l.b16 %v1464
      %v1512 = vunpack.c.l.b16 %v1472
      %v1513 = vpack.c.b16 %v1498, %v1497
      %v1514 = vpack.c.b16 %v1500, %v1499
      %v1515 = vpack.c.b16 %v1502, %v1501
      %v1516 = vpack.c.b16 %v1504, %v1503
      %v1517 = vpack.c.b16 %v1506, %v1505
      %v1518 = vpack.c.b16 %v1508, %v1507
      %v1519 = vpack.c.b16 %v1510, %v1509
      %v1520 = vpack.c.b16 %v1512, %v1511
      %v1522 = vshrl.u32 %v1513, 16
      %v1524 = vshll.u32 %v1513, 16
      %v1526 = vrot.slane %v1524, 1
      %v1527 = vor.u32 %v1522, %v1526
      %v1529 = vshrl.u32 %v1514, 16
      %v1531 = vshll.u32 %v1514, 16
      %v1533 = vrot.slane %v1531, 1
      %v1534 = vor.u32 %v1529, %v1533
      %v1536 = vshrl.u32 %v1515, 16
      %v1538 = vshll.u32 %v1515, 16
      %v1540 = vrot.slane %v1538, 1
      %v1541 = vor.u32 %v1536, %v1540
      %v1543 = vshrl.u32 %v1516, 16
      %v1545 = vshll.u32 %v1516, 16
      %v1547 = vrot.slane %v1545, 1
      %v1548 = vor.u32 %v1543, %v1547
      %v1550 = vshrl.u32 %v1517, 16
      %v1552 = vshll.u32 %v1517, 16
      %v1554 = vrot.slane %v1552, 1
      %v1555 = vor.u32 %v1550, %v1554
      %v1557 = vshrl.u32 %v1518, 16
      %v1559 = vshll.u32 %v1518, 16
      %v1561 = vrot.slane %v1559, 1
      %v1562 = vor.u32 %v1557, %v1561
      %v1564 = vshrl.u32 %v1519, 16
      %v1566 = vshll.u32 %v1519, 16
      %v1568 = vrot.slane %v1566, 1
      %v1569 = vor.u32 %v1564, %v1568
      %v1571 = vshrl.u32 %v1520, 16
      %v1573 = vshll.u32 %v1520, 16
      %v1575 = vrot.slane %v1573, 1
      %v1576 = vor.u32 %v1571, %v1575
      %v1585 = vunpack.c.l.b16 %v1473
      %v1586 = vunpack.c.l.b16 %v1474
      %v1587 = vunpack.c.l.b16 %v1475
      %v1588 = vunpack.c.l.b16 %v1476
      %v1589 = vunpack.c.l.b16 %v1477
      %v1590 = vunpack.c.l.b16 %v1478
      %v1591 = vunpack.c.l.b16 %v1479
      %v1592 = vunpack.c.l.b16 %v1480
      %v1593 = vpack.c.b16 %v1498, %v1585
      %v1594 = vpack.c.b16 %v1500, %v1586
      %v1595 = vpack.c.b16 %v1502, %v1587
      %v1596 = vpack.c.b16 %v1504, %v1588
      %v1597 = vpack.c.b16 %v1506, %v1589
      %v1598 = vpack.c.b16 %v1508, %v1590
      %v1599 = vpack.c.b16 %v1510, %v1591
      %v1600 = vpack.c.b16 %v1512, %v1592
      %v1601 = vrot.slane %v1593, 1
      %v1602 = vrot.slane %v1594, 1
      %v1603 = vrot.slane %v1595, 1
      %v1604 = vrot.slane %v1596, 1
      %v1605 = vrot.slane %v1597, 1
      %v1606 = vrot.slane %v1598, 1
      %v1607 = vrot.slane %v1599, 1
      %v1608 = vrot.slane %v1600, 1
      %v1609 = vunpack.c.l.b16 %v1527
      %v1610 = vunpack.c.l.b16 %v1601
      %v1611 = vunpack.c.l.b16 %v1534
      %v1612 = vunpack.c.l.b16 %v1602
      %v1613 = vunpack.c.l.b16 %v1541
      %v1614 = vunpack.c.l.b16 %v1603
      %v1615 = vunpack.c.l.b16 %v1548
      %v1616 = vunpack.c.l.b16 %v1604
      %v1617 = vunpack.c.l.b16 %v1555
      %v1618 = vunpack.c.l.b16 %v1605
      %v1619 = vunpack.c.l.b16 %v1562
      %v1620 = vunpack.c.l.b16 %v1606
      %v1621 = vunpack.c.l.b16 %v1569
      %v1622 = vunpack.c.l.b16 %v1607
      %v1623 = vunpack.c.l.b16 %v1576
      %v1624 = vunpack.c.l.b16 %v1608
      %s1625 = scalar_lea.vmem %s3, 384
      %v1626 = vld [vmem:[%s1625] sm:$0xf]
      %v1627 = vld [vmem:[%s1625 + $0x4] sm:$0xf]
      %v1628 = vld [vmem:[%s1625 + $0x8] sm:$0xf]
      %v1629 = vld [vmem:[%s1625 + $0xc] sm:$0xf]
      %v1630 = vld [vmem:[%s1625 + $0x10] sm:$0xf]
      %v1631 = vld [vmem:[%s1625 + $0x14] sm:$0xf]
      %v1632 = vld [vmem:[%s1625 + $0x18] sm:$0xf]
      %v1633 = vld [vmem:[%s1625 + $0x1c] sm:$0xf]
      %v1634 = vld [vmem:[%s1625 + $0x20] sm:$0xf]
      %v1635 = vld [vmem:[%s1625 + $0x24] sm:$0xf]
      %v1636 = vld [vmem:[%s1625 + $0x28] sm:$0xf]
      %v1637 = vld [vmem:[%s1625 + $0x2c] sm:$0xf]
      %v1638 = vld [vmem:[%s1625 + $0x30] sm:$0xf]
      %v1639 = vld [vmem:[%s1625 + $0x34] sm:$0xf]
      %v1640 = vld [vmem:[%s1625 + $0x38] sm:$0xf]
      %v1641 = vld [vmem:[%s1625 + $0x3c] sm:$0xf]
      %v1642 = vld [vmem:[%s1625 + $0x40] sm:$0xf]
      %v1643 = vld [vmem:[%s1625 + $0x44] sm:$0xf]
      %v1644 = vld [vmem:[%s1625 + $0x48] sm:$0xf]
      %v1645 = vld [vmem:[%s1625 + $0x4c] sm:$0xf]
      %v1646 = vld [vmem:[%s1625 + $0x50] sm:$0xf]
      %v1647 = vld [vmem:[%s1625 + $0x54] sm:$0xf]
      %v1648 = vld [vmem:[%s1625 + $0x58] sm:$0xf]
      %v1649 = vld [vmem:[%s1625 + $0x5c] sm:$0xf]
      %v1650 = vld [vmem:[%s1625 + $0x60] sm:$0xf]
      %v1651 = vld [vmem:[%s1625 + $0x64] sm:$0xf]
      %v1652 = vld [vmem:[%s1625 + $0x68] sm:$0xf]
      %v1653 = vld [vmem:[%s1625 + $0x6c] sm:$0xf]
      %v1654 = vld [vmem:[%s1625 + $0x70] sm:$0xf]
      %v1655 = vld [vmem:[%s1625 + $0x74] sm:$0xf]
      %v1656 = vld [vmem:[%s1625 + $0x78] sm:$0xf]
      %v1657 = vld [vmem:[%s1625 + $0x7c] sm:$0xf]
      %v1658 = vld [vmem:[%s1625 + $0x80] sm:$0xf]
      %v1659 = vld [vmem:[%s1625 + $0x84] sm:$0xf]
      %v1660 = vld [vmem:[%s1625 + $0x88] sm:$0xf]
      %v1661 = vld [vmem:[%s1625 + $0x8c] sm:$0xf]
      %v1662 = vld [vmem:[%s1625 + $0x90] sm:$0xf]
      %v1663 = vld [vmem:[%s1625 + $0x94] sm:$0xf]
      %v1664 = vld [vmem:[%s1625 + $0x98] sm:$0xf]
      %v1665 = vld [vmem:[%s1625 + $0x9c] sm:$0xf]
      %v1666 = vld [vmem:[%s1625 + $0xa0] sm:$0xf]
      %v1667 = vld [vmem:[%s1625 + $0xa4] sm:$0xf]
      %v1668 = vld [vmem:[%s1625 + $0xa8] sm:$0xf]
      %v1669 = vld [vmem:[%s1625 + $0xac] sm:$0xf]
      %v1670 = vld [vmem:[%s1625 + $0xb0] sm:$0xf]
      %v1671 = vld [vmem:[%s1625 + $0xb4] sm:$0xf]
      %v1672 = vld [vmem:[%s1625 + $0xb8] sm:$0xf]
      %v1673 = vld [vmem:[%s1625 + $0xbc] sm:$0xf]
      %v1674 = vpack.c.b16 %v1499, %v1497
      %v1675 = vpack.c.b16 %v1611, %v1609
      %v1676 = vpack.c.b16 %v1612, %v1610
      %v1677 = vpack.c.b16 %v1503, %v1501
      %v1678 = vpack.c.b16 %v1615, %v1613
      %v1679 = vpack.c.b16 %v1616, %v1614
      %v1680 = vpack.c.b16 %v1507, %v1505
      %v1681 = vpack.c.b16 %v1619, %v1617
      %v1682 = vpack.c.b16 %v1620, %v1618
      %v1683 = vpack.c.b16 %v1511, %v1509
      %v1684 = vpack.c.b16 %v1623, %v1621
      %v1685 = vpack.c.b16 %v1624, %v1622
      %v1746 = vunpack.c.l.b16 %v1626
      %v1747 = vunpack.c.l.b16 %v1627
      %v1748 = vunpack.c.l.b16 %v1628
      %v1749 = vunpack.c.l.b16 %v1629
      %v1750 = vunpack.c.l.b16 %v1630
      %v1751 = vunpack.c.l.b16 %v1631
      %v1752 = vunpack.c.l.b16 %v1632
      %v1753 = vunpack.c.l.b16 %v1633
      %v1754 = vunpack.c.l.b16 %v1634
      %v1755 = vunpack.c.l.b16 %v1635
      %v1756 = vunpack.c.l.b16 %v1636
      %v1757 = vunpack.c.l.b16 %v1637
      %v1758 = vunpack.c.l.b16 %v1638
      %v1759 = vunpack.c.l.b16 %v1639
      %v1760 = vunpack.c.l.b16 %v1640
      %v1761 = vunpack.c.l.b16 %v1641
      %v1762 = vunpack.c.l.b16 %v1642
      %v1763 = vunpack.c.l.b16 %v1643
      %v1764 = vunpack.c.l.b16 %v1644
      %v1765 = vunpack.c.l.b16 %v1645
      %v1766 = vunpack.c.l.b16 %v1646
      %v1767 = vunpack.c.l.b16 %v1647
      %v1768 = vunpack.c.l.b16 %v1648
      %v1769 = vunpack.c.l.b16 %v1649
      %v1770 = vunpack.c.l.b16 %v1650
      %v1771 = vunpack.c.l.b16 %v1651
      %v1772 = vunpack.c.l.b16 %v1652
      %v1773 = vunpack.c.l.b16 %v1653
      %v1774 = vunpack.c.l.b16 %v1654
      %v1775 = vunpack.c.l.b16 %v1655
      %v1776 = vunpack.c.l.b16 %v1656
      %v1777 = vunpack.c.l.b16 %v1657
      %v1778 = vunpack.c.l.b16 %v1658
      %v1779 = vunpack.c.l.b16 %v1659
      %v1780 = vunpack.c.l.b16 %v1660
      %v1781 = vunpack.c.l.b16 %v1661
      %v1782 = vunpack.c.l.b16 %v1662
      %v1783 = vunpack.c.l.b16 %v1663
      %v1784 = vunpack.c.l.b16 %v1664
      %v1785 = vunpack.c.l.b16 %v1665
      %v1786 = vunpack.c.l.b16 %v1666
      %v1787 = vunpack.c.l.b16 %v1667
      %v1788 = vunpack.c.l.b16 %v1668
      %v1789 = vunpack.c.l.b16 %v1669
      %v1790 = vunpack.c.l.b16 %v1670
      %v1791 = vunpack.c.l.b16 %v1671
      %v1792 = vunpack.c.l.b16 %v1672
      %v1793 = vunpack.c.l.b16 %v1673
      %v1794 = vpack.c.b16 %v1747, %v1746
      %v1795 = vpack.c.b16 %v1749, %v1748
      %v1796 = vpack.c.b16 %v1751, %v1750
      %v1797 = vpack.c.b16 %v1753, %v1752
      %v1798 = vpack.c.b16 %v1755, %v1754
      %v1799 = vpack.c.b16 %v1757, %v1756
      %v1800 = vpack.c.b16 %v1759, %v1758
      %v1801 = vpack.c.b16 %v1761, %v1760
      %v1802 = vpack.c.b16 %v1763, %v1762
      %v1803 = vpack.c.b16 %v1765, %v1764
      %v1804 = vpack.c.b16 %v1767, %v1766
      %v1805 = vpack.c.b16 %v1769, %v1768
      %v1806 = vpack.c.b16 %v1771, %v1770
      %v1807 = vpack.c.b16 %v1773, %v1772
      %v1808 = vpack.c.b16 %v1775, %v1774
      %v1809 = vpack.c.b16 %v1777, %v1776
      %v1810 = vpack.c.b16 %v1779, %v1778
      %v1811 = vpack.c.b16 %v1781, %v1780
      %v1812 = vpack.c.b16 %v1783, %v1782
      %v1813 = vpack.c.b16 %v1785, %v1784
      %v1814 = vpack.c.b16 %v1787, %v1786
      %v1815 = vpack.c.b16 %v1789, %v1788
      %v1816 = vpack.c.b16 %v1791, %v1790
      %v1817 = vpack.c.b16 %v1793, %v1792
      %1842 = vmatpush.bf16.msra.mxu0 %v1801
      %1843 = vmatpush.bf16.msra.mxu0 %v1800
      %1844 = vmatpush.bf16.msra.mxu0 %v1799
      %1845 = vmatpush.bf16.msra.mxu0 %v1798
      %1846 = vmatpush.bf16.msra.mxu0 %v1797
      %1847 = vmatpush.bf16.msra.mxu0 %v1796
      %1848 = vmatpush.bf16.msra.mxu0 %v1795
      %1849 = vmatpush.bf16.msra.mxu0 %v1794
      %1850 = vmatmul.bf16.gmra.mxu0 %v1674
      %v1851 = vpop.f32.mrf.mxu0
      %v1852 = vadd.f32 0.0, %v1851
      %v1853 = vpop.f32.mrf.mxu0
      %v1854 = vadd.f32 0.0, %v1853
      %1855 = vmatmul.bf16.gmra.mxu0 %v1677
      %v1856 = vpop.f32.mrf.mxu0
      %v1857 = vadd.f32 0.0, %v1856
      %v1858 = vpop.f32.mrf.mxu0
      %v1859 = vadd.f32 0.0, %v1858
      %1860 = vmatmul.bf16.gmra.mxu0 %v1680
      %v1861 = vpop.f32.mrf.mxu0
      %v1862 = vadd.f32 0.0, %v1861
      %v1863 = vpop.f32.mrf.mxu0
      %v1864 = vadd.f32 0.0, %v1863
      %1865 = vmatmul.bf16.gmra.mxu0 %v1683
      %v1866 = vpop.f32.mrf.mxu0
      %v1867 = vadd.f32 0.0, %v1866
      %v1868 = vpop.f32.mrf.mxu0
      %v1869 = vadd.f32 0.0, %v1868
      %1870 = vdwg.mxu0
      %1871 = vmatpush.bf16.msra.mxu0 %v1809
      %1872 = vmatpush.bf16.msra.mxu0 %v1808
      %1873 = vmatpush.bf16.msra.mxu0 %v1807
      %1874 = vmatpush.bf16.msra.mxu0 %v1806
      %1875 = vmatpush.bf16.msra.mxu0 %v1805
      %1876 = vmatpush.bf16.msra.mxu0 %v1804
      %1877 = vmatpush.bf16.msra.mxu0 %v1803
      %1878 = vmatpush.bf16.msra.mxu0 %v1802
      %1879 = vmatmul.bf16.gmra.mxu0 %v1675
      %v1880 = vpop.f32.mrf.mxu0
      %v1881 = vadd.f32 %v1852, %v1880
      %v1882 = vpop.f32.mrf.mxu0
      %v1883 = vadd.f32 %v1854, %v1882
      %1884 = vmatmul.bf16.gmra.mxu0 %v1678
      %v1885 = vpop.f32.mrf.mxu0
      %v1886 = vadd.f32 %v1857, %v1885
      %v1887 = vpop.f32.mrf.mxu0
      %v1888 = vadd.f32 %v1859, %v1887
      %1889 = vmatmul.bf16.gmra.mxu0 %v1681
      %v1890 = vpop.f32.mrf.mxu0
      %v1891 = vadd.f32 %v1862, %v1890
      %v1892 = vpop.f32.mrf.mxu0
      %v1893 = vadd.f32 %v1864, %v1892
      %1894 = vmatmul.bf16.gmra.mxu0 %v1684
      %v1895 = vpop.f32.mrf.mxu0
      %v1896 = vadd.f32 %v1867, %v1895
      %v1897 = vpop.f32.mrf.mxu0
      %v1898 = vadd.f32 %v1869, %v1897
      %1899 = vdwg.mxu0
      %1900 = vmatpush.bf16.msra.mxu0 %v1817
      %1901 = vmatpush.bf16.msra.mxu0 %v1816
      %1902 = vmatpush.bf16.msra.mxu0 %v1815
      %1903 = vmatpush.bf16.msra.mxu0 %v1814
      %1904 = vmatpush.bf16.msra.mxu0 %v1813
      %1905 = vmatpush.bf16.msra.mxu0 %v1812
      %1906 = vmatpush.bf16.msra.mxu0 %v1811
      %1907 = vmatpush.bf16.msra.mxu0 %v1810
      %1908 = vmatmul.bf16.gmra.mxu0 %v1676
      %v1909 = vpop.f32.mrf.mxu0
      %v1910 = vadd.f32 %v1881, %v1909
      %v1911 = vpop.f32.mrf.mxu0
      %v1912 = vadd.f32 %v1883, %v1911
      %1913 = vmatmul.bf16.gmra.mxu0 %v1679
      %v1914 = vpop.f32.mrf.mxu0
      %v1915 = vadd.f32 %v1886, %v1914
      %v1916 = vpop.f32.mrf.mxu0
      %v1917 = vadd.f32 %v1888, %v1916
      %1918 = vmatmul.bf16.gmra.mxu0 %v1682
      %v1919 = vpop.f32.mrf.mxu0
      %v1920 = vadd.f32 %v1891, %v1919
      %v1921 = vpop.f32.mrf.mxu0
      %v1922 = vadd.f32 %v1893, %v1921
      %1923 = vmatmul.bf16.gmra.mxu0 %v1685
      %v1924 = vpop.f32.mrf.mxu0
      %v1925 = vadd.f32 %v1896, %v1924
      %v1926 = vpop.f32.mrf.mxu0
      %v1927 = vadd.f32 %v1898, %v1926
      %1928 = vdwg.mxu0
      %v1929 = vld [vmem:[#allocation3] sm:$0xff]
      %v1930 = vld [vmem:[#allocation3 + $0x8] sm:$0xff]
      %v1931 = vld [vmem:[#allocation3 + $0x10] sm:$0xff]
      %v1932 = vld [vmem:[#allocation3 + $0x18] sm:$0xff]
      %v1933 = vld [vmem:[#allocation3 + $0x20] sm:$0xff]
      %v1934 = vld [vmem:[#allocation3 + $0x28] sm:$0xff]
      %v1935 = vld [vmem:[#allocation3 + $0x30] sm:$0xff]
      %v1936 = vld [vmem:[#allocation3 + $0x38] sm:$0xff]
      %v1937 = vadd.f32 %v1929, %v1910
      %v1938 = vadd.f32 %v1930, %v1912
      %v1939 = vadd.f32 %v1931, %v1915
      %v1940 = vadd.f32 %v1932, %v1917
      %v1941 = vadd.f32 %v1933, %v1920
      %v1942 = vadd.f32 %v1934, %v1922
      %v1943 = vadd.f32 %v1935, %v1925
      %v1944 = vadd.f32 %v1936, %v1927
      %1945 = vst [vmem:[#allocation3] sm:$0xff] %v1937
      %1946 = vst [vmem:[#allocation3 + $0x8] sm:$0xff] %v1938
      %1947 = vst [vmem:[#allocation3 + $0x10] sm:$0xff] %v1939
      %1948 = vst [vmem:[#allocation3 + $0x18] sm:$0xff] %v1940
      %1949 = vst [vmem:[#allocation3 + $0x20] sm:$0xff] %v1941
      %1950 = vst [vmem:[#allocation3 + $0x28] sm:$0xff] %v1942
      %1951 = vst [vmem:[#allocation3 + $0x30] sm:$0xff] %v1943
      %1952 = vst [vmem:[#allocation3 + $0x38] sm:$0xff] %v1944
      %v1953 = vld [vmem:[#allocation3] sm:$0xff]
      %v1954 = vld [vmem:[#allocation3 + $0x8] sm:$0xff]
      %v1955 = vld [vmem:[#allocation3 + $0x10] sm:$0xff]
      %v1956 = vld [vmem:[#allocation3 + $0x18] sm:$0xff]
      %v1957 = vld [vmem:[#allocation3 + $0x20] sm:$0xff]
      %v1958 = vld [vmem:[#allocation3 + $0x28] sm:$0xff]
      %v1959 = vld [vmem:[#allocation3 + $0x30] sm:$0xff]
      %v1960 = vld [vmem:[#allocation3 + $0x38] sm:$0xff]
      %v1961 = vpack.c.bf16 %v1953, %v1953
      %v1962 = vpack.c.bf16 %v1954, %v1954
      %v1963 = vpack.c.bf16 %v1955, %v1955
      %v1964 = vpack.c.bf16 %v1956, %v1956
      %v1965 = vpack.c.bf16 %v1957, %v1957
      %v1966 = vpack.c.bf16 %v1958, %v1958
      %v1967 = vpack.c.bf16 %v1959, %v1959
      %v1968 = vpack.c.bf16 %v1960, %v1960
      %1969 = vst [vmem:[%s262] sm:$0xf] %v1961
      %1970 = vst [vmem:[%s262 + $0x4] sm:$0xf] %v1962
      %1971 = vst [vmem:[%s262 + $0x8] sm:$0xf] %v1963
      %1972 = vst [vmem:[%s262 + $0xc] sm:$0xf] %v1964
      %1973 = vst [vmem:[%s262 + $0x10] sm:$0xf] %v1965
      %1974 = vst [vmem:[%s262 + $0x14] sm:$0xf] %v1966
      %1975 = vst [vmem:[%s262 + $0x18] sm:$0xf] %v1967
      %1976 = vst [vmem:[%s262 + $0x1c] sm:$0xf] %v1968
      %v1977 = vadd.f32 %v1953, %v1954
      %v1978 = vadd.f32 %v1977, %v1955
      %v1979 = vadd.f32 %v1978, %v1956
      %v1980 = vadd.f32 %v1979, %v1957
      %v1981 = vadd.f32 %v1980, %v1958
      %v1982 = vadd.f32 %v1981, %v1959
      %v1983 = vadd.f32 %v1982, %v1960
      %v1984 = vrot.slane %v1983, 4
      %v1985 = vadd.f32 %v1983, %v1984
      %v1986 = vrot.slane %v1985, 2
      %v1987 = vadd.f32 %v1985, %v1986
      %v1988 = vrot.slane %v1987, 1
      %v1989 = vadd.f32 %v1987, %v1988
      %1990 = vst [vmem:[%s265] sm:$0x1] %v1989
      %v1991 = vmul.f32 %v1953, %v1953
      %v1992 = vmul.f32 %v1954, %v1954
      %v1993 = vmul.f32 %v1955, %v1955
      %v1994 = vmul.f32 %v1956, %v1956
      %v1995 = vmul.f32 %v1957, %v1957
      %v1996 = vmul.f32 %v1958, %v1958
      %v1997 = vmul.f32 %v1959, %v1959
      %v1998 = vmul.f32 %v1960, %v1960
      %v1999 = vadd.f32 %v1991, %v1992
      %v2000 = vadd.f32 %v1999, %v1993
      %v2001 = vadd.f32 %v2000, %v1994
      %v2002 = vadd.f32 %v2001, %v1995
      %v2003 = vadd.f32 %v2002, %v1996
      %v2004 = vadd.f32 %v2003, %v1997
      %v2005 = vadd.f32 %v2004, %v1998
      %v2006 = vrot.slane %v2005, 4
      %v2007 = vadd.f32 %v2005, %v2006
      %v2008 = vrot.slane %v2007, 2
      %v2009 = vadd.f32 %v2007, %v2008
      %v2010 = vrot.slane %v2009, 1
      %v2011 = vadd.f32 %v2009, %v2010
      %2012 = vst [vmem:[%s268] sm:$0x1] %v2011
      %p2013 = scmp.lt.s32.totalorder %s18, 1
      %s2014 = scalar_select %p2013, %s18, 1
      %s2015 = smul.addr %s2014, 8
      %s2016 = smul.addr %s2015, 4
      %s2017 = scalar_lea.vmem %s4, %s2016
      %p2018 = scmp.lt.s32.totalorder %s18, 1
      %s2019 = scalar_select %p2018, %s18, 1
      %s2020 = scalar_lea.vmem %s5, %s2019
      %p2021 = scmp.lt.s32.totalorder %s18, 1
      %s2022 = scalar_select %p2021, %s18, 1
      %s2023 = scalar_lea.vmem %s6, %s2022
      // Predicated region
      $region37: #{bottleneck_block_forward.4} parent=35 // pred_check
        %p2024 = pneg %p125
      $region38: #{bottleneck_block_forward.4} parent=35 // pred_check_branch
        %2026 = sbr.rel (%p2024) target = $region40
      $region39: #{bottleneck_block_forward.4} parent=35 // pred_region
        _
      $region40: #{bottleneck_block_forward.4} parent=35 // pred_fallthru
        _
      // Predicated region
      $region41: #{bottleneck_block_forward.4} parent=35 // pred_check
        %p2027 = pneg %p151
      $region42: #{bottleneck_block_forward.4} parent=35 // pred_check_branch
        %2029 = sbr.rel (%p2027) target = $region44
      $region43: #{bottleneck_block_forward.4} parent=35 // pred_region
        _
      $region44: #{bottleneck_block_forward.4} parent=35 // pred_fallthru
        _
      // Predicated region
      $region45: #{bottleneck_block_forward.4} parent=35 // pred_check
        %p2030 = pneg %p177
      $region46: #{bottleneck_block_forward.4} parent=35 // pred_check_branch
        %2032 = sbr.rel (%p2030) target = $region48
      $region47: #{bottleneck_block_forward.4} parent=35 // pred_region
        _
      $region48: #{bottleneck_block_forward.4} parent=35 // pred_fallthru
        _
    $region36: #{bottleneck_block_forward.4} parent=5 // pred_fallthru
      _
    %p2033 = scmp.le.s32.totalorder 2, %s13
    // Predicated region
    $region49: #{bottleneck_block_forward.4} parent=5 // pred_check
      %p2034 = pneg %p2033
    $region50: #{bottleneck_block_forward.4} parent=5 // pred_check_branch
      %2036 = sbr.rel (%p2034) target = $region52
    $region51: #{bottleneck_block_forward.4} parent=5 // pred_region
      %s2037 = ssub.s32 %s13, 2
      // Predicated region
      $region53: #{bottleneck_block_forward.4} parent=51 // pred_check
        %p2038 = pneg %p131
      $region54: #{bottleneck_block_forward.4} parent=51 // pred_check_branch
        %2040 = sbr.rel (%p2038) target = $region56
      $region55: #{bottleneck_block_forward.4} parent=51 // pred_region
        %p2041 = scmp.lt.s32.totalorder %s19, 1
        %s2042 = scalar_select %p2041, %s19, 1
        %s2043 = smul.addr %s2042, 8
        %s2044 = smul.addr %s2043, 4
        %s2045 = scalar_lea.vmem %s4, %s2044
      $region56: #{bottleneck_block_forward.4} parent=51 // pred_fallthru
        _
      // Predicated region
      $region57: #{bottleneck_block_forward.4} parent=51 // pred_check
        %p2046 = pneg %p157
      $region58: #{bottleneck_block_forward.4} parent=51 // pred_check_branch
        %2048 = sbr.rel (%p2046) target = $region60
      $region59: #{bottleneck_block_forward.4} parent=51 // pred_region
        %p2049 = scmp.lt.s32.totalorder %s19, 1
        %s2050 = scalar_select %p2049, %s19, 1
        %s2051 = scalar_lea.vmem %s5, %s2050
      $region60: #{bottleneck_block_forward.4} parent=51 // pred_fallthru
        _
      // Predicated region
      $region61: #{bottleneck_block_forward.4} parent=51 // pred_check
        %p2052 = pneg %p183
      $region62: #{bottleneck_block_forward.4} parent=51 // pred_check_branch
        %2054 = sbr.rel (%p2052) target = $region64
      $region63: #{bottleneck_block_forward.4} parent=51 // pred_region
        %p2055 = scmp.lt.s32.totalorder %s19, 1
        %s2056 = scalar_select %p2055, %s19, 1
        %s2057 = scalar_lea.vmem %s6, %s2056
      $region64: #{bottleneck_block_forward.4} parent=51 // pred_fallthru
        _
    $region52: #{bottleneck_block_forward.4} parent=5 // pred_fallthru
      _
  $region6: #{bottleneck_block_forward.4} parent=0 // loop_footer
    %s17 = sadd.s32 1, %s13
  $region7: #{bottleneck_block_forward.4} parent=0 // loop_footer_branch
    %12 = sbr.rel target = $region3
  $region8: #{bottleneck_block_forward.4} parent=0 // loop_exit
    _

</llo_original>
